<compile_context>
chip_gen: v5e
topology: v5e:2x2
jax: 0.10.0
libtpu: 0.0.40
codegen_flags: <defaults>
</compile_context>

<pallas_src>
import functools

import jax
import jax.numpy as jnp
from jax.experimental import pallas as pl
from jax.experimental.pallas import tpu as pltpu

IN_F = 784
IN_PAD = 896        # 784 rounded up to a multiple of 128
H1 = 512
H2 = 256
OUT_F = 10
OUT_PAD = 128       # lane-dense classifier / output


def _batchnorm_train(h, gamma, beta, eps=1e-5):
    # BatchNorm1d in training mode: batch statistics, biased variance, eps=1e-5
    # (matches a freshly-constructed torch module in .train(); no running stats).
    mean = jnp.mean(h, axis=0, keepdims=True)
    var = jnp.mean(jnp.square(h - mean), axis=0, keepdims=True)
    scale = gamma * jax.lax.rsqrt(var + eps)          # gamma folded into the scale
    return h * scale + (beta - mean * scale)


def mlp_kernel(x_ref, w1_ref, b1_ref, g1_ref, be1_ref, m1_ref,
               w2_ref, b2_ref, g2_ref, be2_ref, m2_ref,
               w3_ref, b3_ref, o_ref, *, training):
    # fc1 -> bn1 -> relu -> dropout   (bf16 matmul inputs, f32 accumulation)
    h = jnp.dot(x_ref[...], w1_ref[...],
                preferred_element_type=jnp.float32) + b1_ref[...]
    h = _batchnorm_train(h, g1_ref[...], be1_ref[...])
    h = jnp.maximum(h, 0.0)
    if training:
        h = h * m1_ref[...]           # inverted dropout: mask values are {0, 2}

    # fc2 -> bn2 -> relu -> dropout
    h = jnp.dot(h.astype(jnp.bfloat16), w2_ref[...],
                preferred_element_type=jnp.float32) + b2_ref[...]
    h = _batchnorm_train(h, g2_ref[...], be2_ref[...])
    h = jnp.maximum(h, 0.0)
    if training:
        h = h * m2_ref[...]

    # fc3 -> softmax over the lane axis.  Columns 10..127 have zero weights and a
    # -1e30 bias, so their exp underflows to exactly 0 and the 128-lane softmax is
    # identical to the 10-way softmax.
    logits = jnp.dot(h.astype(jnp.bfloat16), w3_ref[...],
                     preferred_element_type=jnp.float32) + b3_ref[...]
    z = logits - jnp.max(logits, axis=1, keepdims=True)
    e = jnp.exp(z)
    o_ref[...] = e / jnp.sum(e, axis=1, keepdims=True)


def mlp_forward(x, params, *, training=True, rng_key=None):
    """x: (B, 784) float32.  Returns (B, 10) float32 softmax probabilities."""
    (w1, b1, g1, be1, w2, b2, g2, be2, w3, b3) = params
    B = x.shape[0]

    # Host-side prep: zero-pad K to 896, pad classifier to 128 lanes, cast weights
    # and the matmul input to bf16 (biases / BN params stay f32).
    x_p = jnp.pad(x.astype(jnp.bfloat16), ((0, 0), (0, IN_PAD - IN_F)))
    w1_p = jnp.pad(w1, ((0, IN_PAD - IN_F), (0, 0))).astype(jnp.bfloat16)
    w2_b = w2.astype(jnp.bfloat16)
    w3_p = jnp.pad(w3, ((0, 0), (0, OUT_PAD - OUT_F))).astype(jnp.bfloat16)
    b3_p = jnp.concatenate(
        [b3, jnp.full((OUT_PAD - OUT_F,), -1e30, jnp.float32)]).reshape(1, -1)

    if training:
        if rng_key is None:
            rng_key = jax.random.PRNGKey(0)
        k1, k2 = jax.random.split(rng_key)
        # TODO(synk): dropout randomness comes from jax.random host-side keys, so the
        # random stream differs from torch's RNG; p=0.5 inverted-dropout semantics match.
        m1 = jax.random.bernoulli(k1, 0.5, (B, H1)).astype(jnp.float32) * 2.0
        m2 = jax.random.bernoulli(k2, 0.5, (B, H2)).astype(jnp.float32) * 2.0
    else:
        m1 = jnp.ones((1, H1), jnp.float32)   # unused on the eval path
        m2 = jnp.ones((1, H2), jnp.float32)

    vmem = pl.BlockSpec(memory_space=pltpu.MemorySpace.VMEM)
    kernel = functools.partial(mlp_kernel, training=training)

    out = pl.pallas_call(
        kernel,
        out_shape=jax.ShapeDtypeStruct((B, OUT_PAD), jnp.float32),
        in_specs=[vmem] * 13,
        out_specs=vmem,
    )(x_p,
      w1_p, b1.reshape(1, -1), g1.reshape(1, -1), be1.reshape(1, -1), m1,
      w2_b, b2.reshape(1, -1), g2.reshape(1, -1), be2.reshape(1, -1), m2,
      w3_p, b3_p)
    return out[:, :OUT_F]


def init_params(key):
    k1, k2, k3 = jax.random.split(key, 3)
    # LinearLayer: W = randn(in, out) * sqrt(2/in), b = zeros(out)
    w1 = jax.random.normal(k1, (IN_F, H1), jnp.float32) * jnp.sqrt(2.0 / IN_F)
    b1 = jnp.zeros((H1,), jnp.float32)
    w2 = jax.random.normal(k2, (H1, H2), jnp.float32) * jnp.sqrt(2.0 / H1)
    b2 = jnp.zeros((H2,), jnp.float32)
    w3 = jax.random.normal(k3, (H2, OUT_F), jnp.float32) * jnp.sqrt(2.0 / H2)
    b3 = jnp.zeros((OUT_F,), jnp.float32)
    # BatchNorm1d: gamma = 1, beta = 0
    g1, be1 = jnp.ones((H1,), jnp.float32), jnp.zeros((H1,), jnp.float32)
    g2, be2 = jnp.ones((H2,), jnp.float32), jnp.zeros((H2,), jnp.float32)
    return (w1, b1, g1, be1, w2, b2, g2, be2, w3, b3)


def _reference_eval(x, params):
    # Pure-JAX reference for the deterministic (training=False) path, using the same
    # bf16-input / f32-accumulate matmuls as the kernel.
    (w1, b1, g1, be1, w2, b2, g2, be2, w3, b3) = params

    def bn(h, g, be, eps=1e-5):
        mean = jnp.mean(h, axis=0, keepdims=True)
        var = jnp.mean(jnp.square(h - mean), axis=0, keepdims=True)
        return (h - mean) * jax.lax.rsqrt(var + eps) * g + be

    h = jnp.dot(x.astype(jnp.bfloat16), w1.astype(jnp.bfloat16),
                preferred_element_type=jnp.float32) + b1
    h = jnp.maximum(bn(h, g1, be1), 0.0)
    h = jnp.dot(h.astype(jnp.bfloat16), w2.astype(jnp.bfloat16),
                preferred_element_type=jnp.float32) + b2
    h = jnp.maximum(bn(h, g2, be2), 0.0)
    logits = jnp.dot(h.astype(jnp.bfloat16), w3.astype(jnp.bfloat16),
                     preferred_element_type=jnp.float32) + b3
    e = jnp.exp(logits - jnp.max(logits, axis=1, keepdims=True))
    return e / jnp.sum(e, axis=1, keepdims=True)


if __name__ == "__main__":
    key = jax.random.PRNGKey(0)
    kx, kp, kd = jax.random.split(key, 3)

    B = 128   # multiple of 128 so the MXU row dimension is actually used
    x = jax.random.normal(kx, (B, IN_F), jnp.float32)
    params = init_params(kp)

    # Deterministic path (no dropout) checked against the pure-JAX reference.
    out_eval = jax.block_until_ready(mlp_forward(x, params, training=False))
    ref_eval = _reference_eval(x, params)
    assert out_eval.shape == (B, OUT_F)
    assert bool(jnp.all(jnp.isfinite(out_eval)))
    assert jnp.allclose(out_eval, ref_eval, atol=1e-3, rtol=1e-2), (
        float(jnp.max(jnp.abs(out_eval - ref_eval))))
    assert jnp.allclose(jnp.sum(out_eval, axis=1), jnp.ones((B,)), atol=1e-4)

    # Module-default path (training=True, dropout active).
    out_train = jax.block_until_ready(
        mlp_forward(x, params, training=True, rng_key=kd))
    assert out_train.shape == (B, OUT_F)
    assert bool(jnp.all(jnp.isfinite(out_train)))
    assert jnp.allclose(jnp.sum(out_train, axis=1), jnp.ones((B,)), atol=1e-4)

    print("KERNEL_OK")
</pallas_src>

<mosaic_0001>
module attributes {stable_mosaic.version = 11 : i64} {
  func.func @mlp_kernel(%arg0: memref<128x896xbf16, #tpu.memory_space<vmem>>, %arg1: memref<896x512xbf16, #tpu.memory_space<vmem>>, %arg2: memref<1x512xf32, #tpu.memory_space<vmem>>, %arg3: memref<1x512xf32, #tpu.memory_space<vmem>>, %arg4: memref<1x512xf32, #tpu.memory_space<vmem>>, %arg5: memref<1x512xf32, #tpu.memory_space<vmem>>, %arg6: memref<512x256xbf16, #tpu.memory_space<vmem>>, %arg7: memref<1x256xf32, #tpu.memory_space<vmem>>, %arg8: memref<1x256xf32, #tpu.memory_space<vmem>>, %arg9: memref<1x256xf32, #tpu.memory_space<vmem>>, %arg10: memref<1x256xf32, #tpu.memory_space<vmem>>, %arg11: memref<256x128xbf16, #tpu.memory_space<vmem>>, %arg12: memref<1x128xf32, #tpu.memory_space<vmem>>, %arg13: memref<128x128xf32, #tpu.memory_space<vmem>>) attributes {dimension_semantics = [], scalar_prefetch = 0 : i64, scratch_operands = 0 : i64, tpu.core_type = #tpu.core_type<tc>} {
    %c0 = arith.constant 0 : index
    %c0_0 = arith.constant 0 : index
    %0 = vector.load %arg0[%c0, %c0_0] : memref<128x896xbf16, #tpu.memory_space<vmem>>, vector<128x896xbf16>
    %c0_1 = arith.constant 0 : index
    %c0_2 = arith.constant 0 : index
    %1 = vector.load %arg1[%c0_1, %c0_2] : memref<896x512xbf16, #tpu.memory_space<vmem>>, vector<896x512xbf16>
    %cst = arith.constant dense<0.000000e+00> : vector<128x512xf32>
    %2 = tpu.matmul %0, %1, %cst {dimension_numbers = #tpu.dot_dimension_numbers<[1], [0], [0], [1], [0, 0, 1, 1], [], []>} : vector<128x896xbf16>, vector<896x512xbf16>, vector<128x512xf32> -> vector<128x512xf32>
    %c0_3 = arith.constant 0 : index
    %c0_4 = arith.constant 0 : index
    %3 = vector.load %arg2[%c0_3, %c0_4] : memref<1x512xf32, #tpu.memory_space<vmem>>, vector<1x512xf32>
    %4 = vector.broadcast %3 : vector<1x512xf32> to vector<128x512xf32>
    %5 = arith.addf %2, %4 : vector<128x512xf32>
    %c0_5 = arith.constant 0 : index
    %c0_6 = arith.constant 0 : index
    %6 = vector.load %arg3[%c0_5, %c0_6] : memref<1x512xf32, #tpu.memory_space<vmem>>, vector<1x512xf32>
    %c0_7 = arith.constant 0 : index
    %c0_8 = arith.constant 0 : index
    %7 = vector.load %arg4[%c0_7, %c0_8] : memref<1x512xf32, #tpu.memory_space<vmem>>, vector<1x512xf32>
    %cst_9 = arith.constant dense<0.000000e+00> : vector<512xf32>
    %8 = vector.multi_reduction <add>, %5, %cst_9 [0] : vector<128x512xf32> to vector<512xf32>
    %9 = vector.shape_cast %8 : vector<512xf32> to vector<1x512xf32>
    %cst_10 = arith.constant 1.280000e+02 : f32
    %10 = vector.broadcast %cst_10 : f32 to vector<1x512xf32>
    %11 = arith.divf %9, %10 : vector<1x512xf32>
    %12 = vector.broadcast %11 : vector<1x512xf32> to vector<128x512xf32>
    %13 = arith.subf %5, %12 : vector<128x512xf32>
    %14 = arith.mulf %13, %13 : vector<128x512xf32>
    %cst_11 = arith.constant dense<0.000000e+00> : vector<512xf32>
    %15 = vector.multi_reduction <add>, %14, %cst_11 [0] : vector<128x512xf32> to vector<512xf32>
    %16 = vector.shape_cast %15 : vector<512xf32> to vector<1x512xf32>
    %cst_12 = arith.constant 1.280000e+02 : f32
    %17 = vector.broadcast %cst_12 : f32 to vector<1x512xf32>
    %18 = arith.divf %16, %17 : vector<1x512xf32>
    %cst_13 = arith.constant 9.99999974E-6 : f32
    %19 = vector.broadcast %cst_13 : f32 to vector<1x512xf32>
    %20 = arith.addf %18, %19 : vector<1x512xf32>
    %21 = math.rsqrt %20 : vector<1x512xf32>
    %22 = arith.mulf %6, %21 : vector<1x512xf32>
    %23 = vector.broadcast %22 : vector<1x512xf32> to vector<128x512xf32>
    %24 = arith.mulf %5, %23 : vector<128x512xf32>
    %25 = arith.mulf %11, %22 : vector<1x512xf32>
    %26 = arith.subf %7, %25 : vector<1x512xf32>
    %27 = vector.broadcast %26 : vector<1x512xf32> to vector<128x512xf32>
    %28 = arith.addf %24, %27 : vector<128x512xf32>
    %cst_14 = arith.constant 0.000000e+00 : f32
    %29 = vector.broadcast %cst_14 : f32 to vector<128x512xf32>
    %30 = arith.maximumf %28, %29 : vector<128x512xf32>
    %31 = arith.truncf %30 : vector<128x512xf32> to vector<128x512xbf16>
    %c0_15 = arith.constant 0 : index
    %c0_16 = arith.constant 0 : index
    %32 = vector.load %arg6[%c0_15, %c0_16] : memref<512x256xbf16, #tpu.memory_space<vmem>>, vector<512x256xbf16>
    %cst_17 = arith.constant dense<0.000000e+00> : vector<128x256xf32>
    %33 = tpu.matmul %31, %32, %cst_17 {dimension_numbers = #tpu.dot_dimension_numbers<[1], [0], [0], [1], [0, 0, 1, 1], [], []>} : vector<128x512xbf16>, vector<512x256xbf16>, vector<128x256xf32> -> vector<128x256xf32>
    %c0_18 = arith.constant 0 : index
    %c0_19 = arith.constant 0 : index
    %34 = vector.load %arg7[%c0_18, %c0_19] : memref<1x256xf32, #tpu.memory_space<vmem>>, vector<1x256xf32>
    %35 = vector.broadcast %34 : vector<1x256xf32> to vector<128x256xf32>
    %36 = arith.addf %33, %35 : vector<128x256xf32>
    %c0_20 = arith.constant 0 : index
    %c0_21 = arith.constant 0 : index
    %37 = vector.load %arg8[%c0_20, %c0_21] : memref<1x256xf32, #tpu.memory_space<vmem>>, vector<1x256xf32>
    %c0_22 = arith.constant 0 : index
    %c0_23 = arith.constant 0 : index
    %38 = vector.load %arg9[%c0_22, %c0_23] : memref<1x256xf32, #tpu.memory_space<vmem>>, vector<1x256xf32>
    %cst_24 = arith.constant dense<0.000000e+00> : vector<256xf32>
    %39 = vector.multi_reduction <add>, %36, %cst_24 [0] : vector<128x256xf32> to vector<256xf32>
    %40 = vector.shape_cast %39 : vector<256xf32> to vector<1x256xf32>
    %cst_25 = arith.constant 1.280000e+02 : f32
    %41 = vector.broadcast %cst_25 : f32 to vector<1x256xf32>
    %42 = arith.divf %40, %41 : vector<1x256xf32>
    %43 = vector.broadcast %42 : vector<1x256xf32> to vector<128x256xf32>
    %44 = arith.subf %36, %43 : vector<128x256xf32>
    %45 = arith.mulf %44, %44 : vector<128x256xf32>
    %cst_26 = arith.constant dense<0.000000e+00> : vector<256xf32>
    %46 = vector.multi_reduction <add>, %45, %cst_26 [0] : vector<128x256xf32> to vector<256xf32>
    %47 = vector.shape_cast %46 : vector<256xf32> to vector<1x256xf32>
    %cst_27 = arith.constant 1.280000e+02 : f32
    %48 = vector.broadcast %cst_27 : f32 to vector<1x256xf32>
    %49 = arith.divf %47, %48 : vector<1x256xf32>
    %cst_28 = arith.constant 9.99999974E-6 : f32
    %50 = vector.broadcast %cst_28 : f32 to vector<1x256xf32>
    %51 = arith.addf %49, %50 : vector<1x256xf32>
    %52 = math.rsqrt %51 : vector<1x256xf32>
    %53 = arith.mulf %37, %52 : vector<1x256xf32>
    %54 = vector.broadcast %53 : vector<1x256xf32> to vector<128x256xf32>
    %55 = arith.mulf %36, %54 : vector<128x256xf32>
    %56 = arith.mulf %42, %53 : vector<1x256xf32>
    %57 = arith.subf %38, %56 : vector<1x256xf32>
    %58 = vector.broadcast %57 : vector<1x256xf32> to vector<128x256xf32>
    %59 = arith.addf %55, %58 : vector<128x256xf32>
    %cst_29 = arith.constant 0.000000e+00 : f32
    %60 = vector.broadcast %cst_29 : f32 to vector<128x256xf32>
    %61 = arith.maximumf %59, %60 : vector<128x256xf32>
    %62 = arith.truncf %61 : vector<128x256xf32> to vector<128x256xbf16>
    %c0_30 = arith.constant 0 : index
    %c0_31 = arith.constant 0 : index
    %63 = vector.load %arg11[%c0_30, %c0_31] : memref<256x128xbf16, #tpu.memory_space<vmem>>, vector<256x128xbf16>
    %cst_32 = arith.constant dense<0.000000e+00> : vector<128x128xf32>
    %64 = tpu.matmul %62, %63, %cst_32 {dimension_numbers = #tpu.dot_dimension_numbers<[1], [0], [0], [1], [0, 0, 1, 1], [], []>} : vector<128x256xbf16>, vector<256x128xbf16>, vector<128x128xf32> -> vector<128x128xf32>
    %c0_33 = arith.constant 0 : index
    %c0_34 = arith.constant 0 : index
    %65 = vector.load %arg12[%c0_33, %c0_34] : memref<1x128xf32, #tpu.memory_space<vmem>>, vector<1x128xf32>
    %66 = vector.broadcast %65 : vector<1x128xf32> to vector<128x128xf32>
    %67 = arith.addf %64, %66 : vector<128x128xf32>
    %cst_35 = arith.constant dense<0xFF800000> : vector<128xf32>
    %68 = vector.multi_reduction <maximumf>, %67, %cst_35 [1] : vector<128x128xf32> to vector<128xf32>
    %69 = vector.shape_cast %68 : vector<128xf32> to vector<128x1xf32>
    %70 = vector.broadcast %69 : vector<128x1xf32> to vector<128x128xf32>
    %71 = arith.subf %67, %70 : vector<128x128xf32>
    %72 = math.exp %71 : vector<128x128xf32>
    %cst_36 = arith.constant dense<0.000000e+00> : vector<128xf32>
    %73 = vector.multi_reduction <add>, %72, %cst_36 [1] : vector<128x128xf32> to vector<128xf32>
    %74 = vector.shape_cast %73 : vector<128xf32> to vector<128x1xf32>
    %75 = vector.broadcast %74 : vector<128x1xf32> to vector<128x128xf32>
    %76 = arith.divf %72, %75 : vector<128x128xf32>
    %c0_37 = arith.constant 0 : index
    %c0_38 = arith.constant 0 : index
    %77 = vector.load %arg13[%c0_37, %c0_38] : memref<128x128xf32, #tpu.memory_space<vmem>>, vector<128x128xf32>
    tpu.vector_store %arg13[%c0_37, %c0_38], %76 {strides = array<i32>} : memref<128x128xf32, #tpu.memory_space<vmem>>, vector<128x128xf32>,
    return
  }
}

</mosaic_0001>

<llo_original>
// kernel: tpu_custom_call.1
$region0: #{tpu_custom_call.1}
  #allocation0 [shape = 'u32[]', space=smem, size = 0x4, offset = 0x4, fixed_abs, tag = 'smem constant byte address 0x4 - core index']
  #allocation1 [shape = 'u32[72,128]{1,0:T(1,128)}', space=vmem, size = 0x9000, scoped, tag = 'internal scratch']
  %s0 = inlined_call_operand.hbm [shape: bf16[128,896], index: 0, kind: input, shape index: {}]
  %s1 = inlined_call_operand.hbm [shape: bf16[896,512], index: 1, kind: input, shape index: {}]
  %s2 = inlined_call_operand.hbm [shape: f32[1,512], index: 2, kind: input, shape index: {}]
  %s3 = inlined_call_operand.hbm [shape: f32[1,512], index: 3, kind: input, shape index: {}]
  %s4 = inlined_call_operand.hbm [shape: f32[1,512], index: 4, kind: input, shape index: {}]
  %s5 = inlined_call_operand.vmem [shape: f32[1,512], index: 5, kind: input, shape index: {}]
  %s6 = inlined_call_operand.hbm [shape: bf16[512,256], index: 6, kind: input, shape index: {}]
  %s7 = inlined_call_operand.vmem [shape: f32[1,256], index: 7, kind: input, shape index: {}]
  %s8 = inlined_call_operand.hbm [shape: f32[1,256], index: 8, kind: input, shape index: {}]
  %s9 = inlined_call_operand.vmem [shape: f32[1,256], index: 9, kind: input, shape index: {}]
  %s10 = inlined_call_operand.hbm [shape: f32[1,256], index: 10, kind: input, shape index: {}]
  %s11 = inlined_call_operand.hbm [shape: bf16[256,128], index: 11, kind: input, shape index: {}]
  %s12 = inlined_call_operand.vmem [shape: f32[1,128], index: 12, kind: input, shape index: {}]
  %s13 = inlined_call_operand.hbm [shape: f32[128,128], index: 13, kind: output, shape index: {}]
  %s14 = sld [smem:[#allocation0]]
  $region98: #{tpu_custom_call.1} parent=0
    _
  %s16 = ssub.s32 1, %s14
  %s17 = scalar_select 0, %s16, %s14
  $region1: #{tpu_custom_call.1} parent=0
    #allocation2 [shape = 'u8[229376]{0}', space=vmem, size = 0x38000, scoped, tag = 'input window, operand 0, single buffered']
    #allocation3 [shape = 's32[1]{0}', space=sflag, size = 0x4, scoped, tag = 'scoped memory for tpu_custom_call.1']
    #allocation4 [shape = 's32[1]{0}', space=sflag, size = 0x4, scoped, tag = 'scoped memory for tpu_custom_call.1']
    #allocation5 [shape = 'u8[917504]{0}', space=vmem, size = 0xe0000, scoped, tag = 'input window, operand 1, single buffered']
    #allocation6 [shape = 's32[1]{0}', space=sflag, size = 0x4, scoped, tag = 'scoped memory for tpu_custom_call.1']
    #allocation7 [shape = 'u8[2048]{0}', space=vmem, size = 0x800, scoped, tag = 'input window, operand 2, single buffered']
    #allocation8 [shape = 'u8[2048]{0}', space=vmem, size = 0x800, scoped, tag = 'input window, operand 3, single buffered']
    #allocation9 [shape = 's32[1]{0}', space=sflag, size = 0x4, scoped, tag = 'scoped memory for tpu_custom_call.1']
    #allocation10 [shape = 'u8[2048]{0}', space=vmem, size = 0x800, scoped, tag = 'input window, operand 4, single buffered']
    #allocation11 [shape = 'u8[262144]{0}', space=vmem, size = 0x40000, scoped, tag = 'input window, operand 6, single buffered']
    #allocation12 [shape = 's32[1]{0}', space=sflag, size = 0x4, scoped, tag = 'scoped memory for tpu_custom_call.1']
    #allocation13 [shape = 'u8[1024]{0}', space=vmem, size = 0x400, scoped, tag = 'input window, operand 8, single buffered']
    #allocation14 [shape = 'u8[1024]{0}', space=vmem, size = 0x400, scoped, tag = 'input window, operand 10, single buffered']
    #allocation15 [shape = 's32[1]{0}', space=sflag, size = 0x4, scoped, tag = 'scoped memory for tpu_custom_call.1']
    #allocation16 [shape = 'u8[65536]{0}', space=vmem, size = 0x10000, scoped, tag = 'input window, operand 11, single buffered']
    #allocation17 [shape = 'u8[65536]{0}', space=vmem, size = 0x10000, scoped, tag = 'output window, operand 0, single buffered']
    %18 = vsyncpa [#allocation3], 0
    %19 = vsyncpa [#allocation6], 0
    %20 = vsyncpa [#allocation9], 0
    %21 = vsyncpa [#allocation12], 0
    %22 = vsyncpa [#allocation15], 0
    %23 = vsyncpa [#allocation4], 0
    // Predicated region
    $region2: #{tpu_custom_call.1} parent=1 // pred_check
      _
    $region3: #{tpu_custom_call.1} parent=1 // pred_check_branch
      %25 = sbr.rel (0) target = $region5
    $region4: #{tpu_custom_call.1} parent=1 // pred_region
      %27 = vsyncadd [#allocation3], 0
      %s28 = sshll.u32 %s0, 4
      %s29 = int_to_ptr.hbm [resolvable:$true] %s28
      %s30 = sshll.u32 [#allocation2], 4
      %s31 = int_to_ptr.vmem [resolvable:$true] %s30
      %36 = dma.hbm_to_vmem [thread:$0]  %s29, 7168, %s31, [#allocation3], 448, 448, 28
    $region5: #{tpu_custom_call.1} parent=1 // pred_fallthru
      _
    // Predicated region
    $region6: #{tpu_custom_call.1} parent=1 // pred_check
      _
    $region7: #{tpu_custom_call.1} parent=1 // pred_check_branch
      %38 = sbr.rel (0) target = $region9
    $region8: #{tpu_custom_call.1} parent=1 // pred_region
      %40 = vsyncadd [#allocation6], 0
      %s41 = sshll.u32 %s1, 4
      %s42 = int_to_ptr.hbm [resolvable:$true] %s41
      %s43 = sshll.u32 [#allocation5], 4
      %s44 = int_to_ptr.vmem [resolvable:$true] %s43
      %49 = dma.hbm_to_vmem [thread:$0]  %s42, 28672, %s44, [#allocation6], 256, 256, 16
    $region9: #{tpu_custom_call.1} parent=1 // pred_fallthru
      _
    // Predicated region
    $region10: #{tpu_custom_call.1} parent=1 // pred_check
      _
    $region11: #{tpu_custom_call.1} parent=1 // pred_check_branch
      %51 = sbr.rel (0) target = $region13
    $region12: #{tpu_custom_call.1} parent=1 // pred_region
      %53 = vsyncadd [#allocation6], 0
      %s55 = sshll.u32 %s2, 4
      %s56 = int_to_ptr.hbm [resolvable:$true] %s55
      %s57 = sshll.u32 [#allocation7], 4
      %s58 = int_to_ptr.vmem [resolvable:$true] %s57
      %60 = dma.hbm_to_vmem [thread:$0]  %s56, 64, %s58, [#allocation6]
    $region13: #{tpu_custom_call.1} parent=1 // pred_fallthru
      _
    // Predicated region
    $region14: #{tpu_custom_call.1} parent=1 // pred_check
      _
    $region15: #{tpu_custom_call.1} parent=1 // pred_check_branch
      %62 = sbr.rel (0) target = $region17
    $region16: #{tpu_custom_call.1} parent=1 // pred_region
      %64 = vsyncadd [#allocation9], 0
      %s66 = sshll.u32 %s3, 4
      %s67 = int_to_ptr.hbm [resolvable:$true] %s66
      %s68 = sshll.u32 [#allocation8], 4
      %s69 = int_to_ptr.vmem [resolvable:$true] %s68
      %71 = dma.hbm_to_vmem [thread:$0]  %s67, 64, %s69, [#allocation9]
    $region17: #{tpu_custom_call.1} parent=1 // pred_fallthru
      _
    // Predicated region
    $region18: #{tpu_custom_call.1} parent=1 // pred_check
      _
    $region19: #{tpu_custom_call.1} parent=1 // pred_check_branch
      %73 = sbr.rel (0) target = $region21
    $region20: #{tpu_custom_call.1} parent=1 // pred_region
      %75 = vsyncadd [#allocation9], 0
      %s77 = sshll.u32 %s4, 4
      %s78 = int_to_ptr.hbm [resolvable:$true] %s77
      %s79 = sshll.u32 [#allocation10], 4
      %s80 = int_to_ptr.vmem [resolvable:$true] %s79
      %82 = dma.hbm_to_vmem [thread:$0]  %s78, 64, %s80, [#allocation9]
    $region21: #{tpu_custom_call.1} parent=1 // pred_fallthru
      _
    // Predicated region
    $region22: #{tpu_custom_call.1} parent=1 // pred_check
      _
    $region23: #{tpu_custom_call.1} parent=1 // pred_check_branch
      %84 = sbr.rel (0) target = $region25
    $region24: #{tpu_custom_call.1} parent=1 // pred_region
      _
    $region25: #{tpu_custom_call.1} parent=1 // pred_fallthru
      _
    // Predicated region
    $region26: #{tpu_custom_call.1} parent=1 // pred_check
      _
    $region27: #{tpu_custom_call.1} parent=1 // pred_check_branch
      %86 = sbr.rel (0) target = $region29
    $region28: #{tpu_custom_call.1} parent=1 // pred_region
      %88 = vsyncadd [#allocation12], 0
      %s89 = sshll.u32 %s6, 4
      %s90 = int_to_ptr.hbm [resolvable:$true] %s89
      %s91 = sshll.u32 [#allocation11], 4
      %s92 = int_to_ptr.vmem [resolvable:$true] %s91
      %97 = dma.hbm_to_vmem [thread:$0]  %s90, 8192, %s92, [#allocation12], 128, 128, 8
    $region29: #{tpu_custom_call.1} parent=1 // pred_fallthru
      _
    // Predicated region
    $region30: #{tpu_custom_call.1} parent=1 // pred_check
      _
    $region31: #{tpu_custom_call.1} parent=1 // pred_check_branch
      %99 = sbr.rel (0) target = $region33
    $region32: #{tpu_custom_call.1} parent=1 // pred_region
      _
    $region33: #{tpu_custom_call.1} parent=1 // pred_fallthru
      _
    // Predicated region
    $region34: #{tpu_custom_call.1} parent=1 // pred_check
      _
    $region35: #{tpu_custom_call.1} parent=1 // pred_check_branch
      %101 = sbr.rel (0) target = $region37
    $region36: #{tpu_custom_call.1} parent=1 // pred_region
      %103 = vsyncadd [#allocation12], 0
      %s105 = sshll.u32 %s8, 4
      %s106 = int_to_ptr.hbm [resolvable:$true] %s105
      %s107 = sshll.u32 [#allocation13], 4
      %s108 = int_to_ptr.vmem [resolvable:$true] %s107
      %110 = dma.hbm_to_vmem [thread:$0]  %s106, 32, %s108, [#allocation12]
    $region37: #{tpu_custom_call.1} parent=1 // pred_fallthru
      _
    // Predicated region
    $region38: #{tpu_custom_call.1} parent=1 // pred_check
      _
    $region39: #{tpu_custom_call.1} parent=1 // pred_check_branch
      %112 = sbr.rel (0) target = $region41
    $region40: #{tpu_custom_call.1} parent=1 // pred_region
      _
    $region41: #{tpu_custom_call.1} parent=1 // pred_fallthru
      _
    // Predicated region
    $region42: #{tpu_custom_call.1} parent=1 // pred_check
      _
    $region43: #{tpu_custom_call.1} parent=1 // pred_check_branch
      %114 = sbr.rel (0) target = $region45
    $region44: #{tpu_custom_call.1} parent=1 // pred_region
      %116 = vsyncadd [#allocation15], 0
      %s118 = sshll.u32 %s10, 4
      %s119 = int_to_ptr.hbm [resolvable:$true] %s118
      %s120 = sshll.u32 [#allocation14], 4
      %s121 = int_to_ptr.vmem [resolvable:$true] %s120
      %123 = dma.hbm_to_vmem [thread:$0]  %s119, 32, %s121, [#allocation15]
    $region45: #{tpu_custom_call.1} parent=1 // pred_fallthru
      _
    // Predicated region
    $region46: #{tpu_custom_call.1} parent=1 // pred_check
      _
    $region47: #{tpu_custom_call.1} parent=1 // pred_check_branch
      %125 = sbr.rel (0) target = $region49
    $region48: #{tpu_custom_call.1} parent=1 // pred_region
      %127 = vsyncadd [#allocation15], 0
      %s128 = sshll.u32 %s11, 4
      %s129 = int_to_ptr.hbm [resolvable:$true] %s128
      %s130 = sshll.u32 [#allocation16], 4
      %s131 = int_to_ptr.vmem [resolvable:$true] %s130
      %136 = dma.hbm_to_vmem [thread:$0]  %s129, 2048, %s131, [#allocation15], 64, 64, 4
    $region49: #{tpu_custom_call.1} parent=1 // pred_fallthru
      _
    // Predicated region
    $region50: #{tpu_custom_call.1} parent=1 // pred_check
      _
    $region51: #{tpu_custom_call.1} parent=1 // pred_check_branch
      %138 = sbr.rel (0) target = $region53
    $region52: #{tpu_custom_call.1} parent=1 // pred_region
      _
    $region53: #{tpu_custom_call.1} parent=1 // pred_fallthru
      _
    // Predicated region
    $region54: #{tpu_custom_call.1} parent=1 // pred_check
      _
    $region55: #{tpu_custom_call.1} parent=1 // pred_check_branch
      %140 = sbr.rel (0) target = $region57
    $region56: #{tpu_custom_call.1} parent=1 // pred_region
      %142 = dma.done [#allocation3], 7168
    $region57: #{tpu_custom_call.1} parent=1 // pred_fallthru
      _
    // Predicated region
    $region58: #{tpu_custom_call.1} parent=1 // pred_check
      _
    $region59: #{tpu_custom_call.1} parent=1 // pred_check_branch
      %144 = sbr.rel (0) target = $region61
    $region60: #{tpu_custom_call.1} parent=1 // pred_region
      %146 = dma.done [#allocation6], 28672
    $region61: #{tpu_custom_call.1} parent=1 // pred_fallthru
      _
    // Predicated region
    $region62: #{tpu_custom_call.1} parent=1 // pred_check
      _
    $region63: #{tpu_custom_call.1} parent=1 // pred_check_branch
      %148 = sbr.rel (0) target = $region65
    $region64: #{tpu_custom_call.1} parent=1 // pred_region
      %150 = dma.done [#allocation6], 64
    $region65: #{tpu_custom_call.1} parent=1 // pred_fallthru
      _
    // Predicated region
    $region66: #{tpu_custom_call.1} parent=1 // pred_check
      _
    $region67: #{tpu_custom_call.1} parent=1 // pred_check_branch
      %152 = sbr.rel (0) target = $region69
    $region68: #{tpu_custom_call.1} parent=1 // pred_region
      %154 = dma.done [#allocation9], 64
    $region69: #{tpu_custom_call.1} parent=1 // pred_fallthru
      _
    // Predicated region
    $region70: #{tpu_custom_call.1} parent=1 // pred_check
      _
    $region71: #{tpu_custom_call.1} parent=1 // pred_check_branch
      %156 = sbr.rel (0) target = $region73
    $region72: #{tpu_custom_call.1} parent=1 // pred_region
      %158 = dma.done [#allocation9], 64
    $region73: #{tpu_custom_call.1} parent=1 // pred_fallthru
      _
    // Predicated region
    $region74: #{tpu_custom_call.1} parent=1 // pred_check
      _
    $region75: #{tpu_custom_call.1} parent=1 // pred_check_branch
      %160 = sbr.rel (0) target = $region77
    $region76: #{tpu_custom_call.1} parent=1 // pred_region
      %162 = dma.done [#allocation12], 8192
    $region77: #{tpu_custom_call.1} parent=1 // pred_fallthru
      _
    // Predicated region
    $region78: #{tpu_custom_call.1} parent=1 // pred_check
      _
    $region79: #{tpu_custom_call.1} parent=1 // pred_check_branch
      %164 = sbr.rel (0) target = $region81
    $region80: #{tpu_custom_call.1} parent=1 // pred_region
      %166 = dma.done [#allocation12], 32
    $region81: #{tpu_custom_call.1} parent=1 // pred_fallthru
      _
    // Predicated region
    $region82: #{tpu_custom_call.1} parent=1 // pred_check
      _
    $region83: #{tpu_custom_call.1} parent=1 // pred_check_branch
      %168 = sbr.rel (0) target = $region85
    $region84: #{tpu_custom_call.1} parent=1 // pred_region
      %170 = dma.done [#allocation15], 32
    $region85: #{tpu_custom_call.1} parent=1 // pred_fallthru
      _
    // Predicated region
    $region86: #{tpu_custom_call.1} parent=1 // pred_check
      _
    $region87: #{tpu_custom_call.1} parent=1 // pred_check_branch
      %172 = sbr.rel (0) target = $region89
    $region88: #{tpu_custom_call.1} parent=1 // pred_region
      %174 = dma.done [#allocation15], 2048
    $region89: #{tpu_custom_call.1} parent=1 // pred_fallthru
      _
    %v175 = vld [vmem:[#allocation2] sm:$0xff]
    %v176 = vld [vmem:[#allocation2 + $0x8] sm:$0xff]
    %v177 = vld [vmem:[#allocation2 + $0x10] sm:$0xff]
    %v178 = vld [vmem:[#allocation2 + $0x18] sm:$0xf]
    %v179 = vld [vmem:[#allocation2 + $0x1c] sm:$0xff]
    %v180 = vld [vmem:[#allocation2 + $0x24] sm:$0xff]
    %v181 = vld [vmem:[#allocation2 + $0x2c] sm:$0xff]
    %v182 = vld [vmem:[#allocation2 + $0x34] sm:$0xf]
    %v183 = vld [vmem:[#allocation2 + $0x38] sm:$0xff]
    %v184 = vld [vmem:[#allocation2 + $0x40] sm:$0xff]
    %v185 = vld [vmem:[#allocation2 + $0x48] sm:$0xff]
    %v186 = vld [vmem:[#allocation2 + $0x50] sm:$0xf]
    %v187 = vld [vmem:[#allocation2 + $0x54] sm:$0xff]
    %v188 = vld [vmem:[#allocation2 + $0x5c] sm:$0xff]
    %v189 = vld [vmem:[#allocation2 + $0x64] sm:$0xff]
    %v190 = vld [vmem:[#allocation2 + $0x6c] sm:$0xf]
    %v191 = vld [vmem:[#allocation2 + $0x70] sm:$0xff]
    %v192 = vld [vmem:[#allocation2 + $0x78] sm:$0xff]
    %v193 = vld [vmem:[#allocation2 + $0x80] sm:$0xff]
    %v194 = vld [vmem:[#allocation2 + $0x88] sm:$0xf]
    %v195 = vld [vmem:[#allocation2 + $0x8c] sm:$0xff]
    %v196 = vld [vmem:[#allocation2 + $0x94] sm:$0xff]
    %v197 = vld [vmem:[#allocation2 + $0x9c] sm:$0xff]
    %v198 = vld [vmem:[#allocation2 + $0xa4] sm:$0xf]
    %v199 = vld [vmem:[#allocation2 + $0xa8] sm:$0xff]
    %v200 = vld [vmem:[#allocation2 + $0xb0] sm:$0xff]
    %v201 = vld [vmem:[#allocation2 + $0xb8] sm:$0xff]
    %v202 = vld [vmem:[#allocation2 + $0xc0] sm:$0xf]
    %v203 = vld [vmem:[#allocation2 + $0xc4] sm:$0xff]
    %v204 = vld [vmem:[#allocation2 + $0xcc] sm:$0xff]
    %v205 = vld [vmem:[#allocation2 + $0xd4] sm:$0xff]
    %v206 = vld [vmem:[#allocation2 + $0xdc] sm:$0xf]
    %v207 = vld [vmem:[#allocation2 + $0xe0] sm:$0xff]
    %v208 = vld [vmem:[#allocation2 + $0xe8] sm:$0xff]
    %v209 = vld [vmem:[#allocation2 + $0xf0] sm:$0xff]
    %v210 = vld [vmem:[#allocation2 + $0xf8] sm:$0xf]
    %v211 = vld [vmem:[#allocation2 + $0xfc] sm:$0xff]
    %v212 = vld [vmem:[#allocation2 + $0x104] sm:$0xff]
    %v213 = vld [vmem:[#allocation2 + $0x10c] sm:$0xff]
    %v214 = vld [vmem:[#allocation2 + $0x114] sm:$0xf]
    %v215 = vld [vmem:[#allocation2 + $0x118] sm:$0xff]
    %v216 = vld [vmem:[#allocation2 + $0x120] sm:$0xff]
    %v217 = vld [vmem:[#allocation2 + $0x128] sm:$0xff]
    %v218 = vld [vmem:[#allocation2 + $0x130] sm:$0xf]
    %v219 = vld [vmem:[#allocation2 + $0x134] sm:$0xff]
    %v220 = vld [vmem:[#allocation2 + $0x13c] sm:$0xff]
    %v221 = vld [vmem:[#allocation2 + $0x144] sm:$0xff]
    %v222 = vld [vmem:[#allocation2 + $0x14c] sm:$0xf]
    %v223 = vld [vmem:[#allocation2 + $0x150] sm:$0xff]
    %v224 = vld [vmem:[#allocation2 + $0x158] sm:$0xff]
    %v225 = vld [vmem:[#allocation2 + $0x160] sm:$0xff]
    %v226 = vld [vmem:[#allocation2 + $0x168] sm:$0xf]
    %v227 = vld [vmem:[#allocation2 + $0x16c] sm:$0xff]
    %v228 = vld [vmem:[#allocation2 + $0x174] sm:$0xff]
    %v229 = vld [vmem:[#allocation2 + $0x17c] sm:$0xff]
    %v230 = vld [vmem:[#allocation2 + $0x184] sm:$0xf]
    %v231 = vld [vmem:[#allocation2 + $0x188] sm:$0xff]
    %v232 = vld [vmem:[#allocation2 + $0x190] sm:$0xff]
    %v233 = vld [vmem:[#allocation2 + $0x198] sm:$0xff]
    %v234 = vld [vmem:[#allocation2 + $0x1a0] sm:$0xf]
    %v235 = vld [vmem:[#allocation2 + $0x1a4] sm:$0xff]
    %v236 = vld [vmem:[#allocation2 + $0x1ac] sm:$0xff]
    %v237 = vld [vmem:[#allocation2 + $0x1b4] sm:$0xff]
    %v238 = vld [vmem:[#allocation2 + $0x1bc] sm:$0xf]
    %v239 = vld [vmem:[#allocation5] sm:$0xff]
    %v240 = vld [vmem:[#allocation5 + $0x8] sm:$0xff]
    %v241 = vld [vmem:[#allocation5 + $0x10] sm:$0xff]
    %v242 = vld [vmem:[#allocation5 + $0x18] sm:$0xff]
    %v243 = vld [vmem:[#allocation5 + $0x20] sm:$0xff]
    %v244 = vld [vmem:[#allocation5 + $0x28] sm:$0xff]
    %v245 = vld [vmem:[#allocation5 + $0x30] sm:$0xff]
    %v246 = vld [vmem:[#allocation5 + $0x38] sm:$0xff]
    %v247 = vld [vmem:[#allocation5 + $0x40] sm:$0xff]
    %v248 = vld [vmem:[#allocation5 + $0x48] sm:$0xff]
    %v249 = vld [vmem:[#allocation5 + $0x50] sm:$0xff]
    %v250 = vld [vmem:[#allocation5 + $0x58] sm:$0xff]
    %v251 = vld [vmem:[#allocation5 + $0x60] sm:$0xff]
    %v252 = vld [vmem:[#allocation5 + $0x68] sm:$0xff]
    %v253 = vld [vmem:[#allocation5 + $0x70] sm:$0xff]
    %v254 = vld [vmem:[#allocation5 + $0x78] sm:$0xff]
    %v255 = vld [vmem:[#allocation5 + $0x80] sm:$0xff]
    %v256 = vld [vmem:[#allocation5 + $0x88] sm:$0xff]
    %v257 = vld [vmem:[#allocation5 + $0x90] sm:$0xff]
    %v258 = vld [vmem:[#allocation5 + $0x98] sm:$0xff]
    %v259 = vld [vmem:[#allocation5 + $0xa0] sm:$0xff]
    %v260 = vld [vmem:[#allocation5 + $0xa8] sm:$0xff]
    %v261 = vld [vmem:[#allocation5 + $0xb0] sm:$0xff]
    %v262 = vld [vmem:[#allocation5 + $0xb8] sm:$0xff]
    %v263 = vld [vmem:[#allocation5 + $0xc0] sm:$0xff]
    %v264 = vld [vmem:[#allocation5 + $0xc8] sm:$0xff]
    %v265 = vld [vmem:[#allocation5 + $0xd0] sm:$0xff]
    %v266 = vld [vmem:[#allocation5 + $0xd8] sm:$0xff]
    %v267 = vld [vmem:[#allocation5 + $0xe0] sm:$0xff]
    %v268 = vld [vmem:[#allocation5 + $0xe8] sm:$0xff]
    %v269 = vld [vmem:[#allocation5 + $0xf0] sm:$0xff]
    %v270 = vld [vmem:[#allocation5 + $0xf8] sm:$0xff]
    %v271 = vld [vmem:[#allocation5 + $0x100] sm:$0xff]
    %v272 = vld [vmem:[#allocation5 + $0x108] sm:$0xff]
    %v273 = vld [vmem:[#allocation5 + $0x110] sm:$0xff]
    %v274 = vld [vmem:[#allocation5 + $0x118] sm:$0xff]
    %v275 = vld [vmem:[#allocation5 + $0x120] sm:$0xff]
    %v276 = vld [vmem:[#allocation5 + $0x128] sm:$0xff]
    %v277 = vld [vmem:[#allocation5 + $0x130] sm:$0xff]
    %v278 = vld [vmem:[#allocation5 + $0x138] sm:$0xff]
    %v279 = vld [vmem:[#allocation5 + $0x140] sm:$0xff]
    %v280 = vld [vmem:[#allocation5 + $0x148] sm:$0xff]
    %v281 = vld [vmem:[#allocation5 + $0x150] sm:$0xff]
    %v282 = vld [vmem:[#allocation5 + $0x158] sm:$0xff]
    %v283 = vld [vmem:[#allocation5 + $0x160] sm:$0xff]
    %v284 = vld [vmem:[#allocation5 + $0x168] sm:$0xff]
    %v285 = vld [vmem:[#allocation5 + $0x170] sm:$0xff]
    %v286 = vld [vmem:[#allocation5 + $0x178] sm:$0xff]
    %v287 = vld [vmem:[#allocation5 + $0x180] sm:$0xff]
    %v288 = vld [vmem:[#allocation5 + $0x188] sm:$0xff]
    %v289 = vld [vmem:[#allocation5 + $0x190] sm:$0xff]
    %v290 = vld [vmem:[#allocation5 + $0x198] sm:$0xff]
    %v291 = vld [vmem:[#allocation5 + $0x1a0] sm:$0xff]
    %v292 = vld [vmem:[#allocation5 + $0x1a8] sm:$0xff]
    %v293 = vld [vmem:[#allocation5 + $0x1b0] sm:$0xff]
    %v294 = vld [vmem:[#allocation5 + $0x1b8] sm:$0xff]
    %v295 = vld [vmem:[#allocation5 + $0x1c0] sm:$0xff]
    %v296 = vld [vmem:[#allocation5 + $0x1c8] sm:$0xff]
    %v297 = vld [vmem:[#allocation5 + $0x1d0] sm:$0xff]
    %v298 = vld [vmem:[#allocation5 + $0x1d8] sm:$0xff]
    %v299 = vld [vmem:[#allocation5 + $0x1e0] sm:$0xff]
    %v300 = vld [vmem:[#allocation5 + $0x1e8] sm:$0xff]
    %v301 = vld [vmem:[#allocation5 + $0x1f0] sm:$0xff]
    %v302 = vld [vmem:[#allocation5 + $0x1f8] sm:$0xff]
    %v303 = vld [vmem:[#allocation5 + $0x200] sm:$0xff]
    %v304 = vld [vmem:[#allocation5 + $0x208] sm:$0xff]
    %v305 = vld [vmem:[#allocation5 + $0x210] sm:$0xff]
    %v306 = vld [vmem:[#allocation5 + $0x218] sm:$0xff]
    %v307 = vld [vmem:[#allocation5 + $0x220] sm:$0xff]
    %v308 = vld [vmem:[#allocation5 + $0x228] sm:$0xff]
    %v309 = vld [vmem:[#allocation5 + $0x230] sm:$0xff]
    %v310 = vld [vmem:[#allocation5 + $0x238] sm:$0xff]
    %v311 = vld [vmem:[#allocation5 + $0x240] sm:$0xff]
    %v312 = vld [vmem:[#allocation5 + $0x248] sm:$0xff]
    %v313 = vld [vmem:[#allocation5 + $0x250] sm:$0xff]
    %v314 = vld [vmem:[#allocation5 + $0x258] sm:$0xff]
    %v315 = vld [vmem:[#allocation5 + $0x260] sm:$0xff]
    %v316 = vld [vmem:[#allocation5 + $0x268] sm:$0xff]
    %v317 = vld [vmem:[#allocation5 + $0x270] sm:$0xff]
    %v318 = vld [vmem:[#allocation5 + $0x278] sm:$0xff]
    %v319 = vld [vmem:[#allocation5 + $0x280] sm:$0xff]
    %v320 = vld [vmem:[#allocation5 + $0x288] sm:$0xff]
    %v321 = vld [vmem:[#allocation5 + $0x290] sm:$0xff]
    %v322 = vld [vmem:[#allocation5 + $0x298] sm:$0xff]
    %v323 = vld [vmem:[#allocation5 + $0x2a0] sm:$0xff]
    %v324 = vld [vmem:[#allocation5 + $0x2a8] sm:$0xff]
    %v325 = vld [vmem:[#allocation5 + $0x2b0] sm:$0xff]
    %v326 = vld [vmem:[#allocation5 + $0x2b8] sm:$0xff]
    %v327 = vld [vmem:[#allocation5 + $0x2c0] sm:$0xff]
    %v328 = vld [vmem:[#allocation5 + $0x2c8] sm:$0xff]
    %v329 = vld [vmem:[#allocation5 + $0x2d0] sm:$0xff]
    %v330 = vld [vmem:[#allocation5 + $0x2d8] sm:$0xff]
    %v331 = vld [vmem:[#allocation5 + $0x2e0] sm:$0xff]
    %v332 = vld [vmem:[#allocation5 + $0x2e8] sm:$0xff]
    %v333 = vld [vmem:[#allocation5 + $0x2f0] sm:$0xff]
    %v334 = vld [vmem:[#allocation5 + $0x2f8] sm:$0xff]
    %v335 = vld [vmem:[#allocation5 + $0x300] sm:$0xff]
    %v336 = vld [vmem:[#allocation5 + $0x308] sm:$0xff]
    %v337 = vld [vmem:[#allocation5 + $0x310] sm:$0xff]
    %v338 = vld [vmem:[#allocation5 + $0x318] sm:$0xff]
    %v339 = vld [vmem:[#allocation5 + $0x320] sm:$0xff]
    %v340 = vld [vmem:[#allocation5 + $0x328] sm:$0xff]
    %v341 = vld [vmem:[#allocation5 + $0x330] sm:$0xff]
    %v342 = vld [vmem:[#allocation5 + $0x338] sm:$0xff]
    %v343 = vld [vmem:[#allocation5 + $0x340] sm:$0xff]
    %v344 = vld [vmem:[#allocation5 + $0x348] sm:$0xff]
    %v345 = vld [vmem:[#allocation5 + $0x350] sm:$0xff]
    %v346 = vld [vmem:[#allocation5 + $0x358] sm:$0xff]
    %v347 = vld [vmem:[#allocation5 + $0x360] sm:$0xff]
    %v348 = vld [vmem:[#allocation5 + $0x368] sm:$0xff]
    %v349 = vld [vmem:[#allocation5 + $0x370] sm:$0xff]
    %v350 = vld [vmem:[#allocation5 + $0x378] sm:$0xff]
    %v351 = vld [vmem:[#allocation5 + $0x380] sm:$0xff]
    %v352 = vld [vmem:[#allocation5 + $0x388] sm:$0xff]
    %v353 = vld [vmem:[#allocation5 + $0x390] sm:$0xff]
    %v354 = vld [vmem:[#allocation5 + $0x398] sm:$0xff]
    %v355 = vld [vmem:[#allocation5 + $0x3a0] sm:$0xff]
    %v356 = vld [vmem:[#allocation5 + $0x3a8] sm:$0xff]
    %v357 = vld [vmem:[#allocation5 + $0x3b0] sm:$0xff]
    %v358 = vld [vmem:[#allocation5 + $0x3b8] sm:$0xff]
    %v359 = vld [vmem:[#allocation5 + $0x3c0] sm:$0xff]
    %v360 = vld [vmem:[#allocation5 + $0x3c8] sm:$0xff]
    %v361 = vld [vmem:[#allocation5 + $0x3d0] sm:$0xff]
    %v362 = vld [vmem:[#allocation5 + $0x3d8] sm:$0xff]
    %v363 = vld [vmem:[#allocation5 + $0x3e0] sm:$0xff]
    %v364 = vld [vmem:[#allocation5 + $0x3e8] sm:$0xff]
    %v365 = vld [vmem:[#allocation5 + $0x3f0] sm:$0xff]
    %v366 = vld [vmem:[#allocation5 + $0x3f8] sm:$0xff]
    %v367 = vld [vmem:[#allocation5 + $0x400] sm:$0xff]
    %v368 = vld [vmem:[#allocation5 + $0x408] sm:$0xff]
    %v369 = vld [vmem:[#allocation5 + $0x410] sm:$0xff]
    %v370 = vld [vmem:[#allocation5 + $0x418] sm:$0xff]
    %v371 = vld [vmem:[#allocation5 + $0x420] sm:$0xff]
    %v372 = vld [vmem:[#allocation5 + $0x428] sm:$0xff]
    %v373 = vld [vmem:[#allocation5 + $0x430] sm:$0xff]
    %v374 = vld [vmem:[#allocation5 + $0x438] sm:$0xff]
    %v375 = vld [vmem:[#allocation5 + $0x440] sm:$0xff]
    %v376 = vld [vmem:[#allocation5 + $0x448] sm:$0xff]
    %v377 = vld [vmem:[#allocation5 + $0x450] sm:$0xff]
    %v378 = vld [vmem:[#allocation5 + $0x458] sm:$0xff]
    %v379 = vld [vmem:[#allocation5 + $0x460] sm:$0xff]
    %v380 = vld [vmem:[#allocation5 + $0x468] sm:$0xff]
    %v381 = vld [vmem:[#allocation5 + $0x470] sm:$0xff]
    %v382 = vld [vmem:[#allocation5 + $0x478] sm:$0xff]
    %v383 = vld [vmem:[#allocation5 + $0x480] sm:$0xff]
    %v384 = vld [vmem:[#allocation5 + $0x488] sm:$0xff]
    %v385 = vld [vmem:[#allocation5 + $0x490] sm:$0xff]
    %v386 = vld [vmem:[#allocation5 + $0x498] sm:$0xff]
    %v387 = vld [vmem:[#allocation5 + $0x4a0] sm:$0xff]
    %v388 = vld [vmem:[#allocation5 + $0x4a8] sm:$0xff]
    %v389 = vld [vmem:[#allocation5 + $0x4b0] sm:$0xff]
    %v390 = vld [vmem:[#allocation5 + $0x4b8] sm:$0xff]
    %v391 = vld [vmem:[#allocation5 + $0x4c0] sm:$0xff]
    %v392 = vld [vmem:[#allocation5 + $0x4c8] sm:$0xff]
    %v393 = vld [vmem:[#allocation5 + $0x4d0] sm:$0xff]
    %v394 = vld [vmem:[#allocation5 + $0x4d8] sm:$0xff]
    %v395 = vld [vmem:[#allocation5 + $0x4e0] sm:$0xff]
    %v396 = vld [vmem:[#allocation5 + $0x4e8] sm:$0xff]
    %v397 = vld [vmem:[#allocation5 + $0x4f0] sm:$0xff]
    %v398 = vld [vmem:[#allocation5 + $0x4f8] sm:$0xff]
    %v399 = vld [vmem:[#allocation5 + $0x500] sm:$0xff]
    %v400 = vld [vmem:[#allocation5 + $0x508] sm:$0xff]
    %v401 = vld [vmem:[#allocation5 + $0x510] sm:$0xff]
    %v402 = vld [vmem:[#allocation5 + $0x518] sm:$0xff]
    %v403 = vld [vmem:[#allocation5 + $0x520] sm:$0xff]
    %v404 = vld [vmem:[#allocation5 + $0x528] sm:$0xff]
    %v405 = vld [vmem:[#allocation5 + $0x530] sm:$0xff]
    %v406 = vld [vmem:[#allocation5 + $0x538] sm:$0xff]
    %v407 = vld [vmem:[#allocation5 + $0x540] sm:$0xff]
    %v408 = vld [vmem:[#allocation5 + $0x548] sm:$0xff]
    %v409 = vld [vmem:[#allocation5 + $0x550] sm:$0xff]
    %v410 = vld [vmem:[#allocation5 + $0x558] sm:$0xff]
    %v411 = vld [vmem:[#allocation5 + $0x560] sm:$0xff]
    %v412 = vld [vmem:[#allocation5 + $0x568] sm:$0xff]
    %v413 = vld [vmem:[#allocation5 + $0x570] sm:$0xff]
    %v414 = vld [vmem:[#allocation5 + $0x578] sm:$0xff]
    %v415 = vld [vmem:[#allocation5 + $0x580] sm:$0xff]
    %v416 = vld [vmem:[#allocation5 + $0x588] sm:$0xff]
    %v417 = vld [vmem:[#allocation5 + $0x590] sm:$0xff]
    %v418 = vld [vmem:[#allocation5 + $0x598] sm:$0xff]
    %v419 = vld [vmem:[#allocation5 + $0x5a0] sm:$0xff]
    %v420 = vld [vmem:[#allocation5 + $0x5a8] sm:$0xff]
    %v421 = vld [vmem:[#allocation5 + $0x5b0] sm:$0xff]
    %v422 = vld [vmem:[#allocation5 + $0x5b8] sm:$0xff]
    %v423 = vld [vmem:[#allocation5 + $0x5c0] sm:$0xff]
    %v424 = vld [vmem:[#allocation5 + $0x5c8] sm:$0xff]
    %v425 = vld [vmem:[#allocation5 + $0x5d0] sm:$0xff]
    %v426 = vld [vmem:[#allocation5 + $0x5d8] sm:$0xff]
    %v427 = vld [vmem:[#allocation5 + $0x5e0] sm:$0xff]
    %v428 = vld [vmem:[#allocation5 + $0x5e8] sm:$0xff]
    %v429 = vld [vmem:[#allocation5 + $0x5f0] sm:$0xff]
    %v430 = vld [vmem:[#allocation5 + $0x5f8] sm:$0xff]
    %v431 = vld [vmem:[#allocation5 + $0x600] sm:$0xff]
    %v432 = vld [vmem:[#allocation5 + $0x608] sm:$0xff]
    %v433 = vld [vmem:[#allocation5 + $0x610] sm:$0xff]
    %v434 = vld [vmem:[#allocation5 + $0x618] sm:$0xff]
    %v435 = vld [vmem:[#allocation5 + $0x620] sm:$0xff]
    %v436 = vld [vmem:[#allocation5 + $0x628] sm:$0xff]
    %v437 = vld [vmem:[#allocation5 + $0x630] sm:$0xff]
    %v438 = vld [vmem:[#allocation5 + $0x638] sm:$0xff]
    %v439 = vld [vmem:[#allocation5 + $0x640] sm:$0xff]
    %v440 = vld [vmem:[#allocation5 + $0x648] sm:$0xff]
    %v441 = vld [vmem:[#allocation5 + $0x650] sm:$0xff]
    %v442 = vld [vmem:[#allocation5 + $0x658] sm:$0xff]
    %v443 = vld [vmem:[#allocation5 + $0x660] sm:$0xff]
    %v444 = vld [vmem:[#allocation5 + $0x668] sm:$0xff]
    %v445 = vld [vmem:[#allocation5 + $0x670] sm:$0xff]
    %v446 = vld [vmem:[#allocation5 + $0x678] sm:$0xff]
    %v447 = vld [vmem:[#allocation5 + $0x680] sm:$0xff]
    %v448 = vld [vmem:[#allocation5 + $0x688] sm:$0xff]
    %v449 = vld [vmem:[#allocation5 + $0x690] sm:$0xff]
    %v450 = vld [vmem:[#allocation5 + $0x698] sm:$0xff]
    %v451 = vld [vmem:[#allocation5 + $0x6a0] sm:$0xff]
    %v452 = vld [vmem:[#allocation5 + $0x6a8] sm:$0xff]
    %v453 = vld [vmem:[#allocation5 + $0x6b0] sm:$0xff]
    %v454 = vld [vmem:[#allocation5 + $0x6b8] sm:$0xff]
    %v455 = vld [vmem:[#allocation5 + $0x6c0] sm:$0xff]
    %v456 = vld [vmem:[#allocation5 + $0x6c8] sm:$0xff]
    %v457 = vld [vmem:[#allocation5 + $0x6d0] sm:$0xff]
    %v458 = vld [vmem:[#allocation5 + $0x6d8] sm:$0xff]
    %v459 = vld [vmem:[#allocation5 + $0x6e0] sm:$0xff]
    %v460 = vld [vmem:[#allocation5 + $0x6e8] sm:$0xff]
    %v461 = vld [vmem:[#allocation5 + $0x6f0] sm:$0xff]
    %v462 = vld [vmem:[#allocation5 + $0x6f8] sm:$0xff]
    %v463 = vld [vmem:[#allocation7] sm:$0xf]
    %v465 = vperm.slane %v463, 0
    %v466 = vperm.slane %v463, 1
    %v467 = vperm.slane %v463, 2
    %v468 = vperm.slane %v463, 3
    %v537 = vunpack.c.l.b16 %v175
    %v538 = vunpack.c.h.b16 %v175
    %v539 = vunpack.c.l.b16 %v176
    %v540 = vunpack.c.h.b16 %v176
    %v541 = vunpack.c.l.b16 %v177
    %v542 = vunpack.c.h.b16 %v177
    %v543 = vunpack.c.l.b16 %v178
    %v544 = vunpack.c.l.b16 %v179
    %v545 = vunpack.c.h.b16 %v179
    %v546 = vunpack.c.l.b16 %v180
    %v547 = vunpack.c.h.b16 %v180
    %v548 = vunpack.c.l.b16 %v181
    %v549 = vunpack.c.h.b16 %v181
    %v550 = vunpack.c.l.b16 %v182
    %v551 = vunpack.c.l.b16 %v183
    %v552 = vunpack.c.h.b16 %v183
    %v553 = vunpack.c.l.b16 %v184
    %v554 = vunpack.c.h.b16 %v184
    %v555 = vunpack.c.l.b16 %v185
    %v556 = vunpack.c.h.b16 %v185
    %v557 = vunpack.c.l.b16 %v186
    %v558 = vunpack.c.l.b16 %v187
    %v559 = vunpack.c.h.b16 %v187
    %v560 = vunpack.c.l.b16 %v188
    %v561 = vunpack.c.h.b16 %v188
    %v562 = vunpack.c.l.b16 %v189
    %v563 = vunpack.c.h.b16 %v189
    %v564 = vunpack.c.l.b16 %v190
    %v565 = vunpack.c.l.b16 %v191
    %v566 = vunpack.c.h.b16 %v191
    %v567 = vunpack.c.l.b16 %v192
    %v568 = vunpack.c.h.b16 %v192
    %v569 = vunpack.c.l.b16 %v193
    %v570 = vunpack.c.h.b16 %v193
    %v571 = vunpack.c.l.b16 %v194
    %v572 = vunpack.c.l.b16 %v195
    %v573 = vunpack.c.h.b16 %v195
    %v574 = vunpack.c.l.b16 %v196
    %v575 = vunpack.c.h.b16 %v196
    %v576 = vunpack.c.l.b16 %v197
    %v577 = vunpack.c.h.b16 %v197
    %v578 = vunpack.c.l.b16 %v198
    %v579 = vunpack.c.l.b16 %v199
    %v580 = vunpack.c.h.b16 %v199
    %v581 = vunpack.c.l.b16 %v200
    %v582 = vunpack.c.h.b16 %v200
    %v583 = vunpack.c.l.b16 %v201
    %v584 = vunpack.c.h.b16 %v201
    %v585 = vunpack.c.l.b16 %v202
    %v586 = vunpack.c.l.b16 %v203
    %v587 = vunpack.c.h.b16 %v203
    %v588 = vunpack.c.l.b16 %v204
    %v589 = vunpack.c.h.b16 %v204
    %v590 = vunpack.c.l.b16 %v205
    %v591 = vunpack.c.h.b16 %v205
    %v592 = vunpack.c.l.b16 %v206
    %v593 = vunpack.c.l.b16 %v207
    %v594 = vunpack.c.h.b16 %v207
    %v595 = vunpack.c.l.b16 %v208
    %v596 = vunpack.c.h.b16 %v208
    %v597 = vunpack.c.l.b16 %v209
    %v598 = vunpack.c.h.b16 %v209
    %v599 = vunpack.c.l.b16 %v210
    %v600 = vunpack.c.l.b16 %v211
    %v601 = vunpack.c.h.b16 %v211
    %v602 = vunpack.c.l.b16 %v212
    %v603 = vunpack.c.h.b16 %v212
    %v604 = vunpack.c.l.b16 %v213
    %v605 = vunpack.c.h.b16 %v213
    %v606 = vunpack.c.l.b16 %v214
    %v607 = vunpack.c.l.b16 %v215
    %v608 = vunpack.c.h.b16 %v215
    %v609 = vunpack.c.l.b16 %v216
    %v610 = vunpack.c.h.b16 %v216
    %v611 = vunpack.c.l.b16 %v217
    %v612 = vunpack.c.h.b16 %v217
    %v613 = vunpack.c.l.b16 %v218
    %v614 = vunpack.c.l.b16 %v219
    %v615 = vunpack.c.h.b16 %v219
    %v616 = vunpack.c.l.b16 %v220
    %v617 = vunpack.c.h.b16 %v220
    %v618 = vunpack.c.l.b16 %v221
    %v619 = vunpack.c.h.b16 %v221
    %v620 = vunpack.c.l.b16 %v222
    %v621 = vunpack.c.l.b16 %v223
    %v622 = vunpack.c.h.b16 %v223
    %v623 = vunpack.c.l.b16 %v224
    %v624 = vunpack.c.h.b16 %v224
    %v625 = vunpack.c.l.b16 %v225
    %v626 = vunpack.c.h.b16 %v225
    %v627 = vunpack.c.l.b16 %v226
    %v628 = vunpack.c.l.b16 %v227
    %v629 = vunpack.c.h.b16 %v227
    %v630 = vunpack.c.l.b16 %v228
    %v631 = vunpack.c.h.b16 %v228
    %v632 = vunpack.c.l.b16 %v229
    %v633 = vunpack.c.h.b16 %v229
    %v634 = vunpack.c.l.b16 %v230
    %v635 = vunpack.c.l.b16 %v231
    %v636 = vunpack.c.h.b16 %v231
    %v637 = vunpack.c.l.b16 %v232
    %v638 = vunpack.c.h.b16 %v232
    %v639 = vunpack.c.l.b16 %v233
    %v640 = vunpack.c.h.b16 %v233
    %v641 = vunpack.c.l.b16 %v234
    %v642 = vunpack.c.l.b16 %v235
    %v643 = vunpack.c.h.b16 %v235
    %v644 = vunpack.c.l.b16 %v236
    %v645 = vunpack.c.h.b16 %v236
    %v646 = vunpack.c.l.b16 %v237
    %v647 = vunpack.c.h.b16 %v237
    %v648 = vunpack.c.l.b16 %v238
    %v649 = vpack.c.b16 %v544, %v537
    %v650 = vpack.c.b16 %v545, %v538
    %v651 = vpack.c.b16 %v546, %v539
    %v652 = vpack.c.b16 %v547, %v540
    %v653 = vpack.c.b16 %v548, %v541
    %v654 = vpack.c.b16 %v549, %v542
    %v655 = vpack.c.b16 %v550, %v543
    %v656 = vpack.c.b16 %v558, %v551
    %v657 = vpack.c.b16 %v559, %v552
    %v658 = vpack.c.b16 %v560, %v553
    %v659 = vpack.c.b16 %v561, %v554
    %v660 = vpack.c.b16 %v562, %v555
    %v661 = vpack.c.b16 %v563, %v556
    %v662 = vpack.c.b16 %v564, %v557
    %v663 = vpack.c.b16 %v572, %v565
    %v664 = vpack.c.b16 %v573, %v566
    %v665 = vpack.c.b16 %v574, %v567
    %v666 = vpack.c.b16 %v575, %v568
    %v667 = vpack.c.b16 %v576, %v569
    %v668 = vpack.c.b16 %v577, %v570
    %v669 = vpack.c.b16 %v578, %v571
    %v670 = vpack.c.b16 %v586, %v579
    %v671 = vpack.c.b16 %v587, %v580
    %v672 = vpack.c.b16 %v588, %v581
    %v673 = vpack.c.b16 %v589, %v582
    %v674 = vpack.c.b16 %v590, %v583
    %v675 = vpack.c.b16 %v591, %v584
    %v676 = vpack.c.b16 %v592, %v585
    %v677 = vpack.c.b16 %v600, %v593
    %v678 = vpack.c.b16 %v601, %v594
    %v679 = vpack.c.b16 %v602, %v595
    %v680 = vpack.c.b16 %v603, %v596
    %v681 = vpack.c.b16 %v604, %v597
    %v682 = vpack.c.b16 %v605, %v598
    %v683 = vpack.c.b16 %v606, %v599
    %v684 = vpack.c.b16 %v614, %v607
    %v685 = vpack.c.b16 %v615, %v608
    %v686 = vpack.c.b16 %v616, %v609
    %v687 = vpack.c.b16 %v617, %v610
    %v688 = vpack.c.b16 %v618, %v611
    %v689 = vpack.c.b16 %v619, %v612
    %v690 = vpack.c.b16 %v620, %v613
    %v691 = vpack.c.b16 %v628, %v621
    %v692 = vpack.c.b16 %v629, %v622
    %v693 = vpack.c.b16 %v630, %v623
    %v694 = vpack.c.b16 %v631, %v624
    %v695 = vpack.c.b16 %v632, %v625
    %v696 = vpack.c.b16 %v633, %v626
    %v697 = vpack.c.b16 %v634, %v627
    %v698 = vpack.c.b16 %v642, %v635
    %v699 = vpack.c.b16 %v643, %v636
    %v700 = vpack.c.b16 %v644, %v637
    %v701 = vpack.c.b16 %v645, %v638
    %v702 = vpack.c.b16 %v646, %v639
    %v703 = vpack.c.b16 %v647, %v640
    %v704 = vpack.c.b16 %v648, %v641
    %v985 = vunpack.c.l.b16 %v239
    %v986 = vunpack.c.h.b16 %v239
    %v987 = vunpack.c.l.b16 %v240
    %v988 = vunpack.c.h.b16 %v240
    %v989 = vunpack.c.l.b16 %v241
    %v990 = vunpack.c.h.b16 %v241
    %v991 = vunpack.c.l.b16 %v242
    %v992 = vunpack.c.h.b16 %v242
    %v993 = vunpack.c.l.b16 %v243
    %v994 = vunpack.c.h.b16 %v243
    %v995 = vunpack.c.l.b16 %v244
    %v996 = vunpack.c.h.b16 %v244
    %v997 = vunpack.c.l.b16 %v245
    %v998 = vunpack.c.h.b16 %v245
    %v999 = vunpack.c.l.b16 %v246
    %v1000 = vunpack.c.h.b16 %v246
    %v1001 = vunpack.c.l.b16 %v247
    %v1002 = vunpack.c.h.b16 %v247
    %v1003 = vunpack.c.l.b16 %v248
    %v1004 = vunpack.c.h.b16 %v248
    %v1005 = vunpack.c.l.b16 %v249
    %v1006 = vunpack.c.h.b16 %v249
    %v1007 = vunpack.c.l.b16 %v250
    %v1008 = vunpack.c.h.b16 %v250
    %v1009 = vunpack.c.l.b16 %v251
    %v1010 = vunpack.c.h.b16 %v251
    %v1011 = vunpack.c.l.b16 %v252
    %v1012 = vunpack.c.h.b16 %v252
    %v1013 = vunpack.c.l.b16 %v253
    %v1014 = vunpack.c.h.b16 %v253
    %v1015 = vunpack.c.l.b16 %v254
    %v1016 = vunpack.c.h.b16 %v254
    %v1017 = vunpack.c.l.b16 %v255
    %v1018 = vunpack.c.h.b16 %v255
    %v1019 = vunpack.c.l.b16 %v256
    %v1020 = vunpack.c.h.b16 %v256
    %v1021 = vunpack.c.l.b16 %v257
    %v1022 = vunpack.c.h.b16 %v257
    %v1023 = vunpack.c.l.b16 %v258
    %v1024 = vunpack.c.h.b16 %v258
    %v1025 = vunpack.c.l.b16 %v259
    %v1026 = vunpack.c.h.b16 %v259
    %v1027 = vunpack.c.l.b16 %v260
    %v1028 = vunpack.c.h.b16 %v260
    %v1029 = vunpack.c.l.b16 %v261
    %v1030 = vunpack.c.h.b16 %v261
    %v1031 = vunpack.c.l.b16 %v262
    %v1032 = vunpack.c.h.b16 %v262
    %v1033 = vunpack.c.l.b16 %v263
    %v1034 = vunpack.c.h.b16 %v263
    %v1035 = vunpack.c.l.b16 %v264
    %v1036 = vunpack.c.h.b16 %v264
    %v1037 = vunpack.c.l.b16 %v265
    %v1038 = vunpack.c.h.b16 %v265
    %v1039 = vunpack.c.l.b16 %v266
    %v1040 = vunpack.c.h.b16 %v266
    %v1041 = vunpack.c.l.b16 %v267
    %v1042 = vunpack.c.h.b16 %v267
    %v1043 = vunpack.c.l.b16 %v268
    %v1044 = vunpack.c.h.b16 %v268
    %v1045 = vunpack.c.l.b16 %v269
    %v1046 = vunpack.c.h.b16 %v269
    %v1047 = vunpack.c.l.b16 %v270
    %v1048 = vunpack.c.h.b16 %v270
    %v1049 = vunpack.c.l.b16 %v271
    %v1050 = vunpack.c.h.b16 %v271
    %v1051 = vunpack.c.l.b16 %v272
    %v1052 = vunpack.c.h.b16 %v272
    %v1053 = vunpack.c.l.b16 %v273
    %v1054 = vunpack.c.h.b16 %v273
    %v1055 = vunpack.c.l.b16 %v274
    %v1056 = vunpack.c.h.b16 %v274
    %v1057 = vunpack.c.l.b16 %v275
    %v1058 = vunpack.c.h.b16 %v275
    %v1059 = vunpack.c.l.b16 %v276
    %v1060 = vunpack.c.h.b16 %v276
    %v1061 = vunpack.c.l.b16 %v277
    %v1062 = vunpack.c.h.b16 %v277
    %v1063 = vunpack.c.l.b16 %v278
    %v1064 = vunpack.c.h.b16 %v278
    %v1065 = vunpack.c.l.b16 %v279
    %v1066 = vunpack.c.h.b16 %v279
    %v1067 = vunpack.c.l.b16 %v280
    %v1068 = vunpack.c.h.b16 %v280
    %v1069 = vunpack.c.l.b16 %v281
    %v1070 = vunpack.c.h.b16 %v281
    %v1071 = vunpack.c.l.b16 %v282
    %v1072 = vunpack.c.h.b16 %v282
    %v1073 = vunpack.c.l.b16 %v283
    %v1074 = vunpack.c.h.b16 %v283
    %v1075 = vunpack.c.l.b16 %v284
    %v1076 = vunpack.c.h.b16 %v284
    %v1077 = vunpack.c.l.b16 %v285
    %v1078 = vunpack.c.h.b16 %v285
    %v1079 = vunpack.c.l.b16 %v286
    %v1080 = vunpack.c.h.b16 %v286
    %v1081 = vunpack.c.l.b16 %v287
    %v1082 = vunpack.c.h.b16 %v287
    %v1083 = vunpack.c.l.b16 %v288
    %v1084 = vunpack.c.h.b16 %v288
    %v1085 = vunpack.c.l.b16 %v289
    %v1086 = vunpack.c.h.b16 %v289
    %v1087 = vunpack.c.l.b16 %v290
    %v1088 = vunpack.c.h.b16 %v290
    %v1089 = vunpack.c.l.b16 %v291
    %v1090 = vunpack.c.h.b16 %v291
    %v1091 = vunpack.c.l.b16 %v292
    %v1092 = vunpack.c.h.b16 %v292
    %v1093 = vunpack.c.l.b16 %v293
    %v1094 = vunpack.c.h.b16 %v293
    %v1095 = vunpack.c.l.b16 %v294
    %v1096 = vunpack.c.h.b16 %v294
    %v1097 = vunpack.c.l.b16 %v295
    %v1098 = vunpack.c.h.b16 %v295
    %v1099 = vunpack.c.l.b16 %v296
    %v1100 = vunpack.c.h.b16 %v296
    %v1101 = vunpack.c.l.b16 %v297
    %v1102 = vunpack.c.h.b16 %v297
    %v1103 = vunpack.c.l.b16 %v298
    %v1104 = vunpack.c.h.b16 %v298
    %v1105 = vunpack.c.l.b16 %v299
    %v1106 = vunpack.c.h.b16 %v299
    %v1107 = vunpack.c.l.b16 %v300
    %v1108 = vunpack.c.h.b16 %v300
    %v1109 = vunpack.c.l.b16 %v301
    %v1110 = vunpack.c.h.b16 %v301
    %v1111 = vunpack.c.l.b16 %v302
    %v1112 = vunpack.c.h.b16 %v302
    %v1113 = vunpack.c.l.b16 %v303
    %v1114 = vunpack.c.h.b16 %v303
    %v1115 = vunpack.c.l.b16 %v304
    %v1116 = vunpack.c.h.b16 %v304
    %v1117 = vunpack.c.l.b16 %v305
    %v1118 = vunpack.c.h.b16 %v305
    %v1119 = vunpack.c.l.b16 %v306
    %v1120 = vunpack.c.h.b16 %v306
    %v1121 = vunpack.c.l.b16 %v307
    %v1122 = vunpack.c.h.b16 %v307
    %v1123 = vunpack.c.l.b16 %v308
    %v1124 = vunpack.c.h.b16 %v308
    %v1125 = vunpack.c.l.b16 %v309
    %v1126 = vunpack.c.h.b16 %v309
    %v1127 = vunpack.c.l.b16 %v310
    %v1128 = vunpack.c.h.b16 %v310
    %v1129 = vunpack.c.l.b16 %v311
    %v1130 = vunpack.c.h.b16 %v311
    %v1131 = vunpack.c.l.b16 %v312
    %v1132 = vunpack.c.h.b16 %v312
    %v1133 = vunpack.c.l.b16 %v313
    %v1134 = vunpack.c.h.b16 %v313
    %v1135 = vunpack.c.l.b16 %v314
    %v1136 = vunpack.c.h.b16 %v314
    %v1137 = vunpack.c.l.b16 %v315
    %v1138 = vunpack.c.h.b16 %v315
    %v1139 = vunpack.c.l.b16 %v316
    %v1140 = vunpack.c.h.b16 %v316
    %v1141 = vunpack.c.l.b16 %v317
    %v1142 = vunpack.c.h.b16 %v317
    %v1143 = vunpack.c.l.b16 %v318
    %v1144 = vunpack.c.h.b16 %v318
    %v1145 = vunpack.c.l.b16 %v319
    %v1146 = vunpack.c.h.b16 %v319
    %v1147 = vunpack.c.l.b16 %v320
    %v1148 = vunpack.c.h.b16 %v320
    %v1149 = vunpack.c.l.b16 %v321
    %v1150 = vunpack.c.h.b16 %v321
    %v1151 = vunpack.c.l.b16 %v322
    %v1152 = vunpack.c.h.b16 %v322
    %v1153 = vunpack.c.l.b16 %v323
    %v1154 = vunpack.c.h.b16 %v323
    %v1155 = vunpack.c.l.b16 %v324
    %v1156 = vunpack.c.h.b16 %v324
    %v1157 = vunpack.c.l.b16 %v325
    %v1158 = vunpack.c.h.b16 %v325
    %v1159 = vunpack.c.l.b16 %v326
    %v1160 = vunpack.c.h.b16 %v326
    %v1161 = vunpack.c.l.b16 %v327
    %v1162 = vunpack.c.h.b16 %v327
    %v1163 = vunpack.c.l.b16 %v328
    %v1164 = vunpack.c.h.b16 %v328
    %v1165 = vunpack.c.l.b16 %v329
    %v1166 = vunpack.c.h.b16 %v329
    %v1167 = vunpack.c.l.b16 %v330
    %v1168 = vunpack.c.h.b16 %v330
    %v1169 = vunpack.c.l.b16 %v331
    %v1170 = vunpack.c.h.b16 %v331
    %v1171 = vunpack.c.l.b16 %v332
    %v1172 = vunpack.c.h.b16 %v332
    %v1173 = vunpack.c.l.b16 %v333
    %v1174 = vunpack.c.h.b16 %v333
    %v1175 = vunpack.c.l.b16 %v334
    %v1176 = vunpack.c.h.b16 %v334
    %v1177 = vunpack.c.l.b16 %v335
    %v1178 = vunpack.c.h.b16 %v335
    %v1179 = vunpack.c.l.b16 %v336
    %v1180 = vunpack.c.h.b16 %v336
    %v1181 = vunpack.c.l.b16 %v337
    %v1182 = vunpack.c.h.b16 %v337
    %v1183 = vunpack.c.l.b16 %v338
    %v1184 = vunpack.c.h.b16 %v338
    %v1185 = vunpack.c.l.b16 %v339
    %v1186 = vunpack.c.h.b16 %v339
    %v1187 = vunpack.c.l.b16 %v340
    %v1188 = vunpack.c.h.b16 %v340
    %v1189 = vunpack.c.l.b16 %v341
    %v1190 = vunpack.c.h.b16 %v341
    %v1191 = vunpack.c.l.b16 %v342
    %v1192 = vunpack.c.h.b16 %v342
    %v1193 = vunpack.c.l.b16 %v343
    %v1194 = vunpack.c.h.b16 %v343
    %v1195 = vunpack.c.l.b16 %v344
    %v1196 = vunpack.c.h.b16 %v344
    %v1197 = vunpack.c.l.b16 %v345
    %v1198 = vunpack.c.h.b16 %v345
    %v1199 = vunpack.c.l.b16 %v346
    %v1200 = vunpack.c.h.b16 %v346
    %v1201 = vunpack.c.l.b16 %v347
    %v1202 = vunpack.c.h.b16 %v347
    %v1203 = vunpack.c.l.b16 %v348
    %v1204 = vunpack.c.h.b16 %v348
    %v1205 = vunpack.c.l.b16 %v349
    %v1206 = vunpack.c.h.b16 %v349
    %v1207 = vunpack.c.l.b16 %v350
    %v1208 = vunpack.c.h.b16 %v350
    %v1209 = vunpack.c.l.b16 %v351
    %v1210 = vunpack.c.h.b16 %v351
    %v1211 = vunpack.c.l.b16 %v352
    %v1212 = vunpack.c.h.b16 %v352
    %v1213 = vunpack.c.l.b16 %v353
    %v1214 = vunpack.c.h.b16 %v353
    %v1215 = vunpack.c.l.b16 %v354
    %v1216 = vunpack.c.h.b16 %v354
    %v1217 = vunpack.c.l.b16 %v355
    %v1218 = vunpack.c.h.b16 %v355
    %v1219 = vunpack.c.l.b16 %v356
    %v1220 = vunpack.c.h.b16 %v356
    %v1221 = vunpack.c.l.b16 %v357
    %v1222 = vunpack.c.h.b16 %v357
    %v1223 = vunpack.c.l.b16 %v358
    %v1224 = vunpack.c.h.b16 %v358
    %v1225 = vunpack.c.l.b16 %v359
    %v1226 = vunpack.c.h.b16 %v359
    %v1227 = vunpack.c.l.b16 %v360
    %v1228 = vunpack.c.h.b16 %v360
    %v1229 = vunpack.c.l.b16 %v361
    %v1230 = vunpack.c.h.b16 %v361
    %v1231 = vunpack.c.l.b16 %v362
    %v1232 = vunpack.c.h.b16 %v362
    %v1233 = vunpack.c.l.b16 %v363
    %v1234 = vunpack.c.h.b16 %v363
    %v1235 = vunpack.c.l.b16 %v364
    %v1236 = vunpack.c.h.b16 %v364
    %v1237 = vunpack.c.l.b16 %v365
    %v1238 = vunpack.c.h.b16 %v365
    %v1239 = vunpack.c.l.b16 %v366
    %v1240 = vunpack.c.h.b16 %v366
    %v1241 = vunpack.c.l.b16 %v367
    %v1242 = vunpack.c.h.b16 %v367
    %v1243 = vunpack.c.l.b16 %v368
    %v1244 = vunpack.c.h.b16 %v368
    %v1245 = vunpack.c.l.b16 %v369
    %v1246 = vunpack.c.h.b16 %v369
    %v1247 = vunpack.c.l.b16 %v370
    %v1248 = vunpack.c.h.b16 %v370
    %v1249 = vunpack.c.l.b16 %v371
    %v1250 = vunpack.c.h.b16 %v371
    %v1251 = vunpack.c.l.b16 %v372
    %v1252 = vunpack.c.h.b16 %v372
    %v1253 = vunpack.c.l.b16 %v373
    %v1254 = vunpack.c.h.b16 %v373
    %v1255 = vunpack.c.l.b16 %v374
    %v1256 = vunpack.c.h.b16 %v374
    %v1257 = vunpack.c.l.b16 %v375
    %v1258 = vunpack.c.h.b16 %v375
    %v1259 = vunpack.c.l.b16 %v376
    %v1260 = vunpack.c.h.b16 %v376
    %v1261 = vunpack.c.l.b16 %v377
    %v1262 = vunpack.c.h.b16 %v377
    %v1263 = vunpack.c.l.b16 %v378
    %v1264 = vunpack.c.h.b16 %v378
    %v1265 = vunpack.c.l.b16 %v379
    %v1266 = vunpack.c.h.b16 %v379
    %v1267 = vunpack.c.l.b16 %v380
    %v1268 = vunpack.c.h.b16 %v380
    %v1269 = vunpack.c.l.b16 %v381
    %v1270 = vunpack.c.h.b16 %v381
    %v1271 = vunpack.c.l.b16 %v382
    %v1272 = vunpack.c.h.b16 %v382
    %v1273 = vunpack.c.l.b16 %v383
    %v1274 = vunpack.c.h.b16 %v383
    %v1275 = vunpack.c.l.b16 %v384
    %v1276 = vunpack.c.h.b16 %v384
    %v1277 = vunpack.c.l.b16 %v385
    %v1278 = vunpack.c.h.b16 %v385
    %v1279 = vunpack.c.l.b16 %v386
    %v1280 = vunpack.c.h.b16 %v386
    %v1281 = vunpack.c.l.b16 %v387
    %v1282 = vunpack.c.h.b16 %v387
    %v1283 = vunpack.c.l.b16 %v388
    %v1284 = vunpack.c.h.b16 %v388
    %v1285 = vunpack.c.l.b16 %v389
    %v1286 = vunpack.c.h.b16 %v389
    %v1287 = vunpack.c.l.b16 %v390
    %v1288 = vunpack.c.h.b16 %v390
    %v1289 = vunpack.c.l.b16 %v391
    %v1290 = vunpack.c.h.b16 %v391
    %v1291 = vunpack.c.l.b16 %v392
    %v1292 = vunpack.c.h.b16 %v392
    %v1293 = vunpack.c.l.b16 %v393
    %v1294 = vunpack.c.h.b16 %v393
    %v1295 = vunpack.c.l.b16 %v394
    %v1296 = vunpack.c.h.b16 %v394
    %v1297 = vunpack.c.l.b16 %v395
    %v1298 = vunpack.c.h.b16 %v395
    %v1299 = vunpack.c.l.b16 %v396
    %v1300 = vunpack.c.h.b16 %v396
    %v1301 = vunpack.c.l.b16 %v397
    %v1302 = vunpack.c.h.b16 %v397
    %v1303 = vunpack.c.l.b16 %v398
    %v1304 = vunpack.c.h.b16 %v398
    %v1305 = vunpack.c.l.b16 %v399
    %v1306 = vunpack.c.h.b16 %v399
    %v1307 = vunpack.c.l.b16 %v400
    %v1308 = vunpack.c.h.b16 %v400
    %v1309 = vunpack.c.l.b16 %v401
    %v1310 = vunpack.c.h.b16 %v401
    %v1311 = vunpack.c.l.b16 %v402
    %v1312 = vunpack.c.h.b16 %v402
    %v1313 = vunpack.c.l.b16 %v403
    %v1314 = vunpack.c.h.b16 %v403
    %v1315 = vunpack.c.l.b16 %v404
    %v1316 = vunpack.c.h.b16 %v404
    %v1317 = vunpack.c.l.b16 %v405
    %v1318 = vunpack.c.h.b16 %v405
    %v1319 = vunpack.c.l.b16 %v406
    %v1320 = vunpack.c.h.b16 %v406
    %v1321 = vunpack.c.l.b16 %v407
    %v1322 = vunpack.c.h.b16 %v407
    %v1323 = vunpack.c.l.b16 %v408
    %v1324 = vunpack.c.h.b16 %v408
    %v1325 = vunpack.c.l.b16 %v409
    %v1326 = vunpack.c.h.b16 %v409
    %v1327 = vunpack.c.l.b16 %v410
    %v1328 = vunpack.c.h.b16 %v410
    %v1329 = vunpack.c.l.b16 %v411
    %v1330 = vunpack.c.h.b16 %v411
    %v1331 = vunpack.c.l.b16 %v412
    %v1332 = vunpack.c.h.b16 %v412
    %v1333 = vunpack.c.l.b16 %v413
    %v1334 = vunpack.c.h.b16 %v413
    %v1335 = vunpack.c.l.b16 %v414
    %v1336 = vunpack.c.h.b16 %v414
    %v1337 = vunpack.c.l.b16 %v415
    %v1338 = vunpack.c.h.b16 %v415
    %v1339 = vunpack.c.l.b16 %v416
    %v1340 = vunpack.c.h.b16 %v416
    %v1341 = vunpack.c.l.b16 %v417
    %v1342 = vunpack.c.h.b16 %v417
    %v1343 = vunpack.c.l.b16 %v418
    %v1344 = vunpack.c.h.b16 %v418
    %v1345 = vunpack.c.l.b16 %v419
    %v1346 = vunpack.c.h.b16 %v419
    %v1347 = vunpack.c.l.b16 %v420
    %v1348 = vunpack.c.h.b16 %v420
    %v1349 = vunpack.c.l.b16 %v421
    %v1350 = vunpack.c.h.b16 %v421
    %v1351 = vunpack.c.l.b16 %v422
    %v1352 = vunpack.c.h.b16 %v422
    %v1353 = vunpack.c.l.b16 %v423
    %v1354 = vunpack.c.h.b16 %v423
    %v1355 = vunpack.c.l.b16 %v424
    %v1356 = vunpack.c.h.b16 %v424
    %v1357 = vunpack.c.l.b16 %v425
    %v1358 = vunpack.c.h.b16 %v425
    %v1359 = vunpack.c.l.b16 %v426
    %v1360 = vunpack.c.h.b16 %v426
    %v1361 = vunpack.c.l.b16 %v427
    %v1362 = vunpack.c.h.b16 %v427
    %v1363 = vunpack.c.l.b16 %v428
    %v1364 = vunpack.c.h.b16 %v428
    %v1365 = vunpack.c.l.b16 %v429
    %v1366 = vunpack.c.h.b16 %v429
    %v1367 = vunpack.c.l.b16 %v430
    %v1368 = vunpack.c.h.b16 %v430
    %v1369 = vunpack.c.l.b16 %v431
    %v1370 = vunpack.c.h.b16 %v431
    %v1371 = vunpack.c.l.b16 %v432
    %v1372 = vunpack.c.h.b16 %v432
    %v1373 = vunpack.c.l.b16 %v433
    %v1374 = vunpack.c.h.b16 %v433
    %v1375 = vunpack.c.l.b16 %v434
    %v1376 = vunpack.c.h.b16 %v434
    %v1377 = vunpack.c.l.b16 %v435
    %v1378 = vunpack.c.h.b16 %v435
    %v1379 = vunpack.c.l.b16 %v436
    %v1380 = vunpack.c.h.b16 %v436
    %v1381 = vunpack.c.l.b16 %v437
    %v1382 = vunpack.c.h.b16 %v437
    %v1383 = vunpack.c.l.b16 %v438
    %v1384 = vunpack.c.h.b16 %v438
    %v1385 = vunpack.c.l.b16 %v439
    %v1386 = vunpack.c.h.b16 %v439
    %v1387 = vunpack.c.l.b16 %v440
    %v1388 = vunpack.c.h.b16 %v440
    %v1389 = vunpack.c.l.b16 %v441
    %v1390 = vunpack.c.h.b16 %v441
    %v1391 = vunpack.c.l.b16 %v442
    %v1392 = vunpack.c.h.b16 %v442
    %v1393 = vunpack.c.l.b16 %v443
    %v1394 = vunpack.c.h.b16 %v443
    %v1395 = vunpack.c.l.b16 %v444
    %v1396 = vunpack.c.h.b16 %v444
    %v1397 = vunpack.c.l.b16 %v445
    %v1398 = vunpack.c.h.b16 %v445
    %v1399 = vunpack.c.l.b16 %v446
    %v1400 = vunpack.c.h.b16 %v446
    %v1401 = vunpack.c.l.b16 %v447
    %v1402 = vunpack.c.h.b16 %v447
    %v1403 = vunpack.c.l.b16 %v448
    %v1404 = vunpack.c.h.b16 %v448
    %v1405 = vunpack.c.l.b16 %v449
    %v1406 = vunpack.c.h.b16 %v449
    %v1407 = vunpack.c.l.b16 %v450
    %v1408 = vunpack.c.h.b16 %v450
    %v1409 = vunpack.c.l.b16 %v451
    %v1410 = vunpack.c.h.b16 %v451
    %v1411 = vunpack.c.l.b16 %v452
    %v1412 = vunpack.c.h.b16 %v452
    %v1413 = vunpack.c.l.b16 %v453
    %v1414 = vunpack.c.h.b16 %v453
    %v1415 = vunpack.c.l.b16 %v454
    %v1416 = vunpack.c.h.b16 %v454
    %v1417 = vunpack.c.l.b16 %v455
    %v1418 = vunpack.c.h.b16 %v455
    %v1419 = vunpack.c.l.b16 %v456
    %v1420 = vunpack.c.h.b16 %v456
    %v1421 = vunpack.c.l.b16 %v457
    %v1422 = vunpack.c.h.b16 %v457
    %v1423 = vunpack.c.l.b16 %v458
    %v1424 = vunpack.c.h.b16 %v458
    %v1425 = vunpack.c.l.b16 %v459
    %v1426 = vunpack.c.h.b16 %v459
    %v1427 = vunpack.c.l.b16 %v460
    %v1428 = vunpack.c.h.b16 %v460
    %v1429 = vunpack.c.l.b16 %v461
    %v1430 = vunpack.c.h.b16 %v461
    %v1431 = vunpack.c.l.b16 %v462
    %v1432 = vunpack.c.h.b16 %v462
    %v1433 = vpack.c.b16 %v989, %v985
    %v1434 = vpack.c.b16 %v990, %v986
    %v1435 = vpack.c.b16 %v991, %v987
    %v1436 = vpack.c.b16 %v992, %v988
    %v1437 = vpack.c.b16 %v997, %v993
    %v1438 = vpack.c.b16 %v998, %v994
    %v1439 = vpack.c.b16 %v999, %v995
    %v1440 = vpack.c.b16 %v1000, %v996
    %v1441 = vpack.c.b16 %v1005, %v1001
    %v1442 = vpack.c.b16 %v1006, %v1002
    %v1443 = vpack.c.b16 %v1007, %v1003
    %v1444 = vpack.c.b16 %v1008, %v1004
    %v1445 = vpack.c.b16 %v1013, %v1009
    %v1446 = vpack.c.b16 %v1014, %v1010
    %v1447 = vpack.c.b16 %v1015, %v1011
    %v1448 = vpack.c.b16 %v1016, %v1012
    %v1449 = vpack.c.b16 %v1021, %v1017
    %v1450 = vpack.c.b16 %v1022, %v1018
    %v1451 = vpack.c.b16 %v1023, %v1019
    %v1452 = vpack.c.b16 %v1024, %v1020
    %v1453 = vpack.c.b16 %v1029, %v1025
    %v1454 = vpack.c.b16 %v1030, %v1026
    %v1455 = vpack.c.b16 %v1031, %v1027
    %v1456 = vpack.c.b16 %v1032, %v1028
    %v1457 = vpack.c.b16 %v1037, %v1033
    %v1458 = vpack.c.b16 %v1038, %v1034
    %v1459 = vpack.c.b16 %v1039, %v1035
    %v1460 = vpack.c.b16 %v1040, %v1036
    %v1461 = vpack.c.b16 %v1045, %v1041
    %v1462 = vpack.c.b16 %v1046, %v1042
    %v1463 = vpack.c.b16 %v1047, %v1043
    %v1464 = vpack.c.b16 %v1048, %v1044
    %v1465 = vpack.c.b16 %v1053, %v1049
    %v1466 = vpack.c.b16 %v1054, %v1050
    %v1467 = vpack.c.b16 %v1055, %v1051
    %v1468 = vpack.c.b16 %v1056, %v1052
    %v1469 = vpack.c.b16 %v1061, %v1057
    %v1470 = vpack.c.b16 %v1062, %v1058
    %v1471 = vpack.c.b16 %v1063, %v1059
    %v1472 = vpack.c.b16 %v1064, %v1060
    %v1473 = vpack.c.b16 %v1069, %v1065
    %v1474 = vpack.c.b16 %v1070, %v1066
    %v1475 = vpack.c.b16 %v1071, %v1067
    %v1476 = vpack.c.b16 %v1072, %v1068
    %v1477 = vpack.c.b16 %v1077, %v1073
    %v1478 = vpack.c.b16 %v1078, %v1074
    %v1479 = vpack.c.b16 %v1079, %v1075
    %v1480 = vpack.c.b16 %v1080, %v1076
    %v1481 = vpack.c.b16 %v1085, %v1081
    %v1482 = vpack.c.b16 %v1086, %v1082
    %v1483 = vpack.c.b16 %v1087, %v1083
    %v1484 = vpack.c.b16 %v1088, %v1084
    %v1485 = vpack.c.b16 %v1093, %v1089
    %v1486 = vpack.c.b16 %v1094, %v1090
    %v1487 = vpack.c.b16 %v1095, %v1091
    %v1488 = vpack.c.b16 %v1096, %v1092
    %v1489 = vpack.c.b16 %v1101, %v1097
    %v1490 = vpack.c.b16 %v1102, %v1098
    %v1491 = vpack.c.b16 %v1103, %v1099
    %v1492 = vpack.c.b16 %v1104, %v1100
    %v1493 = vpack.c.b16 %v1109, %v1105
    %v1494 = vpack.c.b16 %v1110, %v1106
    %v1495 = vpack.c.b16 %v1111, %v1107
    %v1496 = vpack.c.b16 %v1112, %v1108
    %v1497 = vpack.c.b16 %v1117, %v1113
    %v1498 = vpack.c.b16 %v1118, %v1114
    %v1499 = vpack.c.b16 %v1119, %v1115
    %v1500 = vpack.c.b16 %v1120, %v1116
    %v1501 = vpack.c.b16 %v1125, %v1121
    %v1502 = vpack.c.b16 %v1126, %v1122
    %v1503 = vpack.c.b16 %v1127, %v1123
    %v1504 = vpack.c.b16 %v1128, %v1124
    %v1505 = vpack.c.b16 %v1133, %v1129
    %v1506 = vpack.c.b16 %v1134, %v1130
    %v1507 = vpack.c.b16 %v1135, %v1131
    %v1508 = vpack.c.b16 %v1136, %v1132
    %v1509 = vpack.c.b16 %v1141, %v1137
    %v1510 = vpack.c.b16 %v1142, %v1138
    %v1511 = vpack.c.b16 %v1143, %v1139
    %v1512 = vpack.c.b16 %v1144, %v1140
    %v1513 = vpack.c.b16 %v1149, %v1145
    %v1514 = vpack.c.b16 %v1150, %v1146
    %v1515 = vpack.c.b16 %v1151, %v1147
    %v1516 = vpack.c.b16 %v1152, %v1148
    %v1517 = vpack.c.b16 %v1157, %v1153
    %v1518 = vpack.c.b16 %v1158, %v1154
    %v1519 = vpack.c.b16 %v1159, %v1155
    %v1520 = vpack.c.b16 %v1160, %v1156
    %v1521 = vpack.c.b16 %v1165, %v1161
    %v1522 = vpack.c.b16 %v1166, %v1162
    %v1523 = vpack.c.b16 %v1167, %v1163
    %v1524 = vpack.c.b16 %v1168, %v1164
    %v1525 = vpack.c.b16 %v1173, %v1169
    %v1526 = vpack.c.b16 %v1174, %v1170
    %v1527 = vpack.c.b16 %v1175, %v1171
    %v1528 = vpack.c.b16 %v1176, %v1172
    %v1529 = vpack.c.b16 %v1181, %v1177
    %v1530 = vpack.c.b16 %v1182, %v1178
    %v1531 = vpack.c.b16 %v1183, %v1179
    %v1532 = vpack.c.b16 %v1184, %v1180
    %v1533 = vpack.c.b16 %v1189, %v1185
    %v1534 = vpack.c.b16 %v1190, %v1186
    %v1535 = vpack.c.b16 %v1191, %v1187
    %v1536 = vpack.c.b16 %v1192, %v1188
    %v1537 = vpack.c.b16 %v1197, %v1193
    %v1538 = vpack.c.b16 %v1198, %v1194
    %v1539 = vpack.c.b16 %v1199, %v1195
    %v1540 = vpack.c.b16 %v1200, %v1196
    %v1541 = vpack.c.b16 %v1205, %v1201
    %v1542 = vpack.c.b16 %v1206, %v1202
    %v1543 = vpack.c.b16 %v1207, %v1203
    %v1544 = vpack.c.b16 %v1208, %v1204
    %v1545 = vpack.c.b16 %v1213, %v1209
    %v1546 = vpack.c.b16 %v1214, %v1210
    %v1547 = vpack.c.b16 %v1215, %v1211
    %v1548 = vpack.c.b16 %v1216, %v1212
    %v1549 = vpack.c.b16 %v1221, %v1217
    %v1550 = vpack.c.b16 %v1222, %v1218
    %v1551 = vpack.c.b16 %v1223, %v1219
    %v1552 = vpack.c.b16 %v1224, %v1220
    %v1553 = vpack.c.b16 %v1229, %v1225
    %v1554 = vpack.c.b16 %v1230, %v1226
    %v1555 = vpack.c.b16 %v1231, %v1227
    %v1556 = vpack.c.b16 %v1232, %v1228
    %v1557 = vpack.c.b16 %v1237, %v1233
    %v1558 = vpack.c.b16 %v1238, %v1234
    %v1559 = vpack.c.b16 %v1239, %v1235
    %v1560 = vpack.c.b16 %v1240, %v1236
    %v1561 = vpack.c.b16 %v1245, %v1241
    %v1562 = vpack.c.b16 %v1246, %v1242
    %v1563 = vpack.c.b16 %v1247, %v1243
    %v1564 = vpack.c.b16 %v1248, %v1244
    %v1565 = vpack.c.b16 %v1253, %v1249
    %v1566 = vpack.c.b16 %v1254, %v1250
    %v1567 = vpack.c.b16 %v1255, %v1251
    %v1568 = vpack.c.b16 %v1256, %v1252
    %v1569 = vpack.c.b16 %v1261, %v1257
    %v1570 = vpack.c.b16 %v1262, %v1258
    %v1571 = vpack.c.b16 %v1263, %v1259
    %v1572 = vpack.c.b16 %v1264, %v1260
    %v1573 = vpack.c.b16 %v1269, %v1265
    %v1574 = vpack.c.b16 %v1270, %v1266
    %v1575 = vpack.c.b16 %v1271, %v1267
    %v1576 = vpack.c.b16 %v1272, %v1268
    %v1577 = vpack.c.b16 %v1277, %v1273
    %v1578 = vpack.c.b16 %v1278, %v1274
    %v1579 = vpack.c.b16 %v1279, %v1275
    %v1580 = vpack.c.b16 %v1280, %v1276
    %v1581 = vpack.c.b16 %v1285, %v1281
    %v1582 = vpack.c.b16 %v1286, %v1282
    %v1583 = vpack.c.b16 %v1287, %v1283
    %v1584 = vpack.c.b16 %v1288, %v1284
    %v1585 = vpack.c.b16 %v1293, %v1289
    %v1586 = vpack.c.b16 %v1294, %v1290
    %v1587 = vpack.c.b16 %v1295, %v1291
    %v1588 = vpack.c.b16 %v1296, %v1292
    %v1589 = vpack.c.b16 %v1301, %v1297
    %v1590 = vpack.c.b16 %v1302, %v1298
    %v1591 = vpack.c.b16 %v1303, %v1299
    %v1592 = vpack.c.b16 %v1304, %v1300
    %v1593 = vpack.c.b16 %v1309, %v1305
    %v1594 = vpack.c.b16 %v1310, %v1306
    %v1595 = vpack.c.b16 %v1311, %v1307
    %v1596 = vpack.c.b16 %v1312, %v1308
    %v1597 = vpack.c.b16 %v1317, %v1313
    %v1598 = vpack.c.b16 %v1318, %v1314
    %v1599 = vpack.c.b16 %v1319, %v1315
    %v1600 = vpack.c.b16 %v1320, %v1316
    %v1601 = vpack.c.b16 %v1325, %v1321
    %v1602 = vpack.c.b16 %v1326, %v1322
    %v1603 = vpack.c.b16 %v1327, %v1323
    %v1604 = vpack.c.b16 %v1328, %v1324
    %v1605 = vpack.c.b16 %v1333, %v1329
    %v1606 = vpack.c.b16 %v1334, %v1330
    %v1607 = vpack.c.b16 %v1335, %v1331
    %v1608 = vpack.c.b16 %v1336, %v1332
    %v1609 = vpack.c.b16 %v1341, %v1337
    %v1610 = vpack.c.b16 %v1342, %v1338
    %v1611 = vpack.c.b16 %v1343, %v1339
    %v1612 = vpack.c.b16 %v1344, %v1340
    %v1613 = vpack.c.b16 %v1349, %v1345
    %v1614 = vpack.c.b16 %v1350, %v1346
    %v1615 = vpack.c.b16 %v1351, %v1347
    %v1616 = vpack.c.b16 %v1352, %v1348
    %v1617 = vpack.c.b16 %v1357, %v1353
    %v1618 = vpack.c.b16 %v1358, %v1354
    %v1619 = vpack.c.b16 %v1359, %v1355
    %v1620 = vpack.c.b16 %v1360, %v1356
    %v1621 = vpack.c.b16 %v1365, %v1361
    %v1622 = vpack.c.b16 %v1366, %v1362
    %v1623 = vpack.c.b16 %v1367, %v1363
    %v1624 = vpack.c.b16 %v1368, %v1364
    %v1625 = vpack.c.b16 %v1373, %v1369
    %v1626 = vpack.c.b16 %v1374, %v1370
    %v1627 = vpack.c.b16 %v1375, %v1371
    %v1628 = vpack.c.b16 %v1376, %v1372
    %v1629 = vpack.c.b16 %v1381, %v1377
    %v1630 = vpack.c.b16 %v1382, %v1378
    %v1631 = vpack.c.b16 %v1383, %v1379
    %v1632 = vpack.c.b16 %v1384, %v1380
    %v1633 = vpack.c.b16 %v1389, %v1385
    %v1634 = vpack.c.b16 %v1390, %v1386
    %v1635 = vpack.c.b16 %v1391, %v1387
    %v1636 = vpack.c.b16 %v1392, %v1388
    %v1637 = vpack.c.b16 %v1397, %v1393
    %v1638 = vpack.c.b16 %v1398, %v1394
    %v1639 = vpack.c.b16 %v1399, %v1395
    %v1640 = vpack.c.b16 %v1400, %v1396
    %v1641 = vpack.c.b16 %v1405, %v1401
    %v1642 = vpack.c.b16 %v1406, %v1402
    %v1643 = vpack.c.b16 %v1407, %v1403
    %v1644 = vpack.c.b16 %v1408, %v1404
    %v1645 = vpack.c.b16 %v1413, %v1409
    %v1646 = vpack.c.b16 %v1414, %v1410
    %v1647 = vpack.c.b16 %v1415, %v1411
    %v1648 = vpack.c.b16 %v1416, %v1412
    %v1649 = vpack.c.b16 %v1421, %v1417
    %v1650 = vpack.c.b16 %v1422, %v1418
    %v1651 = vpack.c.b16 %v1423, %v1419
    %v1652 = vpack.c.b16 %v1424, %v1420
    %v1653 = vpack.c.b16 %v1429, %v1425
    %v1654 = vpack.c.b16 %v1430, %v1426
    %v1655 = vpack.c.b16 %v1431, %v1427
    %v1656 = vpack.c.b16 %v1432, %v1428
    %1881 = vmatpush.bf16.msra.mxu0 %v1461
    %1882 = vmatpush.bf16.msra.mxu0 %v1457
    %1883 = vmatpush.bf16.msra.mxu0 %v1453
    %1884 = vmatpush.bf16.msra.mxu0 %v1449
    %1885 = vmatpush.bf16.msra.mxu0 %v1445
    %1886 = vmatpush.bf16.msra.mxu0 %v1441
    %1887 = vmatpush.bf16.msra.mxu0 %v1437
    %1888 = vmatpush.bf16.msra.mxu0 %v1433
    %1889 = vmatmul.bf16.gmra.mxu0 %v649
    %v1890 = vpop.f32.mrf.mxu0
    %v1891 = vadd.f32 %v465, %v1890
    %v1892 = vpop.f32.mrf.mxu0
    %v1893 = vadd.f32 %v465, %v1892
    %1894 = vmatmul.bf16.gmra.mxu0 %v656
    %v1895 = vpop.f32.mrf.mxu0
    %v1896 = vadd.f32 %v465, %v1895
    %v1897 = vpop.f32.mrf.mxu0
    %v1898 = vadd.f32 %v465, %v1897
    %1899 = vmatmul.bf16.gmra.mxu0 %v663
    %v1900 = vpop.f32.mrf.mxu0
    %v1901 = vadd.f32 %v465, %v1900
    %v1902 = vpop.f32.mrf.mxu0
    %v1903 = vadd.f32 %v465, %v1902
    %1904 = vmatmul.bf16.gmra.mxu0 %v670
    %v1905 = vpop.f32.mrf.mxu0
    %v1906 = vadd.f32 %v465, %v1905
    %v1907 = vpop.f32.mrf.mxu0
    %v1908 = vadd.f32 %v465, %v1907
    %1909 = vmatmul.bf16.gmra.mxu0 %v677
    %v1910 = vpop.f32.mrf.mxu0
    %v1911 = vadd.f32 %v465, %v1910
    %v1912 = vpop.f32.mrf.mxu0
    %v1913 = vadd.f32 %v465, %v1912
    %1914 = vmatmul.bf16.gmra.mxu0 %v684
    %v1915 = vpop.f32.mrf.mxu0
    %v1916 = vadd.f32 %v465, %v1915
    %v1917 = vpop.f32.mrf.mxu0
    %v1918 = vadd.f32 %v465, %v1917
    %1919 = vmatmul.bf16.gmra.mxu0 %v691
    %v1920 = vpop.f32.mrf.mxu0
    %v1921 = vadd.f32 %v465, %v1920
    %v1922 = vpop.f32.mrf.mxu0
    %v1923 = vadd.f32 %v465, %v1922
    %1924 = vmatmul.bf16.gmra.mxu0 %v698
    %v1925 = vpop.f32.mrf.mxu0
    %v1926 = vadd.f32 %v465, %v1925
    %v1927 = vpop.f32.mrf.mxu0
    %v1928 = vadd.f32 %v465, %v1927
    %1929 = vdwg.mxu0
    %1930 = vmatpush.bf16.msra.mxu0 %v1493
    %1931 = vmatpush.bf16.msra.mxu0 %v1489
    %1932 = vmatpush.bf16.msra.mxu0 %v1485
    %1933 = vmatpush.bf16.msra.mxu0 %v1481
    %1934 = vmatpush.bf16.msra.mxu0 %v1477
    %1935 = vmatpush.bf16.msra.mxu0 %v1473
    %1936 = vmatpush.bf16.msra.mxu0 %v1469
    %1937 = vmatpush.bf16.msra.mxu0 %v1465
    %1938 = vmatmul.bf16.gmra.mxu0 %v650
    %v1939 = vpop.f32.mrf.mxu0
    %v1940 = vadd.f32 %v1891, %v1939
    %v1941 = vpop.f32.mrf.mxu0
    %v1942 = vadd.f32 %v1893, %v1941
    %1943 = vmatmul.bf16.gmra.mxu0 %v657
    %v1944 = vpop.f32.mrf.mxu0
    %v1945 = vadd.f32 %v1896, %v1944
    %v1946 = vpop.f32.mrf.mxu0
    %v1947 = vadd.f32 %v1898, %v1946
    %1948 = vmatmul.bf16.gmra.mxu0 %v664
    %v1949 = vpop.f32.mrf.mxu0
    %v1950 = vadd.f32 %v1901, %v1949
    %v1951 = vpop.f32.mrf.mxu0
    %v1952 = vadd.f32 %v1903, %v1951
    %1953 = vmatmul.bf16.gmra.mxu0 %v671
    %v1954 = vpop.f32.mrf.mxu0
    %v1955 = vadd.f32 %v1906, %v1954
    %v1956 = vpop.f32.mrf.mxu0
    %v1957 = vadd.f32 %v1908, %v1956
    %1958 = vmatmul.bf16.gmra.mxu0 %v678
    %v1959 = vpop.f32.mrf.mxu0
    %v1960 = vadd.f32 %v1911, %v1959
    %v1961 = vpop.f32.mrf.mxu0
    %v1962 = vadd.f32 %v1913, %v1961
    %1963 = vmatmul.bf16.gmra.mxu0 %v685
    %v1964 = vpop.f32.mrf.mxu0
    %v1965 = vadd.f32 %v1916, %v1964
    %v1966 = vpop.f32.mrf.mxu0
    %v1967 = vadd.f32 %v1918, %v1966
    %1968 = vmatmul.bf16.gmra.mxu0 %v692
    %v1969 = vpop.f32.mrf.mxu0
    %v1970 = vadd.f32 %v1921, %v1969
    %v1971 = vpop.f32.mrf.mxu0
    %v1972 = vadd.f32 %v1923, %v1971
    %1973 = vmatmul.bf16.gmra.mxu0 %v699
    %v1974 = vpop.f32.mrf.mxu0
    %v1975 = vadd.f32 %v1926, %v1974
    %v1976 = vpop.f32.mrf.mxu0
    %v1977 = vadd.f32 %v1928, %v1976
    %1978 = vdwg.mxu0
    %1979 = vmatpush.bf16.msra.mxu0 %v1525
    %1980 = vmatpush.bf16.msra.mxu0 %v1521
    %1981 = vmatpush.bf16.msra.mxu0 %v1517
    %1982 = vmatpush.bf16.msra.mxu0 %v1513
    %1983 = vmatpush.bf16.msra.mxu0 %v1509
    %1984 = vmatpush.bf16.msra.mxu0 %v1505
    %1985 = vmatpush.bf16.msra.mxu0 %v1501
    %1986 = vmatpush.bf16.msra.mxu0 %v1497
    %1987 = vmatmul.bf16.gmra.mxu0 %v651
    %v1988 = vpop.f32.mrf.mxu0
    %v1989 = vadd.f32 %v1940, %v1988
    %v1990 = vpop.f32.mrf.mxu0
    %v1991 = vadd.f32 %v1942, %v1990
    %1992 = vmatmul.bf16.gmra.mxu0 %v658
    %v1993 = vpop.f32.mrf.mxu0
    %v1994 = vadd.f32 %v1945, %v1993
    %v1995 = vpop.f32.mrf.mxu0
    %v1996 = vadd.f32 %v1947, %v1995
    %1997 = vmatmul.bf16.gmra.mxu0 %v665
    %v1998 = vpop.f32.mrf.mxu0
    %v1999 = vadd.f32 %v1950, %v1998
    %v2000 = vpop.f32.mrf.mxu0
    %v2001 = vadd.f32 %v1952, %v2000
    %2002 = vmatmul.bf16.gmra.mxu0 %v672
    %v2003 = vpop.f32.mrf.mxu0
    %v2004 = vadd.f32 %v1955, %v2003
    %v2005 = vpop.f32.mrf.mxu0
    %v2006 = vadd.f32 %v1957, %v2005
    %2007 = vmatmul.bf16.gmra.mxu0 %v679
    %v2008 = vpop.f32.mrf.mxu0
    %v2009 = vadd.f32 %v1960, %v2008
    %v2010 = vpop.f32.mrf.mxu0
    %v2011 = vadd.f32 %v1962, %v2010
    %2012 = vmatmul.bf16.gmra.mxu0 %v686
    %v2013 = vpop.f32.mrf.mxu0
    %v2014 = vadd.f32 %v1965, %v2013
    %v2015 = vpop.f32.mrf.mxu0
    %v2016 = vadd.f32 %v1967, %v2015
    %2017 = vmatmul.bf16.gmra.mxu0 %v693
    %v2018 = vpop.f32.mrf.mxu0
    %v2019 = vadd.f32 %v1970, %v2018
    %v2020 = vpop.f32.mrf.mxu0
    %v2021 = vadd.f32 %v1972, %v2020
    %2022 = vmatmul.bf16.gmra.mxu0 %v700
    %v2023 = vpop.f32.mrf.mxu0
    %v2024 = vadd.f32 %v1975, %v2023
    %v2025 = vpop.f32.mrf.mxu0
    %v2026 = vadd.f32 %v1977, %v2025
    %2027 = vdwg.mxu0
    %2028 = vmatpush.bf16.msra.mxu0 %v1557
    %2029 = vmatpush.bf16.msra.mxu0 %v1553
    %2030 = vmatpush.bf16.msra.mxu0 %v1549
    %2031 = vmatpush.bf16.msra.mxu0 %v1545
    %2032 = vmatpush.bf16.msra.mxu0 %v1541
    %2033 = vmatpush.bf16.msra.mxu0 %v1537
    %2034 = vmatpush.bf16.msra.mxu0 %v1533
    %2035 = vmatpush.bf16.msra.mxu0 %v1529
    %2036 = vmatmul.bf16.gmra.mxu0 %v652
    %v2037 = vpop.f32.mrf.mxu0
    %v2038 = vadd.f32 %v1989, %v2037
    %v2039 = vpop.f32.mrf.mxu0
    %v2040 = vadd.f32 %v1991, %v2039
    %2041 = vmatmul.bf16.gmra.mxu0 %v659
    %v2042 = vpop.f32.mrf.mxu0
    %v2043 = vadd.f32 %v1994, %v2042
    %v2044 = vpop.f32.mrf.mxu0
    %v2045 = vadd.f32 %v1996, %v2044
    %2046 = vmatmul.bf16.gmra.mxu0 %v666
    %v2047 = vpop.f32.mrf.mxu0
    %v2048 = vadd.f32 %v1999, %v2047
    %v2049 = vpop.f32.mrf.mxu0
    %v2050 = vadd.f32 %v2001, %v2049
    %2051 = vmatmul.bf16.gmra.mxu0 %v673
    %v2052 = vpop.f32.mrf.mxu0
    %v2053 = vadd.f32 %v2004, %v2052
    %v2054 = vpop.f32.mrf.mxu0
    %v2055 = vadd.f32 %v2006, %v2054
    %2056 = vmatmul.bf16.gmra.mxu0 %v680
    %v2057 = vpop.f32.mrf.mxu0
    %v2058 = vadd.f32 %v2009, %v2057
    %v2059 = vpop.f32.mrf.mxu0
    %v2060 = vadd.f32 %v2011, %v2059
    %2061 = vmatmul.bf16.gmra.mxu0 %v687
    %v2062 = vpop.f32.mrf.mxu0
    %v2063 = vadd.f32 %v2014, %v2062
    %v2064 = vpop.f32.mrf.mxu0
    %v2065 = vadd.f32 %v2016, %v2064
    %2066 = vmatmul.bf16.gmra.mxu0 %v694
    %v2067 = vpop.f32.mrf.mxu0
    %v2068 = vadd.f32 %v2019, %v2067
    %v2069 = vpop.f32.mrf.mxu0
    %v2070 = vadd.f32 %v2021, %v2069
    %2071 = vmatmul.bf16.gmra.mxu0 %v701
    %v2072 = vpop.f32.mrf.mxu0
    %v2073 = vadd.f32 %v2024, %v2072
    %v2074 = vpop.f32.mrf.mxu0
    %v2075 = vadd.f32 %v2026, %v2074
    %2076 = vdwg.mxu0
    %2077 = vmatpush.bf16.msra.mxu0 %v1589
    %2078 = vmatpush.bf16.msra.mxu0 %v1585
    %2079 = vmatpush.bf16.msra.mxu0 %v1581
    %2080 = vmatpush.bf16.msra.mxu0 %v1577
    %2081 = vmatpush.bf16.msra.mxu0 %v1573
    %2082 = vmatpush.bf16.msra.mxu0 %v1569
    %2083 = vmatpush.bf16.msra.mxu0 %v1565
    %2084 = vmatpush.bf16.msra.mxu0 %v1561
    %2085 = vmatmul.bf16.gmra.mxu0 %v653
    %v2086 = vpop.f32.mrf.mxu0
    %v2087 = vadd.f32 %v2038, %v2086
    %v2088 = vpop.f32.mrf.mxu0
    %v2089 = vadd.f32 %v2040, %v2088
    %2090 = vmatmul.bf16.gmra.mxu0 %v660
    %v2091 = vpop.f32.mrf.mxu0
    %v2092 = vadd.f32 %v2043, %v2091
    %v2093 = vpop.f32.mrf.mxu0
    %v2094 = vadd.f32 %v2045, %v2093
    %2095 = vmatmul.bf16.gmra.mxu0 %v667
    %v2096 = vpop.f32.mrf.mxu0
    %v2097 = vadd.f32 %v2048, %v2096
    %v2098 = vpop.f32.mrf.mxu0
    %v2099 = vadd.f32 %v2050, %v2098
    %2100 = vmatmul.bf16.gmra.mxu0 %v674
    %v2101 = vpop.f32.mrf.mxu0
    %v2102 = vadd.f32 %v2053, %v2101
    %v2103 = vpop.f32.mrf.mxu0
    %v2104 = vadd.f32 %v2055, %v2103
    %2105 = vmatmul.bf16.gmra.mxu0 %v681
    %v2106 = vpop.f32.mrf.mxu0
    %v2107 = vadd.f32 %v2058, %v2106
    %v2108 = vpop.f32.mrf.mxu0
    %v2109 = vadd.f32 %v2060, %v2108
    %2110 = vmatmul.bf16.gmra.mxu0 %v688
    %v2111 = vpop.f32.mrf.mxu0
    %v2112 = vadd.f32 %v2063, %v2111
    %v2113 = vpop.f32.mrf.mxu0
    %v2114 = vadd.f32 %v2065, %v2113
    %2115 = vmatmul.bf16.gmra.mxu0 %v695
    %v2116 = vpop.f32.mrf.mxu0
    %v2117 = vadd.f32 %v2068, %v2116
    %v2118 = vpop.f32.mrf.mxu0
    %v2119 = vadd.f32 %v2070, %v2118
    %2120 = vmatmul.bf16.gmra.mxu0 %v702
    %v2121 = vpop.f32.mrf.mxu0
    %v2122 = vadd.f32 %v2073, %v2121
    %v2123 = vpop.f32.mrf.mxu0
    %v2124 = vadd.f32 %v2075, %v2123
    %2125 = vdwg.mxu0
    %2126 = vmatpush.bf16.msra.mxu0 %v1621
    %2127 = vmatpush.bf16.msra.mxu0 %v1617
    %2128 = vmatpush.bf16.msra.mxu0 %v1613
    %2129 = vmatpush.bf16.msra.mxu0 %v1609
    %2130 = vmatpush.bf16.msra.mxu0 %v1605
    %2131 = vmatpush.bf16.msra.mxu0 %v1601
    %2132 = vmatpush.bf16.msra.mxu0 %v1597
    %2133 = vmatpush.bf16.msra.mxu0 %v1593
    %2134 = vmatmul.bf16.gmra.mxu0 %v654
    %v2135 = vpop.f32.mrf.mxu0
    %v2136 = vadd.f32 %v2087, %v2135
    %v2137 = vpop.f32.mrf.mxu0
    %v2138 = vadd.f32 %v2089, %v2137
    %2139 = vmatmul.bf16.gmra.mxu0 %v661
    %v2140 = vpop.f32.mrf.mxu0
    %v2141 = vadd.f32 %v2092, %v2140
    %v2142 = vpop.f32.mrf.mxu0
    %v2143 = vadd.f32 %v2094, %v2142
    %2144 = vmatmul.bf16.gmra.mxu0 %v668
    %v2145 = vpop.f32.mrf.mxu0
    %v2146 = vadd.f32 %v2097, %v2145
    %v2147 = vpop.f32.mrf.mxu0
    %v2148 = vadd.f32 %v2099, %v2147
    %2149 = vmatmul.bf16.gmra.mxu0 %v675
    %v2150 = vpop.f32.mrf.mxu0
    %v2151 = vadd.f32 %v2102, %v2150
    %v2152 = vpop.f32.mrf.mxu0
    %v2153 = vadd.f32 %v2104, %v2152
    %2154 = vmatmul.bf16.gmra.mxu0 %v682
    %v2155 = vpop.f32.mrf.mxu0
    %v2156 = vadd.f32 %v2107, %v2155
    %v2157 = vpop.f32.mrf.mxu0
    %v2158 = vadd.f32 %v2109, %v2157
    %2159 = vmatmul.bf16.gmra.mxu0 %v689
    %v2160 = vpop.f32.mrf.mxu0
    %v2161 = vadd.f32 %v2112, %v2160
    %v2162 = vpop.f32.mrf.mxu0
    %v2163 = vadd.f32 %v2114, %v2162
    %2164 = vmatmul.bf16.gmra.mxu0 %v696
    %v2165 = vpop.f32.mrf.mxu0
    %v2166 = vadd.f32 %v2117, %v2165
    %v2167 = vpop.f32.mrf.mxu0
    %v2168 = vadd.f32 %v2119, %v2167
    %2169 = vmatmul.bf16.gmra.mxu0 %v703
    %v2170 = vpop.f32.mrf.mxu0
    %v2171 = vadd.f32 %v2122, %v2170
    %v2172 = vpop.f32.mrf.mxu0
    %v2173 = vadd.f32 %v2124, %v2172
    %2174 = vdwg.mxu0
    %2175 = vmatpush.bf16.msra.mxu0 %v1653
    %2176 = vmatpush.bf16.msra.mxu0 %v1649
    %2177 = vmatpush.bf16.msra.mxu0 %v1645
    %2178 = vmatpush.bf16.msra.mxu0 %v1641
    %2179 = vmatpush.bf16.msra.mxu0 %v1637
    %2180 = vmatpush.bf16.msra.mxu0 %v1633
    %2181 = vmatpush.bf16.msra.mxu0 %v1629
    %2182 = vmatpush.bf16.msra.mxu0 %v1625
    %2183 = vmatmul.bf16.gmra.mxu0 %v655
    %v2184 = vpop.f32.mrf.mxu0
    %v2185 = vadd.f32 %v2136, %v2184
    %v2186 = vpop.f32.mrf.mxu0
    %v2187 = vadd.f32 %v2138, %v2186
    %2188 = vmatmul.bf16.gmra.mxu0 %v662
    %v2189 = vpop.f32.mrf.mxu0
    %v2190 = vadd.f32 %v2141, %v2189
    %v2191 = vpop.f32.mrf.mxu0
    %v2192 = vadd.f32 %v2143, %v2191
    %2193 = vmatmul.bf16.gmra.mxu0 %v669
    %v2194 = vpop.f32.mrf.mxu0
    %v2195 = vadd.f32 %v2146, %v2194
    %v2196 = vpop.f32.mrf.mxu0
    %v2197 = vadd.f32 %v2148, %v2196
    %2198 = vmatmul.bf16.gmra.mxu0 %v676
    %v2199 = vpop.f32.mrf.mxu0
    %v2200 = vadd.f32 %v2151, %v2199
    %v2201 = vpop.f32.mrf.mxu0
    %v2202 = vadd.f32 %v2153, %v2201
    %2203 = vmatmul.bf16.gmra.mxu0 %v683
    %v2204 = vpop.f32.mrf.mxu0
    %v2205 = vadd.f32 %v2156, %v2204
    %v2206 = vpop.f32.mrf.mxu0
    %v2207 = vadd.f32 %v2158, %v2206
    %2208 = vmatmul.bf16.gmra.mxu0 %v690
    %v2209 = vpop.f32.mrf.mxu0
    %v2210 = vadd.f32 %v2161, %v2209
    %v2211 = vpop.f32.mrf.mxu0
    %v2212 = vadd.f32 %v2163, %v2211
    %2213 = vmatmul.bf16.gmra.mxu0 %v697
    %v2214 = vpop.f32.mrf.mxu0
    %v2215 = vadd.f32 %v2166, %v2214
    %v2216 = vpop.f32.mrf.mxu0
    %v2217 = vadd.f32 %v2168, %v2216
    %2218 = vmatmul.bf16.gmra.mxu0 %v704
    %v2219 = vpop.f32.mrf.mxu0
    %v2220 = vadd.f32 %v2171, %v2219
    %v2221 = vpop.f32.mrf.mxu0
    %v2222 = vadd.f32 %v2173, %v2221
    %2223 = vdwg.mxu0
    %2224 = vmatpush.bf16.msra.mxu0 %v1462
    %2225 = vmatpush.bf16.msra.mxu0 %v1458
    %2226 = vmatpush.bf16.msra.mxu0 %v1454
    %2227 = vmatpush.bf16.msra.mxu0 %v1450
    %2228 = vmatpush.bf16.msra.mxu0 %v1446
    %2229 = vmatpush.bf16.msra.mxu0 %v1442
    %2230 = vmatpush.bf16.msra.mxu0 %v1438
    %2231 = vmatpush.bf16.msra.mxu0 %v1434
    %2232 = vmatmul.bf16.gmra.mxu0 %v649
    %v2233 = vpop.f32.mrf.mxu0
    %v2234 = vadd.f32 %v466, %v2233
    %v2235 = vpop.f32.mrf.mxu0
    %v2236 = vadd.f32 %v466, %v2235
    %2237 = vmatmul.bf16.gmra.mxu0 %v656
    %v2238 = vpop.f32.mrf.mxu0
    %v2239 = vadd.f32 %v466, %v2238
    %v2240 = vpop.f32.mrf.mxu0
    %v2241 = vadd.f32 %v466, %v2240
    %2242 = vmatmul.bf16.gmra.mxu0 %v663
    %v2243 = vpop.f32.mrf.mxu0
    %v2244 = vadd.f32 %v466, %v2243
    %v2245 = vpop.f32.mrf.mxu0
    %v2246 = vadd.f32 %v466, %v2245
    %2247 = vmatmul.bf16.gmra.mxu0 %v670
    %v2248 = vpop.f32.mrf.mxu0
    %v2249 = vadd.f32 %v466, %v2248
    %v2250 = vpop.f32.mrf.mxu0
    %v2251 = vadd.f32 %v466, %v2250
    %2252 = vmatmul.bf16.gmra.mxu0 %v677
    %v2253 = vpop.f32.mrf.mxu0
    %v2254 = vadd.f32 %v466, %v2253
    %v2255 = vpop.f32.mrf.mxu0
    %v2256 = vadd.f32 %v466, %v2255
    %2257 = vmatmul.bf16.gmra.mxu0 %v684
    %v2258 = vpop.f32.mrf.mxu0
    %v2259 = vadd.f32 %v466, %v2258
    %v2260 = vpop.f32.mrf.mxu0
    %v2261 = vadd.f32 %v466, %v2260
    %2262 = vmatmul.bf16.gmra.mxu0 %v691
    %v2263 = vpop.f32.mrf.mxu0
    %v2264 = vadd.f32 %v466, %v2263
    %v2265 = vpop.f32.mrf.mxu0
    %v2266 = vadd.f32 %v466, %v2265
    %2267 = vmatmul.bf16.gmra.mxu0 %v698
    %v2268 = vpop.f32.mrf.mxu0
    %v2269 = vadd.f32 %v466, %v2268
    %v2270 = vpop.f32.mrf.mxu0
    %v2271 = vadd.f32 %v466, %v2270
    %2272 = vdwg.mxu0
    %2273 = vmatpush.bf16.msra.mxu0 %v1494
    %2274 = vmatpush.bf16.msra.mxu0 %v1490
    %2275 = vmatpush.bf16.msra.mxu0 %v1486
    %2276 = vmatpush.bf16.msra.mxu0 %v1482
    %2277 = vmatpush.bf16.msra.mxu0 %v1478
    %2278 = vmatpush.bf16.msra.mxu0 %v1474
    %2279 = vmatpush.bf16.msra.mxu0 %v1470
    %2280 = vmatpush.bf16.msra.mxu0 %v1466
    %2281 = vmatmul.bf16.gmra.mxu0 %v650
    %v2282 = vpop.f32.mrf.mxu0
    %v2283 = vadd.f32 %v2234, %v2282
    %v2284 = vpop.f32.mrf.mxu0
    %v2285 = vadd.f32 %v2236, %v2284
    %2286 = vmatmul.bf16.gmra.mxu0 %v657
    %v2287 = vpop.f32.mrf.mxu0
    %v2288 = vadd.f32 %v2239, %v2287
    %v2289 = vpop.f32.mrf.mxu0
    %v2290 = vadd.f32 %v2241, %v2289
    %2291 = vmatmul.bf16.gmra.mxu0 %v664
    %v2292 = vpop.f32.mrf.mxu0
    %v2293 = vadd.f32 %v2244, %v2292
    %v2294 = vpop.f32.mrf.mxu0
    %v2295 = vadd.f32 %v2246, %v2294
    %2296 = vmatmul.bf16.gmra.mxu0 %v671
    %v2297 = vpop.f32.mrf.mxu0
    %v2298 = vadd.f32 %v2249, %v2297
    %v2299 = vpop.f32.mrf.mxu0
    %v2300 = vadd.f32 %v2251, %v2299
    %2301 = vmatmul.bf16.gmra.mxu0 %v678
    %v2302 = vpop.f32.mrf.mxu0
    %v2303 = vadd.f32 %v2254, %v2302
    %v2304 = vpop.f32.mrf.mxu0
    %v2305 = vadd.f32 %v2256, %v2304
    %2306 = vmatmul.bf16.gmra.mxu0 %v685
    %v2307 = vpop.f32.mrf.mxu0
    %v2308 = vadd.f32 %v2259, %v2307
    %v2309 = vpop.f32.mrf.mxu0
    %v2310 = vadd.f32 %v2261, %v2309
    %2311 = vmatmul.bf16.gmra.mxu0 %v692
    %v2312 = vpop.f32.mrf.mxu0
    %v2313 = vadd.f32 %v2264, %v2312
    %v2314 = vpop.f32.mrf.mxu0
    %v2315 = vadd.f32 %v2266, %v2314
    %2316 = vmatmul.bf16.gmra.mxu0 %v699
    %v2317 = vpop.f32.mrf.mxu0
    %v2318 = vadd.f32 %v2269, %v2317
    %v2319 = vpop.f32.mrf.mxu0
    %v2320 = vadd.f32 %v2271, %v2319
    %2321 = vdwg.mxu0
    %2322 = vmatpush.bf16.msra.mxu0 %v1526
    %2323 = vmatpush.bf16.msra.mxu0 %v1522
    %2324 = vmatpush.bf16.msra.mxu0 %v1518
    %2325 = vmatpush.bf16.msra.mxu0 %v1514
    %2326 = vmatpush.bf16.msra.mxu0 %v1510
    %2327 = vmatpush.bf16.msra.mxu0 %v1506
    %2328 = vmatpush.bf16.msra.mxu0 %v1502
    %2329 = vmatpush.bf16.msra.mxu0 %v1498
    %2330 = vmatmul.bf16.gmra.mxu0 %v651
    %v2331 = vpop.f32.mrf.mxu0
    %v2332 = vadd.f32 %v2283, %v2331
    %v2333 = vpop.f32.mrf.mxu0
    %v2334 = vadd.f32 %v2285, %v2333
    %2335 = vmatmul.bf16.gmra.mxu0 %v658
    %v2336 = vpop.f32.mrf.mxu0
    %v2337 = vadd.f32 %v2288, %v2336
    %v2338 = vpop.f32.mrf.mxu0
    %v2339 = vadd.f32 %v2290, %v2338
    %2340 = vmatmul.bf16.gmra.mxu0 %v665
    %v2341 = vpop.f32.mrf.mxu0
    %v2342 = vadd.f32 %v2293, %v2341
    %v2343 = vpop.f32.mrf.mxu0
    %v2344 = vadd.f32 %v2295, %v2343
    %2345 = vmatmul.bf16.gmra.mxu0 %v672
    %v2346 = vpop.f32.mrf.mxu0
    %v2347 = vadd.f32 %v2298, %v2346
    %v2348 = vpop.f32.mrf.mxu0
    %v2349 = vadd.f32 %v2300, %v2348
    %2350 = vmatmul.bf16.gmra.mxu0 %v679
    %v2351 = vpop.f32.mrf.mxu0
    %v2352 = vadd.f32 %v2303, %v2351
    %v2353 = vpop.f32.mrf.mxu0
    %v2354 = vadd.f32 %v2305, %v2353
    %2355 = vmatmul.bf16.gmra.mxu0 %v686
    %v2356 = vpop.f32.mrf.mxu0
    %v2357 = vadd.f32 %v2308, %v2356
    %v2358 = vpop.f32.mrf.mxu0
    %v2359 = vadd.f32 %v2310, %v2358
    %2360 = vmatmul.bf16.gmra.mxu0 %v693
    %v2361 = vpop.f32.mrf.mxu0
    %v2362 = vadd.f32 %v2313, %v2361
    %v2363 = vpop.f32.mrf.mxu0
    %v2364 = vadd.f32 %v2315, %v2363
    %2365 = vmatmul.bf16.gmra.mxu0 %v700
    %v2366 = vpop.f32.mrf.mxu0
    %v2367 = vadd.f32 %v2318, %v2366
    %v2368 = vpop.f32.mrf.mxu0
    %v2369 = vadd.f32 %v2320, %v2368
    %2370 = vdwg.mxu0
    %2371 = vmatpush.bf16.msra.mxu0 %v1558
    %2372 = vmatpush.bf16.msra.mxu0 %v1554
    %2373 = vmatpush.bf16.msra.mxu0 %v1550
    %2374 = vmatpush.bf16.msra.mxu0 %v1546
    %2375 = vmatpush.bf16.msra.mxu0 %v1542
    %2376 = vmatpush.bf16.msra.mxu0 %v1538
    %2377 = vmatpush.bf16.msra.mxu0 %v1534
    %2378 = vmatpush.bf16.msra.mxu0 %v1530
    %2379 = vmatmul.bf16.gmra.mxu0 %v652
    %v2380 = vpop.f32.mrf.mxu0
    %v2381 = vadd.f32 %v2332, %v2380
    %v2382 = vpop.f32.mrf.mxu0
    %v2383 = vadd.f32 %v2334, %v2382
    %2384 = vmatmul.bf16.gmra.mxu0 %v659
    %v2385 = vpop.f32.mrf.mxu0
    %v2386 = vadd.f32 %v2337, %v2385
    %v2387 = vpop.f32.mrf.mxu0
    %v2388 = vadd.f32 %v2339, %v2387
    %2389 = vmatmul.bf16.gmra.mxu0 %v666
    %v2390 = vpop.f32.mrf.mxu0
    %v2391 = vadd.f32 %v2342, %v2390
    %v2392 = vpop.f32.mrf.mxu0
    %v2393 = vadd.f32 %v2344, %v2392
    %2394 = vmatmul.bf16.gmra.mxu0 %v673
    %v2395 = vpop.f32.mrf.mxu0
    %v2396 = vadd.f32 %v2347, %v2395
    %v2397 = vpop.f32.mrf.mxu0
    %v2398 = vadd.f32 %v2349, %v2397
    %2399 = vmatmul.bf16.gmra.mxu0 %v680
    %v2400 = vpop.f32.mrf.mxu0
    %v2401 = vadd.f32 %v2352, %v2400
    %v2402 = vpop.f32.mrf.mxu0
    %v2403 = vadd.f32 %v2354, %v2402
    %2404 = vmatmul.bf16.gmra.mxu0 %v687
    %v2405 = vpop.f32.mrf.mxu0
    %v2406 = vadd.f32 %v2357, %v2405
    %v2407 = vpop.f32.mrf.mxu0
    %v2408 = vadd.f32 %v2359, %v2407
    %2409 = vmatmul.bf16.gmra.mxu0 %v694
    %v2410 = vpop.f32.mrf.mxu0
    %v2411 = vadd.f32 %v2362, %v2410
    %v2412 = vpop.f32.mrf.mxu0
    %v2413 = vadd.f32 %v2364, %v2412
    %2414 = vmatmul.bf16.gmra.mxu0 %v701
    %v2415 = vpop.f32.mrf.mxu0
    %v2416 = vadd.f32 %v2367, %v2415
    %v2417 = vpop.f32.mrf.mxu0
    %v2418 = vadd.f32 %v2369, %v2417
    %2419 = vdwg.mxu0
    %2420 = vmatpush.bf16.msra.mxu0 %v1590
    %2421 = vmatpush.bf16.msra.mxu0 %v1586
    %2422 = vmatpush.bf16.msra.mxu0 %v1582
    %2423 = vmatpush.bf16.msra.mxu0 %v1578
    %2424 = vmatpush.bf16.msra.mxu0 %v1574
    %2425 = vmatpush.bf16.msra.mxu0 %v1570
    %2426 = vmatpush.bf16.msra.mxu0 %v1566
    %2427 = vmatpush.bf16.msra.mxu0 %v1562
    %2428 = vmatmul.bf16.gmra.mxu0 %v653
    %v2429 = vpop.f32.mrf.mxu0
    %v2430 = vadd.f32 %v2381, %v2429
    %v2431 = vpop.f32.mrf.mxu0
    %v2432 = vadd.f32 %v2383, %v2431
    %2433 = vmatmul.bf16.gmra.mxu0 %v660
    %v2434 = vpop.f32.mrf.mxu0
    %v2435 = vadd.f32 %v2386, %v2434
    %v2436 = vpop.f32.mrf.mxu0
    %v2437 = vadd.f32 %v2388, %v2436
    %2438 = vmatmul.bf16.gmra.mxu0 %v667
    %v2439 = vpop.f32.mrf.mxu0
    %v2440 = vadd.f32 %v2391, %v2439
    %v2441 = vpop.f32.mrf.mxu0
    %v2442 = vadd.f32 %v2393, %v2441
    %2443 = vmatmul.bf16.gmra.mxu0 %v674
    %v2444 = vpop.f32.mrf.mxu0
    %v2445 = vadd.f32 %v2396, %v2444
    %v2446 = vpop.f32.mrf.mxu0
    %v2447 = vadd.f32 %v2398, %v2446
    %2448 = vmatmul.bf16.gmra.mxu0 %v681
    %v2449 = vpop.f32.mrf.mxu0
    %v2450 = vadd.f32 %v2401, %v2449
    %v2451 = vpop.f32.mrf.mxu0
    %v2452 = vadd.f32 %v2403, %v2451
    %2453 = vmatmul.bf16.gmra.mxu0 %v688
    %v2454 = vpop.f32.mrf.mxu0
    %v2455 = vadd.f32 %v2406, %v2454
    %v2456 = vpop.f32.mrf.mxu0
    %v2457 = vadd.f32 %v2408, %v2456
    %2458 = vmatmul.bf16.gmra.mxu0 %v695
    %v2459 = vpop.f32.mrf.mxu0
    %v2460 = vadd.f32 %v2411, %v2459
    %v2461 = vpop.f32.mrf.mxu0
    %v2462 = vadd.f32 %v2413, %v2461
    %2463 = vmatmul.bf16.gmra.mxu0 %v702
    %v2464 = vpop.f32.mrf.mxu0
    %v2465 = vadd.f32 %v2416, %v2464
    %v2466 = vpop.f32.mrf.mxu0
    %v2467 = vadd.f32 %v2418, %v2466
    %2468 = vdwg.mxu0
    %2469 = vmatpush.bf16.msra.mxu0 %v1622
    %2470 = vmatpush.bf16.msra.mxu0 %v1618
    %2471 = vmatpush.bf16.msra.mxu0 %v1614
    %2472 = vmatpush.bf16.msra.mxu0 %v1610
    %2473 = vmatpush.bf16.msra.mxu0 %v1606
    %2474 = vmatpush.bf16.msra.mxu0 %v1602
    %2475 = vmatpush.bf16.msra.mxu0 %v1598
    %2476 = vmatpush.bf16.msra.mxu0 %v1594
    %2477 = vmatmul.bf16.gmra.mxu0 %v654
    %v2478 = vpop.f32.mrf.mxu0
    %v2479 = vadd.f32 %v2430, %v2478
    %v2480 = vpop.f32.mrf.mxu0
    %v2481 = vadd.f32 %v2432, %v2480
    %2482 = vmatmul.bf16.gmra.mxu0 %v661
    %v2483 = vpop.f32.mrf.mxu0
    %v2484 = vadd.f32 %v2435, %v2483
    %v2485 = vpop.f32.mrf.mxu0
    %v2486 = vadd.f32 %v2437, %v2485
    %2487 = vmatmul.bf16.gmra.mxu0 %v668
    %v2488 = vpop.f32.mrf.mxu0
    %v2489 = vadd.f32 %v2440, %v2488
    %v2490 = vpop.f32.mrf.mxu0
    %v2491 = vadd.f32 %v2442, %v2490
    %2492 = vmatmul.bf16.gmra.mxu0 %v675
    %v2493 = vpop.f32.mrf.mxu0
    %v2494 = vadd.f32 %v2445, %v2493
    %v2495 = vpop.f32.mrf.mxu0
    %v2496 = vadd.f32 %v2447, %v2495
    %2497 = vmatmul.bf16.gmra.mxu0 %v682
    %v2498 = vpop.f32.mrf.mxu0
    %v2499 = vadd.f32 %v2450, %v2498
    %v2500 = vpop.f32.mrf.mxu0
    %v2501 = vadd.f32 %v2452, %v2500
    %2502 = vmatmul.bf16.gmra.mxu0 %v689
    %v2503 = vpop.f32.mrf.mxu0
    %v2504 = vadd.f32 %v2455, %v2503
    %v2505 = vpop.f32.mrf.mxu0
    %v2506 = vadd.f32 %v2457, %v2505
    %2507 = vmatmul.bf16.gmra.mxu0 %v696
    %v2508 = vpop.f32.mrf.mxu0
    %v2509 = vadd.f32 %v2460, %v2508
    %v2510 = vpop.f32.mrf.mxu0
    %v2511 = vadd.f32 %v2462, %v2510
    %2512 = vmatmul.bf16.gmra.mxu0 %v703
    %v2513 = vpop.f32.mrf.mxu0
    %v2514 = vadd.f32 %v2465, %v2513
    %v2515 = vpop.f32.mrf.mxu0
    %v2516 = vadd.f32 %v2467, %v2515
    %2517 = vdwg.mxu0
    %2518 = vmatpush.bf16.msra.mxu0 %v1654
    %2519 = vmatpush.bf16.msra.mxu0 %v1650
    %2520 = vmatpush.bf16.msra.mxu0 %v1646
    %2521 = vmatpush.bf16.msra.mxu0 %v1642
    %2522 = vmatpush.bf16.msra.mxu0 %v1638
    %2523 = vmatpush.bf16.msra.mxu0 %v1634
    %2524 = vmatpush.bf16.msra.mxu0 %v1630
    %2525 = vmatpush.bf16.msra.mxu0 %v1626
    %2526 = vmatmul.bf16.gmra.mxu0 %v655
    %v2527 = vpop.f32.mrf.mxu0
    %v2528 = vadd.f32 %v2479, %v2527
    %v2529 = vpop.f32.mrf.mxu0
    %v2530 = vadd.f32 %v2481, %v2529
    %2531 = vmatmul.bf16.gmra.mxu0 %v662
    %v2532 = vpop.f32.mrf.mxu0
    %v2533 = vadd.f32 %v2484, %v2532
    %v2534 = vpop.f32.mrf.mxu0
    %v2535 = vadd.f32 %v2486, %v2534
    %2536 = vmatmul.bf16.gmra.mxu0 %v669
    %v2537 = vpop.f32.mrf.mxu0
    %v2538 = vadd.f32 %v2489, %v2537
    %v2539 = vpop.f32.mrf.mxu0
    %v2540 = vadd.f32 %v2491, %v2539
    %2541 = vmatmul.bf16.gmra.mxu0 %v676
    %v2542 = vpop.f32.mrf.mxu0
    %v2543 = vadd.f32 %v2494, %v2542
    %v2544 = vpop.f32.mrf.mxu0
    %v2545 = vadd.f32 %v2496, %v2544
    %2546 = vmatmul.bf16.gmra.mxu0 %v683
    %v2547 = vpop.f32.mrf.mxu0
    %v2548 = vadd.f32 %v2499, %v2547
    %v2549 = vpop.f32.mrf.mxu0
    %v2550 = vadd.f32 %v2501, %v2549
    %2551 = vmatmul.bf16.gmra.mxu0 %v690
    %v2552 = vpop.f32.mrf.mxu0
    %v2553 = vadd.f32 %v2504, %v2552
    %v2554 = vpop.f32.mrf.mxu0
    %v2555 = vadd.f32 %v2506, %v2554
    %2556 = vmatmul.bf16.gmra.mxu0 %v697
    %v2557 = vpop.f32.mrf.mxu0
    %v2558 = vadd.f32 %v2509, %v2557
    %v2559 = vpop.f32.mrf.mxu0
    %v2560 = vadd.f32 %v2511, %v2559
    %2561 = vmatmul.bf16.gmra.mxu0 %v704
    %v2562 = vpop.f32.mrf.mxu0
    %v2563 = vadd.f32 %v2514, %v2562
    %v2564 = vpop.f32.mrf.mxu0
    %v2565 = vadd.f32 %v2516, %v2564
    %2566 = vdwg.mxu0
    %2567 = vmatpush.bf16.msra.mxu0 %v1463
    %2568 = vmatpush.bf16.msra.mxu0 %v1459
    %2569 = vmatpush.bf16.msra.mxu0 %v1455
    %2570 = vmatpush.bf16.msra.mxu0 %v1451
    %2571 = vmatpush.bf16.msra.mxu0 %v1447
    %2572 = vmatpush.bf16.msra.mxu0 %v1443
    %2573 = vmatpush.bf16.msra.mxu0 %v1439
    %2574 = vmatpush.bf16.msra.mxu0 %v1435
    %2575 = vmatmul.bf16.gmra.mxu0 %v649
    %v2576 = vpop.f32.mrf.mxu0
    %v2577 = vadd.f32 %v467, %v2576
    %v2578 = vpop.f32.mrf.mxu0
    %v2579 = vadd.f32 %v467, %v2578
    %2580 = vmatmul.bf16.gmra.mxu0 %v656
    %v2581 = vpop.f32.mrf.mxu0
    %v2582 = vadd.f32 %v467, %v2581
    %v2583 = vpop.f32.mrf.mxu0
    %v2584 = vadd.f32 %v467, %v2583
    %2585 = vmatmul.bf16.gmra.mxu0 %v663
    %v2586 = vpop.f32.mrf.mxu0
    %v2587 = vadd.f32 %v467, %v2586
    %v2588 = vpop.f32.mrf.mxu0
    %v2589 = vadd.f32 %v467, %v2588
    %2590 = vmatmul.bf16.gmra.mxu0 %v670
    %v2591 = vpop.f32.mrf.mxu0
    %v2592 = vadd.f32 %v467, %v2591
    %v2593 = vpop.f32.mrf.mxu0
    %v2594 = vadd.f32 %v467, %v2593
    %2595 = vmatmul.bf16.gmra.mxu0 %v677
    %v2596 = vpop.f32.mrf.mxu0
    %v2597 = vadd.f32 %v467, %v2596
    %v2598 = vpop.f32.mrf.mxu0
    %v2599 = vadd.f32 %v467, %v2598
    %2600 = vmatmul.bf16.gmra.mxu0 %v684
    %v2601 = vpop.f32.mrf.mxu0
    %v2602 = vadd.f32 %v467, %v2601
    %v2603 = vpop.f32.mrf.mxu0
    %v2604 = vadd.f32 %v467, %v2603
    %2605 = vmatmul.bf16.gmra.mxu0 %v691
    %v2606 = vpop.f32.mrf.mxu0
    %v2607 = vadd.f32 %v467, %v2606
    %v2608 = vpop.f32.mrf.mxu0
    %v2609 = vadd.f32 %v467, %v2608
    %2610 = vmatmul.bf16.gmra.mxu0 %v698
    %v2611 = vpop.f32.mrf.mxu0
    %v2612 = vadd.f32 %v467, %v2611
    %v2613 = vpop.f32.mrf.mxu0
    %v2614 = vadd.f32 %v467, %v2613
    %2615 = vdwg.mxu0
    %2616 = vmatpush.bf16.msra.mxu0 %v1495
    %2617 = vmatpush.bf16.msra.mxu0 %v1491
    %2618 = vmatpush.bf16.msra.mxu0 %v1487
    %2619 = vmatpush.bf16.msra.mxu0 %v1483
    %2620 = vmatpush.bf16.msra.mxu0 %v1479
    %2621 = vmatpush.bf16.msra.mxu0 %v1475
    %2622 = vmatpush.bf16.msra.mxu0 %v1471
    %2623 = vmatpush.bf16.msra.mxu0 %v1467
    %2624 = vmatmul.bf16.gmra.mxu0 %v650
    %v2625 = vpop.f32.mrf.mxu0
    %v2626 = vadd.f32 %v2577, %v2625
    %v2627 = vpop.f32.mrf.mxu0
    %v2628 = vadd.f32 %v2579, %v2627
    %2629 = vmatmul.bf16.gmra.mxu0 %v657
    %v2630 = vpop.f32.mrf.mxu0
    %v2631 = vadd.f32 %v2582, %v2630
    %v2632 = vpop.f32.mrf.mxu0
    %v2633 = vadd.f32 %v2584, %v2632
    %2634 = vmatmul.bf16.gmra.mxu0 %v664
    %v2635 = vpop.f32.mrf.mxu0
    %v2636 = vadd.f32 %v2587, %v2635
    %v2637 = vpop.f32.mrf.mxu0
    %v2638 = vadd.f32 %v2589, %v2637
    %2639 = vmatmul.bf16.gmra.mxu0 %v671
    %v2640 = vpop.f32.mrf.mxu0
    %v2641 = vadd.f32 %v2592, %v2640
    %v2642 = vpop.f32.mrf.mxu0
    %v2643 = vadd.f32 %v2594, %v2642
    %2644 = vmatmul.bf16.gmra.mxu0 %v678
    %v2645 = vpop.f32.mrf.mxu0
    %v2646 = vadd.f32 %v2597, %v2645
    %v2647 = vpop.f32.mrf.mxu0
    %v2648 = vadd.f32 %v2599, %v2647
    %2649 = vmatmul.bf16.gmra.mxu0 %v685
    %v2650 = vpop.f32.mrf.mxu0
    %v2651 = vadd.f32 %v2602, %v2650
    %v2652 = vpop.f32.mrf.mxu0
    %v2653 = vadd.f32 %v2604, %v2652
    %2654 = vmatmul.bf16.gmra.mxu0 %v692
    %v2655 = vpop.f32.mrf.mxu0
    %v2656 = vadd.f32 %v2607, %v2655
    %v2657 = vpop.f32.mrf.mxu0
    %v2658 = vadd.f32 %v2609, %v2657
    %2659 = vmatmul.bf16.gmra.mxu0 %v699
    %v2660 = vpop.f32.mrf.mxu0
    %v2661 = vadd.f32 %v2612, %v2660
    %v2662 = vpop.f32.mrf.mxu0
    %v2663 = vadd.f32 %v2614, %v2662
    %2664 = vdwg.mxu0
    %2665 = vmatpush.bf16.msra.mxu0 %v1527
    %2666 = vmatpush.bf16.msra.mxu0 %v1523
    %2667 = vmatpush.bf16.msra.mxu0 %v1519
    %2668 = vmatpush.bf16.msra.mxu0 %v1515
    %2669 = vmatpush.bf16.msra.mxu0 %v1511
    %2670 = vmatpush.bf16.msra.mxu0 %v1507
    %2671 = vmatpush.bf16.msra.mxu0 %v1503
    %2672 = vmatpush.bf16.msra.mxu0 %v1499
    %2673 = vmatmul.bf16.gmra.mxu0 %v651
    %v2674 = vpop.f32.mrf.mxu0
    %v2675 = vadd.f32 %v2626, %v2674
    %v2676 = vpop.f32.mrf.mxu0
    %v2677 = vadd.f32 %v2628, %v2676
    %2678 = vmatmul.bf16.gmra.mxu0 %v658
    %v2679 = vpop.f32.mrf.mxu0
    %v2680 = vadd.f32 %v2631, %v2679
    %v2681 = vpop.f32.mrf.mxu0
    %v2682 = vadd.f32 %v2633, %v2681
    %2683 = vmatmul.bf16.gmra.mxu0 %v665
    %v2684 = vpop.f32.mrf.mxu0
    %v2685 = vadd.f32 %v2636, %v2684
    %v2686 = vpop.f32.mrf.mxu0
    %v2687 = vadd.f32 %v2638, %v2686
    %2688 = vmatmul.bf16.gmra.mxu0 %v672
    %v2689 = vpop.f32.mrf.mxu0
    %v2690 = vadd.f32 %v2641, %v2689
    %v2691 = vpop.f32.mrf.mxu0
    %v2692 = vadd.f32 %v2643, %v2691
    %2693 = vmatmul.bf16.gmra.mxu0 %v679
    %v2694 = vpop.f32.mrf.mxu0
    %v2695 = vadd.f32 %v2646, %v2694
    %v2696 = vpop.f32.mrf.mxu0
    %v2697 = vadd.f32 %v2648, %v2696
    %2698 = vmatmul.bf16.gmra.mxu0 %v686
    %v2699 = vpop.f32.mrf.mxu0
    %v2700 = vadd.f32 %v2651, %v2699
    %v2701 = vpop.f32.mrf.mxu0
    %v2702 = vadd.f32 %v2653, %v2701
    %2703 = vmatmul.bf16.gmra.mxu0 %v693
    %v2704 = vpop.f32.mrf.mxu0
    %v2705 = vadd.f32 %v2656, %v2704
    %v2706 = vpop.f32.mrf.mxu0
    %v2707 = vadd.f32 %v2658, %v2706
    %2708 = vmatmul.bf16.gmra.mxu0 %v700
    %v2709 = vpop.f32.mrf.mxu0
    %v2710 = vadd.f32 %v2661, %v2709
    %v2711 = vpop.f32.mrf.mxu0
    %v2712 = vadd.f32 %v2663, %v2711
    %2713 = vdwg.mxu0
    %2714 = vmatpush.bf16.msra.mxu0 %v1559
    %2715 = vmatpush.bf16.msra.mxu0 %v1555
    %2716 = vmatpush.bf16.msra.mxu0 %v1551
    %2717 = vmatpush.bf16.msra.mxu0 %v1547
    %2718 = vmatpush.bf16.msra.mxu0 %v1543
    %2719 = vmatpush.bf16.msra.mxu0 %v1539
    %2720 = vmatpush.bf16.msra.mxu0 %v1535
    %2721 = vmatpush.bf16.msra.mxu0 %v1531
    %2722 = vmatmul.bf16.gmra.mxu0 %v652
    %v2723 = vpop.f32.mrf.mxu0
    %v2724 = vadd.f32 %v2675, %v2723
    %v2725 = vpop.f32.mrf.mxu0
    %v2726 = vadd.f32 %v2677, %v2725
    %2727 = vmatmul.bf16.gmra.mxu0 %v659
    %v2728 = vpop.f32.mrf.mxu0
    %v2729 = vadd.f32 %v2680, %v2728
    %v2730 = vpop.f32.mrf.mxu0
    %v2731 = vadd.f32 %v2682, %v2730
    %2732 = vmatmul.bf16.gmra.mxu0 %v666
    %v2733 = vpop.f32.mrf.mxu0
    %v2734 = vadd.f32 %v2685, %v2733
    %v2735 = vpop.f32.mrf.mxu0
    %v2736 = vadd.f32 %v2687, %v2735
    %2737 = vmatmul.bf16.gmra.mxu0 %v673
    %v2738 = vpop.f32.mrf.mxu0
    %v2739 = vadd.f32 %v2690, %v2738
    %v2740 = vpop.f32.mrf.mxu0
    %v2741 = vadd.f32 %v2692, %v2740
    %2742 = vmatmul.bf16.gmra.mxu0 %v680
    %v2743 = vpop.f32.mrf.mxu0
    %v2744 = vadd.f32 %v2695, %v2743
    %v2745 = vpop.f32.mrf.mxu0
    %v2746 = vadd.f32 %v2697, %v2745
    %2747 = vmatmul.bf16.gmra.mxu0 %v687
    %v2748 = vpop.f32.mrf.mxu0
    %v2749 = vadd.f32 %v2700, %v2748
    %v2750 = vpop.f32.mrf.mxu0
    %v2751 = vadd.f32 %v2702, %v2750
    %2752 = vmatmul.bf16.gmra.mxu0 %v694
    %v2753 = vpop.f32.mrf.mxu0
    %v2754 = vadd.f32 %v2705, %v2753
    %v2755 = vpop.f32.mrf.mxu0
    %v2756 = vadd.f32 %v2707, %v2755
    %2757 = vmatmul.bf16.gmra.mxu0 %v701
    %v2758 = vpop.f32.mrf.mxu0
    %v2759 = vadd.f32 %v2710, %v2758
    %v2760 = vpop.f32.mrf.mxu0
    %v2761 = vadd.f32 %v2712, %v2760
    %2762 = vdwg.mxu0
    %2763 = vmatpush.bf16.msra.mxu0 %v1591
    %2764 = vmatpush.bf16.msra.mxu0 %v1587
    %2765 = vmatpush.bf16.msra.mxu0 %v1583
    %2766 = vmatpush.bf16.msra.mxu0 %v1579
    %2767 = vmatpush.bf16.msra.mxu0 %v1575
    %2768 = vmatpush.bf16.msra.mxu0 %v1571
    %2769 = vmatpush.bf16.msra.mxu0 %v1567
    %2770 = vmatpush.bf16.msra.mxu0 %v1563
    %2771 = vmatmul.bf16.gmra.mxu0 %v653
    %v2772 = vpop.f32.mrf.mxu0
    %v2773 = vadd.f32 %v2724, %v2772
    %v2774 = vpop.f32.mrf.mxu0
    %v2775 = vadd.f32 %v2726, %v2774
    %2776 = vmatmul.bf16.gmra.mxu0 %v660
    %v2777 = vpop.f32.mrf.mxu0
    %v2778 = vadd.f32 %v2729, %v2777
    %v2779 = vpop.f32.mrf.mxu0
    %v2780 = vadd.f32 %v2731, %v2779
    %2781 = vmatmul.bf16.gmra.mxu0 %v667
    %v2782 = vpop.f32.mrf.mxu0
    %v2783 = vadd.f32 %v2734, %v2782
    %v2784 = vpop.f32.mrf.mxu0
    %v2785 = vadd.f32 %v2736, %v2784
    %2786 = vmatmul.bf16.gmra.mxu0 %v674
    %v2787 = vpop.f32.mrf.mxu0
    %v2788 = vadd.f32 %v2739, %v2787
    %v2789 = vpop.f32.mrf.mxu0
    %v2790 = vadd.f32 %v2741, %v2789
    %2791 = vmatmul.bf16.gmra.mxu0 %v681
    %v2792 = vpop.f32.mrf.mxu0
    %v2793 = vadd.f32 %v2744, %v2792
    %v2794 = vpop.f32.mrf.mxu0
    %v2795 = vadd.f32 %v2746, %v2794
    %2796 = vmatmul.bf16.gmra.mxu0 %v688
    %v2797 = vpop.f32.mrf.mxu0
    %v2798 = vadd.f32 %v2749, %v2797
    %v2799 = vpop.f32.mrf.mxu0
    %v2800 = vadd.f32 %v2751, %v2799
    %2801 = vmatmul.bf16.gmra.mxu0 %v695
    %v2802 = vpop.f32.mrf.mxu0
    %v2803 = vadd.f32 %v2754, %v2802
    %v2804 = vpop.f32.mrf.mxu0
    %v2805 = vadd.f32 %v2756, %v2804
    %2806 = vmatmul.bf16.gmra.mxu0 %v702
    %v2807 = vpop.f32.mrf.mxu0
    %v2808 = vadd.f32 %v2759, %v2807
    %v2809 = vpop.f32.mrf.mxu0
    %v2810 = vadd.f32 %v2761, %v2809
    %2811 = vdwg.mxu0
    %2812 = vmatpush.bf16.msra.mxu0 %v1623
    %2813 = vmatpush.bf16.msra.mxu0 %v1619
    %2814 = vmatpush.bf16.msra.mxu0 %v1615
    %2815 = vmatpush.bf16.msra.mxu0 %v1611
    %2816 = vmatpush.bf16.msra.mxu0 %v1607
    %2817 = vmatpush.bf16.msra.mxu0 %v1603
    %2818 = vmatpush.bf16.msra.mxu0 %v1599
    %2819 = vmatpush.bf16.msra.mxu0 %v1595
    %2820 = vmatmul.bf16.gmra.mxu0 %v654
    %v2821 = vpop.f32.mrf.mxu0
    %v2822 = vadd.f32 %v2773, %v2821
    %v2823 = vpop.f32.mrf.mxu0
    %v2824 = vadd.f32 %v2775, %v2823
    %2825 = vmatmul.bf16.gmra.mxu0 %v661
    %v2826 = vpop.f32.mrf.mxu0
    %v2827 = vadd.f32 %v2778, %v2826
    %v2828 = vpop.f32.mrf.mxu0
    %v2829 = vadd.f32 %v2780, %v2828
    %2830 = vmatmul.bf16.gmra.mxu0 %v668
    %v2831 = vpop.f32.mrf.mxu0
    %v2832 = vadd.f32 %v2783, %v2831
    %v2833 = vpop.f32.mrf.mxu0
    %v2834 = vadd.f32 %v2785, %v2833
    %2835 = vmatmul.bf16.gmra.mxu0 %v675
    %v2836 = vpop.f32.mrf.mxu0
    %v2837 = vadd.f32 %v2788, %v2836
    %v2838 = vpop.f32.mrf.mxu0
    %v2839 = vadd.f32 %v2790, %v2838
    %2840 = vmatmul.bf16.gmra.mxu0 %v682
    %v2841 = vpop.f32.mrf.mxu0
    %v2842 = vadd.f32 %v2793, %v2841
    %v2843 = vpop.f32.mrf.mxu0
    %v2844 = vadd.f32 %v2795, %v2843
    %2845 = vmatmul.bf16.gmra.mxu0 %v689
    %v2846 = vpop.f32.mrf.mxu0
    %v2847 = vadd.f32 %v2798, %v2846
    %v2848 = vpop.f32.mrf.mxu0
    %v2849 = vadd.f32 %v2800, %v2848
    %2850 = vmatmul.bf16.gmra.mxu0 %v696
    %v2851 = vpop.f32.mrf.mxu0
    %v2852 = vadd.f32 %v2803, %v2851
    %v2853 = vpop.f32.mrf.mxu0
    %v2854 = vadd.f32 %v2805, %v2853
    %2855 = vmatmul.bf16.gmra.mxu0 %v703
    %v2856 = vpop.f32.mrf.mxu0
    %v2857 = vadd.f32 %v2808, %v2856
    %v2858 = vpop.f32.mrf.mxu0
    %v2859 = vadd.f32 %v2810, %v2858
    %2860 = vdwg.mxu0
    %2861 = vmatpush.bf16.msra.mxu0 %v1655
    %2862 = vmatpush.bf16.msra.mxu0 %v1651
    %2863 = vmatpush.bf16.msra.mxu0 %v1647
    %2864 = vmatpush.bf16.msra.mxu0 %v1643
    %2865 = vmatpush.bf16.msra.mxu0 %v1639
    %2866 = vmatpush.bf16.msra.mxu0 %v1635
    %2867 = vmatpush.bf16.msra.mxu0 %v1631
    %2868 = vmatpush.bf16.msra.mxu0 %v1627
    %2869 = vmatmul.bf16.gmra.mxu0 %v655
    %v2870 = vpop.f32.mrf.mxu0
    %v2871 = vadd.f32 %v2822, %v2870
    %v2872 = vpop.f32.mrf.mxu0
    %v2873 = vadd.f32 %v2824, %v2872
    %2874 = vmatmul.bf16.gmra.mxu0 %v662
    %v2875 = vpop.f32.mrf.mxu0
    %v2876 = vadd.f32 %v2827, %v2875
    %v2877 = vpop.f32.mrf.mxu0
    %v2878 = vadd.f32 %v2829, %v2877
    %2879 = vmatmul.bf16.gmra.mxu0 %v669
    %v2880 = vpop.f32.mrf.mxu0
    %v2881 = vadd.f32 %v2832, %v2880
    %v2882 = vpop.f32.mrf.mxu0
    %v2883 = vadd.f32 %v2834, %v2882
    %2884 = vmatmul.bf16.gmra.mxu0 %v676
    %v2885 = vpop.f32.mrf.mxu0
    %v2886 = vadd.f32 %v2837, %v2885
    %v2887 = vpop.f32.mrf.mxu0
    %v2888 = vadd.f32 %v2839, %v2887
    %2889 = vmatmul.bf16.gmra.mxu0 %v683
    %v2890 = vpop.f32.mrf.mxu0
    %v2891 = vadd.f32 %v2842, %v2890
    %v2892 = vpop.f32.mrf.mxu0
    %v2893 = vadd.f32 %v2844, %v2892
    %2894 = vmatmul.bf16.gmra.mxu0 %v690
    %v2895 = vpop.f32.mrf.mxu0
    %v2896 = vadd.f32 %v2847, %v2895
    %v2897 = vpop.f32.mrf.mxu0
    %v2898 = vadd.f32 %v2849, %v2897
    %2899 = vmatmul.bf16.gmra.mxu0 %v697
    %v2900 = vpop.f32.mrf.mxu0
    %v2901 = vadd.f32 %v2852, %v2900
    %v2902 = vpop.f32.mrf.mxu0
    %v2903 = vadd.f32 %v2854, %v2902
    %2904 = vmatmul.bf16.gmra.mxu0 %v704
    %v2905 = vpop.f32.mrf.mxu0
    %v2906 = vadd.f32 %v2857, %v2905
    %v2907 = vpop.f32.mrf.mxu0
    %v2908 = vadd.f32 %v2859, %v2907
    %2909 = vdwg.mxu0
    %2910 = vmatpush.bf16.msra.mxu0 %v1464
    %2911 = vmatpush.bf16.msra.mxu0 %v1460
    %2912 = vmatpush.bf16.msra.mxu0 %v1456
    %2913 = vmatpush.bf16.msra.mxu0 %v1452
    %2914 = vmatpush.bf16.msra.mxu0 %v1448
    %2915 = vmatpush.bf16.msra.mxu0 %v1444
    %2916 = vmatpush.bf16.msra.mxu0 %v1440
    %2917 = vmatpush.bf16.msra.mxu0 %v1436
    %2918 = vmatmul.bf16.gmra.mxu0 %v649
    %v2919 = vpop.f32.mrf.mxu0
    %v2920 = vadd.f32 %v468, %v2919
    %v2921 = vpop.f32.mrf.mxu0
    %v2922 = vadd.f32 %v468, %v2921
    %2923 = vmatmul.bf16.gmra.mxu0 %v656
    %v2924 = vpop.f32.mrf.mxu0
    %v2925 = vadd.f32 %v468, %v2924
    %v2926 = vpop.f32.mrf.mxu0
    %v2927 = vadd.f32 %v468, %v2926
    %2928 = vmatmul.bf16.gmra.mxu0 %v663
    %v2929 = vpop.f32.mrf.mxu0
    %v2930 = vadd.f32 %v468, %v2929
    %v2931 = vpop.f32.mrf.mxu0
    %v2932 = vadd.f32 %v468, %v2931
    %2933 = vmatmul.bf16.gmra.mxu0 %v670
    %v2934 = vpop.f32.mrf.mxu0
    %v2935 = vadd.f32 %v468, %v2934
    %v2936 = vpop.f32.mrf.mxu0
    %v2937 = vadd.f32 %v468, %v2936
    %2938 = vmatmul.bf16.gmra.mxu0 %v677
    %v2939 = vpop.f32.mrf.mxu0
    %v2940 = vadd.f32 %v468, %v2939
    %v2941 = vpop.f32.mrf.mxu0
    %v2942 = vadd.f32 %v468, %v2941
    %2943 = vmatmul.bf16.gmra.mxu0 %v684
    %v2944 = vpop.f32.mrf.mxu0
    %v2945 = vadd.f32 %v468, %v2944
    %v2946 = vpop.f32.mrf.mxu0
    %v2947 = vadd.f32 %v468, %v2946
    %2948 = vmatmul.bf16.gmra.mxu0 %v691
    %v2949 = vpop.f32.mrf.mxu0
    %v2950 = vadd.f32 %v468, %v2949
    %v2951 = vpop.f32.mrf.mxu0
    %v2952 = vadd.f32 %v468, %v2951
    %2953 = vmatmul.bf16.gmra.mxu0 %v698
    %v2954 = vpop.f32.mrf.mxu0
    %v2955 = vadd.f32 %v468, %v2954
    %v2956 = vpop.f32.mrf.mxu0
    %v2957 = vadd.f32 %v468, %v2956
    %2958 = vdwg.mxu0
    %2959 = vmatpush.bf16.msra.mxu0 %v1496
    %2960 = vmatpush.bf16.msra.mxu0 %v1492
    %2961 = vmatpush.bf16.msra.mxu0 %v1488
    %2962 = vmatpush.bf16.msra.mxu0 %v1484
    %2963 = vmatpush.bf16.msra.mxu0 %v1480
    %2964 = vmatpush.bf16.msra.mxu0 %v1476
    %2965 = vmatpush.bf16.msra.mxu0 %v1472
    %2966 = vmatpush.bf16.msra.mxu0 %v1468
    %2967 = vmatmul.bf16.gmra.mxu0 %v650
    %v2968 = vpop.f32.mrf.mxu0
    %v2969 = vadd.f32 %v2920, %v2968
    %v2970 = vpop.f32.mrf.mxu0
    %v2971 = vadd.f32 %v2922, %v2970
    %2972 = vmatmul.bf16.gmra.mxu0 %v657
    %v2973 = vpop.f32.mrf.mxu0
    %v2974 = vadd.f32 %v2925, %v2973
    %v2975 = vpop.f32.mrf.mxu0
    %v2976 = vadd.f32 %v2927, %v2975
    %2977 = vmatmul.bf16.gmra.mxu0 %v664
    %v2978 = vpop.f32.mrf.mxu0
    %v2979 = vadd.f32 %v2930, %v2978
    %v2980 = vpop.f32.mrf.mxu0
    %v2981 = vadd.f32 %v2932, %v2980
    %2982 = vmatmul.bf16.gmra.mxu0 %v671
    %v2983 = vpop.f32.mrf.mxu0
    %v2984 = vadd.f32 %v2935, %v2983
    %v2985 = vpop.f32.mrf.mxu0
    %v2986 = vadd.f32 %v2937, %v2985
    %2987 = vmatmul.bf16.gmra.mxu0 %v678
    %v2988 = vpop.f32.mrf.mxu0
    %v2989 = vadd.f32 %v2940, %v2988
    %v2990 = vpop.f32.mrf.mxu0
    %v2991 = vadd.f32 %v2942, %v2990
    %2992 = vmatmul.bf16.gmra.mxu0 %v685
    %v2993 = vpop.f32.mrf.mxu0
    %v2994 = vadd.f32 %v2945, %v2993
    %v2995 = vpop.f32.mrf.mxu0
    %v2996 = vadd.f32 %v2947, %v2995
    %2997 = vmatmul.bf16.gmra.mxu0 %v692
    %v2998 = vpop.f32.mrf.mxu0
    %v2999 = vadd.f32 %v2950, %v2998
    %v3000 = vpop.f32.mrf.mxu0
    %v3001 = vadd.f32 %v2952, %v3000
    %3002 = vmatmul.bf16.gmra.mxu0 %v699
    %v3003 = vpop.f32.mrf.mxu0
    %v3004 = vadd.f32 %v2955, %v3003
    %v3005 = vpop.f32.mrf.mxu0
    %v3006 = vadd.f32 %v2957, %v3005
    %3007 = vdwg.mxu0
    %3008 = vmatpush.bf16.msra.mxu0 %v1528
    %3009 = vmatpush.bf16.msra.mxu0 %v1524
    %3010 = vmatpush.bf16.msra.mxu0 %v1520
    %3011 = vmatpush.bf16.msra.mxu0 %v1516
    %3012 = vmatpush.bf16.msra.mxu0 %v1512
    %3013 = vmatpush.bf16.msra.mxu0 %v1508
    %3014 = vmatpush.bf16.msra.mxu0 %v1504
    %3015 = vmatpush.bf16.msra.mxu0 %v1500
    %3016 = vmatmul.bf16.gmra.mxu0 %v651
    %v3017 = vpop.f32.mrf.mxu0
    %v3018 = vadd.f32 %v2969, %v3017
    %v3019 = vpop.f32.mrf.mxu0
    %v3020 = vadd.f32 %v2971, %v3019
    %3021 = vmatmul.bf16.gmra.mxu0 %v658
    %v3022 = vpop.f32.mrf.mxu0
    %v3023 = vadd.f32 %v2974, %v3022
    %v3024 = vpop.f32.mrf.mxu0
    %v3025 = vadd.f32 %v2976, %v3024
    %3026 = vmatmul.bf16.gmra.mxu0 %v665
    %v3027 = vpop.f32.mrf.mxu0
    %v3028 = vadd.f32 %v2979, %v3027
    %v3029 = vpop.f32.mrf.mxu0
    %v3030 = vadd.f32 %v2981, %v3029
    %3031 = vmatmul.bf16.gmra.mxu0 %v672
    %v3032 = vpop.f32.mrf.mxu0
    %v3033 = vadd.f32 %v2984, %v3032
    %v3034 = vpop.f32.mrf.mxu0
    %v3035 = vadd.f32 %v2986, %v3034
    %3036 = vmatmul.bf16.gmra.mxu0 %v679
    %v3037 = vpop.f32.mrf.mxu0
    %v3038 = vadd.f32 %v2989, %v3037
    %v3039 = vpop.f32.mrf.mxu0
    %v3040 = vadd.f32 %v2991, %v3039
    %3041 = vmatmul.bf16.gmra.mxu0 %v686
    %v3042 = vpop.f32.mrf.mxu0
    %v3043 = vadd.f32 %v2994, %v3042
    %v3044 = vpop.f32.mrf.mxu0
    %v3045 = vadd.f32 %v2996, %v3044
    %3046 = vmatmul.bf16.gmra.mxu0 %v693
    %v3047 = vpop.f32.mrf.mxu0
    %v3048 = vadd.f32 %v2999, %v3047
    %v3049 = vpop.f32.mrf.mxu0
    %v3050 = vadd.f32 %v3001, %v3049
    %3051 = vmatmul.bf16.gmra.mxu0 %v700
    %v3052 = vpop.f32.mrf.mxu0
    %v3053 = vadd.f32 %v3004, %v3052
    %v3054 = vpop.f32.mrf.mxu0
    %v3055 = vadd.f32 %v3006, %v3054
    %3056 = vdwg.mxu0
    %3057 = vmatpush.bf16.msra.mxu0 %v1560
    %3058 = vmatpush.bf16.msra.mxu0 %v1556
    %3059 = vmatpush.bf16.msra.mxu0 %v1552
    %3060 = vmatpush.bf16.msra.mxu0 %v1548
    %3061 = vmatpush.bf16.msra.mxu0 %v1544
    %3062 = vmatpush.bf16.msra.mxu0 %v1540
    %3063 = vmatpush.bf16.msra.mxu0 %v1536
    %3064 = vmatpush.bf16.msra.mxu0 %v1532
    %3065 = vmatmul.bf16.gmra.mxu0 %v652
    %v3066 = vpop.f32.mrf.mxu0
    %v3067 = vadd.f32 %v3018, %v3066
    %v3068 = vpop.f32.mrf.mxu0
    %v3069 = vadd.f32 %v3020, %v3068
    %3070 = vmatmul.bf16.gmra.mxu0 %v659
    %v3071 = vpop.f32.mrf.mxu0
    %v3072 = vadd.f32 %v3023, %v3071
    %v3073 = vpop.f32.mrf.mxu0
    %v3074 = vadd.f32 %v3025, %v3073
    %3075 = vmatmul.bf16.gmra.mxu0 %v666
    %v3076 = vpop.f32.mrf.mxu0
    %v3077 = vadd.f32 %v3028, %v3076
    %v3078 = vpop.f32.mrf.mxu0
    %v3079 = vadd.f32 %v3030, %v3078
    %3080 = vmatmul.bf16.gmra.mxu0 %v673
    %v3081 = vpop.f32.mrf.mxu0
    %v3082 = vadd.f32 %v3033, %v3081
    %v3083 = vpop.f32.mrf.mxu0
    %v3084 = vadd.f32 %v3035, %v3083
    %3085 = vmatmul.bf16.gmra.mxu0 %v680
    %v3086 = vpop.f32.mrf.mxu0
    %v3087 = vadd.f32 %v3038, %v3086
    %v3088 = vpop.f32.mrf.mxu0
    %v3089 = vadd.f32 %v3040, %v3088
    %3090 = vmatmul.bf16.gmra.mxu0 %v687
    %v3091 = vpop.f32.mrf.mxu0
    %v3092 = vadd.f32 %v3043, %v3091
    %v3093 = vpop.f32.mrf.mxu0
    %v3094 = vadd.f32 %v3045, %v3093
    %3095 = vmatmul.bf16.gmra.mxu0 %v694
    %v3096 = vpop.f32.mrf.mxu0
    %v3097 = vadd.f32 %v3048, %v3096
    %v3098 = vpop.f32.mrf.mxu0
    %v3099 = vadd.f32 %v3050, %v3098
    %3100 = vmatmul.bf16.gmra.mxu0 %v701
    %v3101 = vpop.f32.mrf.mxu0
    %v3102 = vadd.f32 %v3053, %v3101
    %v3103 = vpop.f32.mrf.mxu0
    %v3104 = vadd.f32 %v3055, %v3103
    %3105 = vdwg.mxu0
    %3106 = vmatpush.bf16.msra.mxu0 %v1592
    %3107 = vmatpush.bf16.msra.mxu0 %v1588
    %3108 = vmatpush.bf16.msra.mxu0 %v1584
    %3109 = vmatpush.bf16.msra.mxu0 %v1580
    %3110 = vmatpush.bf16.msra.mxu0 %v1576
    %3111 = vmatpush.bf16.msra.mxu0 %v1572
    %3112 = vmatpush.bf16.msra.mxu0 %v1568
    %3113 = vmatpush.bf16.msra.mxu0 %v1564
    %3114 = vmatmul.bf16.gmra.mxu0 %v653
    %v3115 = vpop.f32.mrf.mxu0
    %v3116 = vadd.f32 %v3067, %v3115
    %v3117 = vpop.f32.mrf.mxu0
    %v3118 = vadd.f32 %v3069, %v3117
    %3119 = vmatmul.bf16.gmra.mxu0 %v660
    %v3120 = vpop.f32.mrf.mxu0
    %v3121 = vadd.f32 %v3072, %v3120
    %v3122 = vpop.f32.mrf.mxu0
    %v3123 = vadd.f32 %v3074, %v3122
    %3124 = vmatmul.bf16.gmra.mxu0 %v667
    %v3125 = vpop.f32.mrf.mxu0
    %v3126 = vadd.f32 %v3077, %v3125
    %v3127 = vpop.f32.mrf.mxu0
    %v3128 = vadd.f32 %v3079, %v3127
    %3129 = vmatmul.bf16.gmra.mxu0 %v674
    %v3130 = vpop.f32.mrf.mxu0
    %v3131 = vadd.f32 %v3082, %v3130
    %v3132 = vpop.f32.mrf.mxu0
    %v3133 = vadd.f32 %v3084, %v3132
    %3134 = vmatmul.bf16.gmra.mxu0 %v681
    %v3135 = vpop.f32.mrf.mxu0
    %v3136 = vadd.f32 %v3087, %v3135
    %v3137 = vpop.f32.mrf.mxu0
    %v3138 = vadd.f32 %v3089, %v3137
    %3139 = vmatmul.bf16.gmra.mxu0 %v688
    %v3140 = vpop.f32.mrf.mxu0
    %v3141 = vadd.f32 %v3092, %v3140
    %v3142 = vpop.f32.mrf.mxu0
    %v3143 = vadd.f32 %v3094, %v3142
    %3144 = vmatmul.bf16.gmra.mxu0 %v695
    %v3145 = vpop.f32.mrf.mxu0
    %v3146 = vadd.f32 %v3097, %v3145
    %v3147 = vpop.f32.mrf.mxu0
    %v3148 = vadd.f32 %v3099, %v3147
    %3149 = vmatmul.bf16.gmra.mxu0 %v702
    %v3150 = vpop.f32.mrf.mxu0
    %v3151 = vadd.f32 %v3102, %v3150
    %v3152 = vpop.f32.mrf.mxu0
    %v3153 = vadd.f32 %v3104, %v3152
    %3154 = vdwg.mxu0
    %3155 = vmatpush.bf16.msra.mxu0 %v1624
    %3156 = vmatpush.bf16.msra.mxu0 %v1620
    %3157 = vmatpush.bf16.msra.mxu0 %v1616
    %3158 = vmatpush.bf16.msra.mxu0 %v1612
    %3159 = vmatpush.bf16.msra.mxu0 %v1608
    %3160 = vmatpush.bf16.msra.mxu0 %v1604
    %3161 = vmatpush.bf16.msra.mxu0 %v1600
    %3162 = vmatpush.bf16.msra.mxu0 %v1596
    %3163 = vmatmul.bf16.gmra.mxu0 %v654
    %v3164 = vpop.f32.mrf.mxu0
    %v3165 = vadd.f32 %v3116, %v3164
    %v3166 = vpop.f32.mrf.mxu0
    %v3167 = vadd.f32 %v3118, %v3166
    %3168 = vmatmul.bf16.gmra.mxu0 %v661
    %v3169 = vpop.f32.mrf.mxu0
    %v3170 = vadd.f32 %v3121, %v3169
    %v3171 = vpop.f32.mrf.mxu0
    %v3172 = vadd.f32 %v3123, %v3171
    %3173 = vmatmul.bf16.gmra.mxu0 %v668
    %v3174 = vpop.f32.mrf.mxu0
    %v3175 = vadd.f32 %v3126, %v3174
    %v3176 = vpop.f32.mrf.mxu0
    %v3177 = vadd.f32 %v3128, %v3176
    %3178 = vmatmul.bf16.gmra.mxu0 %v675
    %v3179 = vpop.f32.mrf.mxu0
    %v3180 = vadd.f32 %v3131, %v3179
    %v3181 = vpop.f32.mrf.mxu0
    %v3182 = vadd.f32 %v3133, %v3181
    %3183 = vmatmul.bf16.gmra.mxu0 %v682
    %v3184 = vpop.f32.mrf.mxu0
    %v3185 = vadd.f32 %v3136, %v3184
    %v3186 = vpop.f32.mrf.mxu0
    %v3187 = vadd.f32 %v3138, %v3186
    %3188 = vmatmul.bf16.gmra.mxu0 %v689
    %v3189 = vpop.f32.mrf.mxu0
    %v3190 = vadd.f32 %v3141, %v3189
    %v3191 = vpop.f32.mrf.mxu0
    %v3192 = vadd.f32 %v3143, %v3191
    %3193 = vmatmul.bf16.gmra.mxu0 %v696
    %v3194 = vpop.f32.mrf.mxu0
    %v3195 = vadd.f32 %v3146, %v3194
    %v3196 = vpop.f32.mrf.mxu0
    %v3197 = vadd.f32 %v3148, %v3196
    %3198 = vmatmul.bf16.gmra.mxu0 %v703
    %v3199 = vpop.f32.mrf.mxu0
    %v3200 = vadd.f32 %v3151, %v3199
    %v3201 = vpop.f32.mrf.mxu0
    %v3202 = vadd.f32 %v3153, %v3201
    %3203 = vdwg.mxu0
    %3204 = vmatpush.bf16.msra.mxu0 %v1656
    %3205 = vmatpush.bf16.msra.mxu0 %v1652
    %3206 = vmatpush.bf16.msra.mxu0 %v1648
    %3207 = vmatpush.bf16.msra.mxu0 %v1644
    %3208 = vmatpush.bf16.msra.mxu0 %v1640
    %3209 = vmatpush.bf16.msra.mxu0 %v1636
    %3210 = vmatpush.bf16.msra.mxu0 %v1632
    %3211 = vmatpush.bf16.msra.mxu0 %v1628
    %3212 = vmatmul.bf16.gmra.mxu0 %v655
    %v3213 = vpop.f32.mrf.mxu0
    %v3214 = vadd.f32 %v3165, %v3213
    %v3215 = vpop.f32.mrf.mxu0
    %v3216 = vadd.f32 %v3167, %v3215
    %3217 = vmatmul.bf16.gmra.mxu0 %v662
    %v3218 = vpop.f32.mrf.mxu0
    %v3219 = vadd.f32 %v3170, %v3218
    %v3220 = vpop.f32.mrf.mxu0
    %v3221 = vadd.f32 %v3172, %v3220
    %3222 = vmatmul.bf16.gmra.mxu0 %v669
    %v3223 = vpop.f32.mrf.mxu0
    %v3224 = vadd.f32 %v3175, %v3223
    %v3225 = vpop.f32.mrf.mxu0
    %v3226 = vadd.f32 %v3177, %v3225
    %3227 = vmatmul.bf16.gmra.mxu0 %v676
    %v3228 = vpop.f32.mrf.mxu0
    %v3229 = vadd.f32 %v3180, %v3228
    %v3230 = vpop.f32.mrf.mxu0
    %v3231 = vadd.f32 %v3182, %v3230
    %3232 = vmatmul.bf16.gmra.mxu0 %v683
    %v3233 = vpop.f32.mrf.mxu0
    %v3234 = vadd.f32 %v3185, %v3233
    %v3235 = vpop.f32.mrf.mxu0
    %v3236 = vadd.f32 %v3187, %v3235
    %3237 = vmatmul.bf16.gmra.mxu0 %v690
    %v3238 = vpop.f32.mrf.mxu0
    %v3239 = vadd.f32 %v3190, %v3238
    %v3240 = vpop.f32.mrf.mxu0
    %v3241 = vadd.f32 %v3192, %v3240
    %3242 = vmatmul.bf16.gmra.mxu0 %v697
    %v3243 = vpop.f32.mrf.mxu0
    %v3244 = vadd.f32 %v3195, %v3243
    %v3245 = vpop.f32.mrf.mxu0
    %v3246 = vadd.f32 %v3197, %v3245
    %3247 = vmatmul.bf16.gmra.mxu0 %v704
    %v3248 = vpop.f32.mrf.mxu0
    %v3249 = vadd.f32 %v3200, %v3248
    %v3250 = vpop.f32.mrf.mxu0
    %v3251 = vadd.f32 %v3202, %v3250
    %3252 = vdwg.mxu0
    %v3253 = vld [vmem:[#allocation8] sm:$0xf]
    %v3254 = vld [vmem:[#allocation10] sm:$0xf]
    %v3255 = vadd.f32 %v2185, %v2187
    %v3256 = vadd.f32 %v3255, %v2190
    %v3257 = vadd.f32 %v3256, %v2192
    %v3258 = vadd.f32 %v3257, %v2195
    %v3259 = vadd.f32 %v3258, %v2197
    %v3260 = vadd.f32 %v3259, %v2200
    %v3261 = vadd.f32 %v3260, %v2202
    %v3262 = vadd.f32 %v3261, %v2205
    %v3263 = vadd.f32 %v3262, %v2207
    %v3264 = vadd.f32 %v3263, %v2210
    %v3265 = vadd.f32 %v3264, %v2212
    %v3266 = vadd.f32 %v3265, %v2215
    %v3267 = vadd.f32 %v3266, %v2217
    %v3268 = vadd.f32 %v3267, %v2220
    %v3269 = vadd.f32 %v3268, %v2222
    %v3270 = vrot.slane %v3269, 4
    %v3271 = vadd.f32 %v3269, %v3270
    %v3272 = vrot.slane %v3271, 2
    %v3273 = vadd.f32 %v3271, %v3272
    %v3274 = vrot.slane %v3273, 1
    %v3275 = vadd.f32 %v3273, %v3274
    %v3276 = vadd.f32 %v2528, %v2530
    %v3277 = vadd.f32 %v3276, %v2533
    %v3278 = vadd.f32 %v3277, %v2535
    %v3279 = vadd.f32 %v3278, %v2538
    %v3280 = vadd.f32 %v3279, %v2540
    %v3281 = vadd.f32 %v3280, %v2543
    %v3282 = vadd.f32 %v3281, %v2545
    %v3283 = vadd.f32 %v3282, %v2548
    %v3284 = vadd.f32 %v3283, %v2550
    %v3285 = vadd.f32 %v3284, %v2553
    %v3286 = vadd.f32 %v3285, %v2555
    %v3287 = vadd.f32 %v3286, %v2558
    %v3288 = vadd.f32 %v3287, %v2560
    %v3289 = vadd.f32 %v3288, %v2563
    %v3290 = vadd.f32 %v3289, %v2565
    %v3291 = vrot.slane %v3290, 4
    %v3292 = vadd.f32 %v3290, %v3291
    %v3293 = vrot.slane %v3292, 2
    %v3294 = vadd.f32 %v3292, %v3293
    %v3295 = vrot.slane %v3294, 1
    %v3296 = vadd.f32 %v3294, %v3295
    %v3297 = vadd.f32 %v2871, %v2873
    %v3298 = vadd.f32 %v3297, %v2876
    %v3299 = vadd.f32 %v3298, %v2878
    %v3300 = vadd.f32 %v3299, %v2881
    %v3301 = vadd.f32 %v3300, %v2883
    %v3302 = vadd.f32 %v3301, %v2886
    %v3303 = vadd.f32 %v3302, %v2888
    %v3304 = vadd.f32 %v3303, %v2891
    %v3305 = vadd.f32 %v3304, %v2893
    %v3306 = vadd.f32 %v3305, %v2896
    %v3307 = vadd.f32 %v3306, %v2898
    %v3308 = vadd.f32 %v3307, %v2901
    %v3309 = vadd.f32 %v3308, %v2903
    %v3310 = vadd.f32 %v3309, %v2906
    %v3311 = vadd.f32 %v3310, %v2908
    %v3312 = vrot.slane %v3311, 4
    %v3313 = vadd.f32 %v3311, %v3312
    %v3314 = vrot.slane %v3313, 2
    %v3315 = vadd.f32 %v3313, %v3314
    %v3316 = vrot.slane %v3315, 1
    %v3317 = vadd.f32 %v3315, %v3316
    %v3318 = vadd.f32 %v3214, %v3216
    %v3319 = vadd.f32 %v3318, %v3219
    %v3320 = vadd.f32 %v3319, %v3221
    %v3321 = vadd.f32 %v3320, %v3224
    %v3322 = vadd.f32 %v3321, %v3226
    %v3323 = vadd.f32 %v3322, %v3229
    %v3324 = vadd.f32 %v3323, %v3231
    %v3325 = vadd.f32 %v3324, %v3234
    %v3326 = vadd.f32 %v3325, %v3236
    %v3327 = vadd.f32 %v3326, %v3239
    %v3328 = vadd.f32 %v3327, %v3241
    %v3329 = vadd.f32 %v3328, %v3244
    %v3330 = vadd.f32 %v3329, %v3246
    %v3331 = vadd.f32 %v3330, %v3249
    %v3332 = vadd.f32 %v3331, %v3251
    %v3333 = vrot.slane %v3332, 4
    %v3334 = vadd.f32 %v3332, %v3333
    %v3335 = vrot.slane %v3334, 2
    %v3336 = vadd.f32 %v3334, %v3335
    %v3337 = vrot.slane %v3336, 1
    %v3338 = vadd.f32 %v3336, %v3337
    %v3339 = vrcp.pop 128.0
    %v3340 = vmul.f32 128.0, %v3339
    %v3341 = vsub.f32 1.0, %v3340
    %v3342 = vmul.f32 %v3339, %v3341
    %v3343 = vadd.f32 %v3339, %v3342
    %vm3344 = vweird.f32 %v3339
    %v3345 = vsel %vm3344, %v3339, %v3343
    %v3346 = vmul.f32 %v3275, %v3345
    %v3347 = vmul.f32 %v3296, %v3345
    %v3348 = vmul.f32 %v3317, %v3345
    %v3349 = vmul.f32 %v3338, %v3345
    %v3350 = vsub.f32 %v2185, %v3346
    %v3351 = vsub.f32 %v2528, %v3347
    %v3352 = vsub.f32 %v2871, %v3348
    %v3353 = vsub.f32 %v3214, %v3349
    %v3354 = vsub.f32 %v2187, %v3346
    %v3355 = vsub.f32 %v2530, %v3347
    %v3356 = vsub.f32 %v2873, %v3348
    %v3357 = vsub.f32 %v3216, %v3349
    %v3358 = vsub.f32 %v2190, %v3346
    %v3359 = vsub.f32 %v2533, %v3347
    %v3360 = vsub.f32 %v2876, %v3348
    %v3361 = vsub.f32 %v3219, %v3349
    %v3362 = vsub.f32 %v2192, %v3346
    %v3363 = vsub.f32 %v2535, %v3347
    %v3364 = vsub.f32 %v2878, %v3348
    %v3365 = vsub.f32 %v3221, %v3349
    %v3366 = vsub.f32 %v2195, %v3346
    %v3367 = vsub.f32 %v2538, %v3347
    %v3368 = vsub.f32 %v2881, %v3348
    %v3369 = vsub.f32 %v3224, %v3349
    %v3370 = vsub.f32 %v2197, %v3346
    %v3371 = vsub.f32 %v2540, %v3347
    %v3372 = vsub.f32 %v2883, %v3348
    %v3373 = vsub.f32 %v3226, %v3349
    %v3374 = vsub.f32 %v2200, %v3346
    %v3375 = vsub.f32 %v2543, %v3347
    %v3376 = vsub.f32 %v2886, %v3348
    %v3377 = vsub.f32 %v3229, %v3349
    %v3378 = vsub.f32 %v2202, %v3346
    %v3379 = vsub.f32 %v2545, %v3347
    %v3380 = vsub.f32 %v2888, %v3348
    %v3381 = vsub.f32 %v3231, %v3349
    %v3382 = vsub.f32 %v2205, %v3346
    %v3383 = vsub.f32 %v2548, %v3347
    %v3384 = vsub.f32 %v2891, %v3348
    %v3385 = vsub.f32 %v3234, %v3349
    %v3386 = vsub.f32 %v2207, %v3346
    %v3387 = vsub.f32 %v2550, %v3347
    %v3388 = vsub.f32 %v2893, %v3348
    %v3389 = vsub.f32 %v3236, %v3349
    %v3390 = vsub.f32 %v2210, %v3346
    %v3391 = vsub.f32 %v2553, %v3347
    %v3392 = vsub.f32 %v2896, %v3348
    %v3393 = vsub.f32 %v3239, %v3349
    %v3394 = vsub.f32 %v2212, %v3346
    %v3395 = vsub.f32 %v2555, %v3347
    %v3396 = vsub.f32 %v2898, %v3348
    %v3397 = vsub.f32 %v3241, %v3349
    %v3398 = vsub.f32 %v2215, %v3346
    %v3399 = vsub.f32 %v2558, %v3347
    %v3400 = vsub.f32 %v2901, %v3348
    %v3401 = vsub.f32 %v3244, %v3349
    %v3402 = vsub.f32 %v2217, %v3346
    %v3403 = vsub.f32 %v2560, %v3347
    %v3404 = vsub.f32 %v2903, %v3348
    %v3405 = vsub.f32 %v3246, %v3349
    %v3406 = vsub.f32 %v2220, %v3346
    %v3407 = vsub.f32 %v2563, %v3347
    %v3408 = vsub.f32 %v2906, %v3348
    %v3409 = vsub.f32 %v3249, %v3349
    %v3410 = vsub.f32 %v2222, %v3346
    %v3411 = vsub.f32 %v2565, %v3347
    %v3412 = vsub.f32 %v2908, %v3348
    %v3413 = vsub.f32 %v3251, %v3349
    %v3414 = vmul.f32 %v3350, %v3350
    %v3415 = vmul.f32 %v3351, %v3351
    %v3416 = vmul.f32 %v3352, %v3352
    %v3417 = vmul.f32 %v3353, %v3353
    %v3418 = vmul.f32 %v3354, %v3354
    %v3419 = vmul.f32 %v3355, %v3355
    %v3420 = vmul.f32 %v3356, %v3356
    %v3421 = vmul.f32 %v3357, %v3357
    %v3422 = vmul.f32 %v3358, %v3358
    %v3423 = vmul.f32 %v3359, %v3359
    %v3424 = vmul.f32 %v3360, %v3360
    %v3425 = vmul.f32 %v3361, %v3361
    %v3426 = vmul.f32 %v3362, %v3362
    %v3427 = vmul.f32 %v3363, %v3363
    %v3428 = vmul.f32 %v3364, %v3364
    %v3429 = vmul.f32 %v3365, %v3365
    %v3430 = vmul.f32 %v3366, %v3366
    %v3431 = vmul.f32 %v3367, %v3367
    %v3432 = vmul.f32 %v3368, %v3368
    %v3433 = vmul.f32 %v3369, %v3369
    %v3434 = vmul.f32 %v3370, %v3370
    %v3435 = vmul.f32 %v3371, %v3371
    %v3436 = vmul.f32 %v3372, %v3372
    %v3437 = vmul.f32 %v3373, %v3373
    %v3438 = vmul.f32 %v3374, %v3374
    %v3439 = vmul.f32 %v3375, %v3375
    %v3440 = vmul.f32 %v3376, %v3376
    %v3441 = vmul.f32 %v3377, %v3377
    %v3442 = vmul.f32 %v3378, %v3378
    %v3443 = vmul.f32 %v3379, %v3379
    %v3444 = vmul.f32 %v3380, %v3380
    %v3445 = vmul.f32 %v3381, %v3381
    %v3446 = vmul.f32 %v3382, %v3382
    %v3447 = vmul.f32 %v3383, %v3383
    %v3448 = vmul.f32 %v3384, %v3384
    %v3449 = vmul.f32 %v3385, %v3385
    %v3450 = vmul.f32 %v3386, %v3386
    %v3451 = vmul.f32 %v3387, %v3387
    %v3452 = vmul.f32 %v3388, %v3388
    %v3453 = vmul.f32 %v3389, %v3389
    %v3454 = vmul.f32 %v3390, %v3390
    %v3455 = vmul.f32 %v3391, %v3391
    %v3456 = vmul.f32 %v3392, %v3392
    %v3457 = vmul.f32 %v3393, %v3393
    %v3458 = vmul.f32 %v3394, %v3394
    %v3459 = vmul.f32 %v3395, %v3395
    %v3460 = vmul.f32 %v3396, %v3396
    %v3461 = vmul.f32 %v3397, %v3397
    %v3462 = vmul.f32 %v3398, %v3398
    %v3463 = vmul.f32 %v3399, %v3399
    %v3464 = vmul.f32 %v3400, %v3400
    %v3465 = vmul.f32 %v3401, %v3401
    %v3466 = vmul.f32 %v3402, %v3402
    %v3467 = vmul.f32 %v3403, %v3403
    %v3468 = vmul.f32 %v3404, %v3404
    %v3469 = vmul.f32 %v3405, %v3405
    %v3470 = vmul.f32 %v3406, %v3406
    %v3471 = vmul.f32 %v3407, %v3407
    %v3472 = vmul.f32 %v3408, %v3408
    %v3473 = vmul.f32 %v3409, %v3409
    %v3474 = vmul.f32 %v3410, %v3410
    %v3475 = vmul.f32 %v3411, %v3411
    %v3476 = vmul.f32 %v3412, %v3412
    %v3477 = vmul.f32 %v3413, %v3413
    %v3478 = vadd.f32 %v3414, %v3418
    %v3479 = vadd.f32 %v3478, %v3422
    %v3480 = vadd.f32 %v3479, %v3426
    %v3481 = vadd.f32 %v3480, %v3430
    %v3482 = vadd.f32 %v3481, %v3434
    %v3483 = vadd.f32 %v3482, %v3438
    %v3484 = vadd.f32 %v3483, %v3442
    %v3485 = vadd.f32 %v3484, %v3446
    %v3486 = vadd.f32 %v3485, %v3450
    %v3487 = vadd.f32 %v3486, %v3454
    %v3488 = vadd.f32 %v3487, %v3458
    %v3489 = vadd.f32 %v3488, %v3462
    %v3490 = vadd.f32 %v3489, %v3466
    %v3491 = vadd.f32 %v3490, %v3470
    %v3492 = vadd.f32 %v3491, %v3474
    %v3493 = vrot.slane %v3492, 4
    %v3494 = vadd.f32 %v3492, %v3493
    %v3495 = vrot.slane %v3494, 2
    %v3496 = vadd.f32 %v3494, %v3495
    %v3497 = vrot.slane %v3496, 1
    %v3498 = vadd.f32 %v3496, %v3497
    %v3499 = vadd.f32 %v3415, %v3419
    %v3500 = vadd.f32 %v3499, %v3423
    %v3501 = vadd.f32 %v3500, %v3427
    %v3502 = vadd.f32 %v3501, %v3431
    %v3503 = vadd.f32 %v3502, %v3435
    %v3504 = vadd.f32 %v3503, %v3439
    %v3505 = vadd.f32 %v3504, %v3443
    %v3506 = vadd.f32 %v3505, %v3447
    %v3507 = vadd.f32 %v3506, %v3451
    %v3508 = vadd.f32 %v3507, %v3455
    %v3509 = vadd.f32 %v3508, %v3459
    %v3510 = vadd.f32 %v3509, %v3463
    %v3511 = vadd.f32 %v3510, %v3467
    %v3512 = vadd.f32 %v3511, %v3471
    %v3513 = vadd.f32 %v3512, %v3475
    %v3514 = vrot.slane %v3513, 4
    %v3515 = vadd.f32 %v3513, %v3514
    %v3516 = vrot.slane %v3515, 2
    %v3517 = vadd.f32 %v3515, %v3516
    %v3518 = vrot.slane %v3517, 1
    %v3519 = vadd.f32 %v3517, %v3518
    %v3520 = vadd.f32 %v3416, %v3420
    %v3521 = vadd.f32 %v3520, %v3424
    %v3522 = vadd.f32 %v3521, %v3428
    %v3523 = vadd.f32 %v3522, %v3432
    %v3524 = vadd.f32 %v3523, %v3436
    %v3525 = vadd.f32 %v3524, %v3440
    %v3526 = vadd.f32 %v3525, %v3444
    %v3527 = vadd.f32 %v3526, %v3448
    %v3528 = vadd.f32 %v3527, %v3452
    %v3529 = vadd.f32 %v3528, %v3456
    %v3530 = vadd.f32 %v3529, %v3460
    %v3531 = vadd.f32 %v3530, %v3464
    %v3532 = vadd.f32 %v3531, %v3468
    %v3533 = vadd.f32 %v3532, %v3472
    %v3534 = vadd.f32 %v3533, %v3476
    %v3535 = vrot.slane %v3534, 4
    %v3536 = vadd.f32 %v3534, %v3535
    %v3537 = vrot.slane %v3536, 2
    %v3538 = vadd.f32 %v3536, %v3537
    %v3539 = vrot.slane %v3538, 1
    %v3540 = vadd.f32 %v3538, %v3539
    %v3541 = vadd.f32 %v3417, %v3421
    %v3542 = vadd.f32 %v3541, %v3425
    %v3543 = vadd.f32 %v3542, %v3429
    %v3544 = vadd.f32 %v3543, %v3433
    %v3545 = vadd.f32 %v3544, %v3437
    %v3546 = vadd.f32 %v3545, %v3441
    %v3547 = vadd.f32 %v3546, %v3445
    %v3548 = vadd.f32 %v3547, %v3449
    %v3549 = vadd.f32 %v3548, %v3453
    %v3550 = vadd.f32 %v3549, %v3457
    %v3551 = vadd.f32 %v3550, %v3461
    %v3552 = vadd.f32 %v3551, %v3465
    %v3553 = vadd.f32 %v3552, %v3469
    %v3554 = vadd.f32 %v3553, %v3473
    %v3555 = vadd.f32 %v3554, %v3477
    %v3556 = vrot.slane %v3555, 4
    %v3557 = vadd.f32 %v3555, %v3556
    %v3558 = vrot.slane %v3557, 2
    %v3559 = vadd.f32 %v3557, %v3558
    %v3560 = vrot.slane %v3559, 1
    %v3561 = vadd.f32 %v3559, %v3560
    %v3562 = vmul.f32 %v3498, %v3345
    %v3563 = vmul.f32 %v3519, %v3345
    %v3564 = vmul.f32 %v3540, %v3345
    %v3565 = vmul.f32 %v3561, %v3345
    %v3566 = vadd.f32 %v3562, 1e-05
    %v3567 = vadd.f32 %v3563, 1e-05
    %v3568 = vadd.f32 %v3564, 1e-05
    %v3569 = vadd.f32 %v3565, 1e-05
    %v3570 = vrsqrt.pop %v3566
    %v3571 = vmul.f32 %v3570, %v3566
    %v3572 = vmul.f32 %v3571, %v3570
    %v3573 = vmul.f32 0.5, %v3572
    %v3574 = vsub.f32 1.5, %v3573
    %v3575 = vmul.f32 %v3570, %v3574
    %vm3576 = vweird.f32 %v3566
    %vm3577 = vweird.f32 %v3570
    %vm3578 = vmor %vm3576, %vm3577
    %v3579 = vsel %vm3578, %v3570, %v3575
    %v3580 = vrsqrt.pop %v3567
    %v3581 = vmul.f32 %v3580, %v3567
    %v3582 = vmul.f32 %v3581, %v3580
    %v3583 = vmul.f32 0.5, %v3582
    %v3584 = vsub.f32 1.5, %v3583
    %v3585 = vmul.f32 %v3580, %v3584
    %vm3586 = vweird.f32 %v3567
    %vm3587 = vweird.f32 %v3580
    %vm3588 = vmor %vm3586, %vm3587
    %v3589 = vsel %vm3588, %v3580, %v3585
    %v3590 = vrsqrt.pop %v3568
    %v3591 = vmul.f32 %v3590, %v3568
    %v3592 = vmul.f32 %v3591, %v3590
    %v3593 = vmul.f32 0.5, %v3592
    %v3594 = vsub.f32 1.5, %v3593
    %v3595 = vmul.f32 %v3590, %v3594
    %vm3596 = vweird.f32 %v3568
    %vm3597 = vweird.f32 %v3590
    %vm3598 = vmor %vm3596, %vm3597
    %v3599 = vsel %vm3598, %v3590, %v3595
    %v3600 = vrsqrt.pop %v3569
    %v3601 = vmul.f32 %v3600, %v3569
    %v3602 = vmul.f32 %v3601, %v3600
    %v3603 = vmul.f32 0.5, %v3602
    %v3604 = vsub.f32 1.5, %v3603
    %v3605 = vmul.f32 %v3600, %v3604
    %vm3606 = vweird.f32 %v3569
    %vm3607 = vweird.f32 %v3600
    %vm3608 = vmor %vm3606, %vm3607
    %v3609 = vsel %vm3608, %v3600, %v3605
    %v3614 = vrot.slane %v3589, 7
    %v3615 = vrot.slane %v3599, 6
    %v3616 = vrot.slane %v3609, 5
    %vm3617 = vcmask 1040384
    %v3618 = vsel %vm3617, %v3579, %v3614
    %vm3619 = vcmask 1042434
    %v3620 = vsel %vm3619, %v3615, %v3616
    %vm3621 = vcmask 1041408
    %v3622 = vsel %vm3621, %v3618, %v3620
    %v3624 = vmul.f32 %v3253, %v3622
    %v3626 = vperm.slane %v3624, 0
    %v3627 = vperm.slane %v3624, 1
    %v3628 = vperm.slane %v3624, 2
    %v3629 = vperm.slane %v3624, 3
    %v3634 = vmul.f32 %v2185, %v3626
    %v3635 = vmul.f32 %v2528, %v3627
    %v3636 = vmul.f32 %v2871, %v3628
    %v3637 = vmul.f32 %v3214, %v3629
    %v3638 = vmul.f32 %v2187, %v3626
    %v3639 = vmul.f32 %v2530, %v3627
    %v3640 = vmul.f32 %v2873, %v3628
    %v3641 = vmul.f32 %v3216, %v3629
    %v3642 = vmul.f32 %v2190, %v3626
    %v3643 = vmul.f32 %v2533, %v3627
    %v3644 = vmul.f32 %v2876, %v3628
    %v3645 = vmul.f32 %v3219, %v3629
    %v3646 = vmul.f32 %v2192, %v3626
    %v3647 = vmul.f32 %v2535, %v3627
    %v3648 = vmul.f32 %v2878, %v3628
    %v3649 = vmul.f32 %v3221, %v3629
    %v3650 = vmul.f32 %v2195, %v3626
    %v3651 = vmul.f32 %v2538, %v3627
    %v3652 = vmul.f32 %v2881, %v3628
    %v3653 = vmul.f32 %v3224, %v3629
    %v3654 = vmul.f32 %v2197, %v3626
    %v3655 = vmul.f32 %v2540, %v3627
    %v3656 = vmul.f32 %v2883, %v3628
    %v3657 = vmul.f32 %v3226, %v3629
    %v3658 = vmul.f32 %v2200, %v3626
    %v3659 = vmul.f32 %v2543, %v3627
    %v3660 = vmul.f32 %v2886, %v3628
    %v3661 = vmul.f32 %v3229, %v3629
    %v3662 = vmul.f32 %v2202, %v3626
    %v3663 = vmul.f32 %v2545, %v3627
    %v3664 = vmul.f32 %v2888, %v3628
    %v3665 = vmul.f32 %v3231, %v3629
    %v3666 = vmul.f32 %v2205, %v3626
    %v3667 = vmul.f32 %v2548, %v3627
    %v3668 = vmul.f32 %v2891, %v3628
    %v3669 = vmul.f32 %v3234, %v3629
    %v3670 = vmul.f32 %v2207, %v3626
    %v3671 = vmul.f32 %v2550, %v3627
    %v3672 = vmul.f32 %v2893, %v3628
    %v3673 = vmul.f32 %v3236, %v3629
    %v3674 = vmul.f32 %v2210, %v3626
    %v3675 = vmul.f32 %v2553, %v3627
    %v3676 = vmul.f32 %v2896, %v3628
    %v3677 = vmul.f32 %v3239, %v3629
    %v3678 = vmul.f32 %v2212, %v3626
    %v3679 = vmul.f32 %v2555, %v3627
    %v3680 = vmul.f32 %v2898, %v3628
    %v3681 = vmul.f32 %v3241, %v3629
    %v3682 = vmul.f32 %v2215, %v3626
    %v3683 = vmul.f32 %v2558, %v3627
    %v3684 = vmul.f32 %v2901, %v3628
    %v3685 = vmul.f32 %v3244, %v3629
    %v3686 = vmul.f32 %v2217, %v3626
    %v3687 = vmul.f32 %v2560, %v3627
    %v3688 = vmul.f32 %v2903, %v3628
    %v3689 = vmul.f32 %v3246, %v3629
    %v3690 = vmul.f32 %v2220, %v3626
    %v3691 = vmul.f32 %v2563, %v3627
    %v3692 = vmul.f32 %v2906, %v3628
    %v3693 = vmul.f32 %v3249, %v3629
    %v3694 = vmul.f32 %v2222, %v3626
    %v3695 = vmul.f32 %v2565, %v3627
    %v3696 = vmul.f32 %v2908, %v3628
    %v3697 = vmul.f32 %v3251, %v3629
    %v3698 = vmul.f32 %v3346, %v3626
    %v3699 = vmul.f32 %v3347, %v3627
    %v3700 = vmul.f32 %v3348, %v3628
    %v3701 = vmul.f32 %v3349, %v3629
    %v3706 = vrot.slane %v3699, 7
    %v3707 = vrot.slane %v3700, 6
    %v3708 = vrot.slane %v3701, 5
    %v3709 = vsel %vm3617, %v3698, %v3706
    %v3710 = vsel %vm3619, %v3707, %v3708
    %v3711 = vsel %vm3621, %v3709, %v3710
    %v3713 = vsub.f32 %v3254, %v3711
    %v3715 = vperm.slane %v3713, 0
    %v3716 = vperm.slane %v3713, 1
    %v3717 = vperm.slane %v3713, 2
    %v3718 = vperm.slane %v3713, 3
    %v3723 = vadd.f32 %v3634, %v3715
    %v3724 = vadd.f32 %v3635, %v3716
    %v3725 = vadd.f32 %v3636, %v3717
    %v3726 = vadd.f32 %v3637, %v3718
    %v3727 = vadd.f32 %v3638, %v3715
    %v3728 = vadd.f32 %v3639, %v3716
    %v3729 = vadd.f32 %v3640, %v3717
    %v3730 = vadd.f32 %v3641, %v3718
    %v3731 = vadd.f32 %v3642, %v3715
    %v3732 = vadd.f32 %v3643, %v3716
    %v3733 = vadd.f32 %v3644, %v3717
    %v3734 = vadd.f32 %v3645, %v3718
    %v3735 = vadd.f32 %v3646, %v3715
    %v3736 = vadd.f32 %v3647, %v3716
    %v3737 = vadd.f32 %v3648, %v3717
    %v3738 = vadd.f32 %v3649, %v3718
    %v3739 = vadd.f32 %v3650, %v3715
    %v3740 = vadd.f32 %v3651, %v3716
    %v3741 = vadd.f32 %v3652, %v3717
    %v3742 = vadd.f32 %v3653, %v3718
    %v3743 = vadd.f32 %v3654, %v3715
    %v3744 = vadd.f32 %v3655, %v3716
    %v3745 = vadd.f32 %v3656, %v3717
    %v3746 = vadd.f32 %v3657, %v3718
    %v3747 = vadd.f32 %v3658, %v3715
    %v3748 = vadd.f32 %v3659, %v3716
    %v3749 = vadd.f32 %v3660, %v3717
    %v3750 = vadd.f32 %v3661, %v3718
    %v3751 = vadd.f32 %v3662, %v3715
    %v3752 = vadd.f32 %v3663, %v3716
    %v3753 = vadd.f32 %v3664, %v3717
    %v3754 = vadd.f32 %v3665, %v3718
    %v3755 = vadd.f32 %v3666, %v3715
    %v3756 = vadd.f32 %v3667, %v3716
    %v3757 = vadd.f32 %v3668, %v3717
    %v3758 = vadd.f32 %v3669, %v3718
    %v3759 = vadd.f32 %v3670, %v3715
    %v3760 = vadd.f32 %v3671, %v3716
    %v3761 = vadd.f32 %v3672, %v3717
    %v3762 = vadd.f32 %v3673, %v3718
    %v3763 = vadd.f32 %v3674, %v3715
    %v3764 = vadd.f32 %v3675, %v3716
    %v3765 = vadd.f32 %v3676, %v3717
    %v3766 = vadd.f32 %v3677, %v3718
    %v3767 = vadd.f32 %v3678, %v3715
    %v3768 = vadd.f32 %v3679, %v3716
    %v3769 = vadd.f32 %v3680, %v3717
    %v3770 = vadd.f32 %v3681, %v3718
    %v3771 = vadd.f32 %v3682, %v3715
    %v3772 = vadd.f32 %v3683, %v3716
    %v3773 = vadd.f32 %v3684, %v3717
    %v3774 = vadd.f32 %v3685, %v3718
    %v3775 = vadd.f32 %v3686, %v3715
    %v3776 = vadd.f32 %v3687, %v3716
    %v3777 = vadd.f32 %v3688, %v3717
    %v3778 = vadd.f32 %v3689, %v3718
    %v3779 = vadd.f32 %v3690, %v3715
    %v3780 = vadd.f32 %v3691, %v3716
    %v3781 = vadd.f32 %v3692, %v3717
    %v3782 = vadd.f32 %v3693, %v3718
    %v3783 = vadd.f32 %v3694, %v3715
    %v3784 = vadd.f32 %v3695, %v3716
    %v3785 = vadd.f32 %v3696, %v3717
    %v3786 = vadd.f32 %v3697, %v3718
    %v3787 = vmax.f32 %v3723, 0.0
    %v3788 = vmax.f32 %v3724, 0.0
    %v3789 = vmax.f32 %v3725, 0.0
    %v3790 = vmax.f32 %v3726, 0.0
    %v3791 = vmax.f32 %v3727, 0.0
    %v3792 = vmax.f32 %v3728, 0.0
    %v3793 = vmax.f32 %v3729, 0.0
    %v3794 = vmax.f32 %v3730, 0.0
    %v3795 = vmax.f32 %v3731, 0.0
    %v3796 = vmax.f32 %v3732, 0.0
    %v3797 = vmax.f32 %v3733, 0.0
    %v3798 = vmax.f32 %v3734, 0.0
    %v3799 = vmax.f32 %v3735, 0.0
    %v3800 = vmax.f32 %v3736, 0.0
    %v3801 = vmax.f32 %v3737, 0.0
    %v3802 = vmax.f32 %v3738, 0.0
    %v3803 = vmax.f32 %v3739, 0.0
    %v3804 = vmax.f32 %v3740, 0.0
    %v3805 = vmax.f32 %v3741, 0.0
    %v3806 = vmax.f32 %v3742, 0.0
    %v3807 = vmax.f32 %v3743, 0.0
    %v3808 = vmax.f32 %v3744, 0.0
    %v3809 = vmax.f32 %v3745, 0.0
    %v3810 = vmax.f32 %v3746, 0.0
    %v3811 = vmax.f32 %v3747, 0.0
    %v3812 = vmax.f32 %v3748, 0.0
    %v3813 = vmax.f32 %v3749, 0.0
    %v3814 = vmax.f32 %v3750, 0.0
    %v3815 = vmax.f32 %v3751, 0.0
    %v3816 = vmax.f32 %v3752, 0.0
    %v3817 = vmax.f32 %v3753, 0.0
    %v3818 = vmax.f32 %v3754, 0.0
    %v3819 = vmax.f32 %v3755, 0.0
    %v3820 = vmax.f32 %v3756, 0.0
    %v3821 = vmax.f32 %v3757, 0.0
    %v3822 = vmax.f32 %v3758, 0.0
    %v3823 = vmax.f32 %v3759, 0.0
    %v3824 = vmax.f32 %v3760, 0.0
    %v3825 = vmax.f32 %v3761, 0.0
    %v3826 = vmax.f32 %v3762, 0.0
    %v3827 = vmax.f32 %v3763, 0.0
    %v3828 = vmax.f32 %v3764, 0.0
    %v3829 = vmax.f32 %v3765, 0.0
    %v3830 = vmax.f32 %v3766, 0.0
    %v3831 = vmax.f32 %v3767, 0.0
    %v3832 = vmax.f32 %v3768, 0.0
    %v3833 = vmax.f32 %v3769, 0.0
    %v3834 = vmax.f32 %v3770, 0.0
    %v3835 = vmax.f32 %v3771, 0.0
    %v3836 = vmax.f32 %v3772, 0.0
    %v3837 = vmax.f32 %v3773, 0.0
    %v3838 = vmax.f32 %v3774, 0.0
    %v3839 = vmax.f32 %v3775, 0.0
    %v3840 = vmax.f32 %v3776, 0.0
    %v3841 = vmax.f32 %v3777, 0.0
    %v3842 = vmax.f32 %v3778, 0.0
    %v3843 = vmax.f32 %v3779, 0.0
    %v3844 = vmax.f32 %v3780, 0.0
    %v3845 = vmax.f32 %v3781, 0.0
    %v3846 = vmax.f32 %v3782, 0.0
    %v3847 = vmax.f32 %v3783, 0.0
    %v3848 = vmax.f32 %v3784, 0.0
    %v3849 = vmax.f32 %v3785, 0.0
    %v3850 = vmax.f32 %v3786, 0.0
    %v3851 = vpack.c.bf16 %v3791, %v3787
    %v3852 = vpack.c.bf16 %v3792, %v3788
    %v3853 = vpack.c.bf16 %v3793, %v3789
    %v3854 = vpack.c.bf16 %v3794, %v3790
    %v3855 = vpack.c.bf16 %v3799, %v3795
    %v3856 = vpack.c.bf16 %v3800, %v3796
    %v3857 = vpack.c.bf16 %v3801, %v3797
    %v3858 = vpack.c.bf16 %v3802, %v3798
    %v3859 = vpack.c.bf16 %v3807, %v3803
    %v3860 = vpack.c.bf16 %v3808, %v3804
    %v3861 = vpack.c.bf16 %v3809, %v3805
    %v3862 = vpack.c.bf16 %v3810, %v3806
    %v3863 = vpack.c.bf16 %v3815, %v3811
    %v3864 = vpack.c.bf16 %v3816, %v3812
    %v3865 = vpack.c.bf16 %v3817, %v3813
    %v3866 = vpack.c.bf16 %v3818, %v3814
    %v3867 = vpack.c.bf16 %v3823, %v3819
    %v3868 = vpack.c.bf16 %v3824, %v3820
    %v3869 = vpack.c.bf16 %v3825, %v3821
    %v3870 = vpack.c.bf16 %v3826, %v3822
    %v3871 = vpack.c.bf16 %v3831, %v3827
    %v3872 = vpack.c.bf16 %v3832, %v3828
    %v3873 = vpack.c.bf16 %v3833, %v3829
    %v3874 = vpack.c.bf16 %v3834, %v3830
    %v3875 = vpack.c.bf16 %v3839, %v3835
    %v3876 = vpack.c.bf16 %v3840, %v3836
    %v3877 = vpack.c.bf16 %v3841, %v3837
    %v3878 = vpack.c.bf16 %v3842, %v3838
    %v3879 = vpack.c.bf16 %v3847, %v3843
    %v3880 = vpack.c.bf16 %v3848, %v3844
    %v3881 = vpack.c.bf16 %v3849, %v3845
    %v3882 = vpack.c.bf16 %v3850, %v3846
    %v3883 = vld [vmem:[#allocation11] sm:$0xff]
    %v3884 = vld [vmem:[#allocation11 + $0x8] sm:$0xff]
    %v3885 = vld [vmem:[#allocation11 + $0x10] sm:$0xff]
    %v3886 = vld [vmem:[#allocation11 + $0x18] sm:$0xff]
    %v3887 = vld [vmem:[#allocation11 + $0x20] sm:$0xff]
    %v3888 = vld [vmem:[#allocation11 + $0x28] sm:$0xff]
    %v3889 = vld [vmem:[#allocation11 + $0x30] sm:$0xff]
    %v3890 = vld [vmem:[#allocation11 + $0x38] sm:$0xff]
    %v3891 = vld [vmem:[#allocation11 + $0x40] sm:$0xff]
    %v3892 = vld [vmem:[#allocation11 + $0x48] sm:$0xff]
    %v3893 = vld [vmem:[#allocation11 + $0x50] sm:$0xff]
    %v3894 = vld [vmem:[#allocation11 + $0x58] sm:$0xff]
    %v3895 = vld [vmem:[#allocation11 + $0x60] sm:$0xff]
    %v3896 = vld [vmem:[#allocation11 + $0x68] sm:$0xff]
    %v3897 = vld [vmem:[#allocation11 + $0x70] sm:$0xff]
    %v3898 = vld [vmem:[#allocation11 + $0x78] sm:$0xff]
    %v3899 = vld [vmem:[#allocation11 + $0x80] sm:$0xff]
    %v3900 = vld [vmem:[#allocation11 + $0x88] sm:$0xff]
    %v3901 = vld [vmem:[#allocation11 + $0x90] sm:$0xff]
    %v3902 = vld [vmem:[#allocation11 + $0x98] sm:$0xff]
    %v3903 = vld [vmem:[#allocation11 + $0xa0] sm:$0xff]
    %v3904 = vld [vmem:[#allocation11 + $0xa8] sm:$0xff]
    %v3905 = vld [vmem:[#allocation11 + $0xb0] sm:$0xff]
    %v3906 = vld [vmem:[#allocation11 + $0xb8] sm:$0xff]
    %v3907 = vld [vmem:[#allocation11 + $0xc0] sm:$0xff]
    %v3908 = vld [vmem:[#allocation11 + $0xc8] sm:$0xff]
    %v3909 = vld [vmem:[#allocation11 + $0xd0] sm:$0xff]
    %v3910 = vld [vmem:[#allocation11 + $0xd8] sm:$0xff]
    %v3911 = vld [vmem:[#allocation11 + $0xe0] sm:$0xff]
    %v3912 = vld [vmem:[#allocation11 + $0xe8] sm:$0xff]
    %v3913 = vld [vmem:[#allocation11 + $0xf0] sm:$0xff]
    %v3914 = vld [vmem:[#allocation11 + $0xf8] sm:$0xff]
    %v3915 = vld [vmem:[#allocation11 + $0x100] sm:$0xff]
    %v3916 = vld [vmem:[#allocation11 + $0x108] sm:$0xff]
    %v3917 = vld [vmem:[#allocation11 + $0x110] sm:$0xff]
    %v3918 = vld [vmem:[#allocation11 + $0x118] sm:$0xff]
    %v3919 = vld [vmem:[#allocation11 + $0x120] sm:$0xff]
    %v3920 = vld [vmem:[#allocation11 + $0x128] sm:$0xff]
    %v3921 = vld [vmem:[#allocation11 + $0x130] sm:$0xff]
    %v3922 = vld [vmem:[#allocation11 + $0x138] sm:$0xff]
    %v3923 = vld [vmem:[#allocation11 + $0x140] sm:$0xff]
    %v3924 = vld [vmem:[#allocation11 + $0x148] sm:$0xff]
    %v3925 = vld [vmem:[#allocation11 + $0x150] sm:$0xff]
    %v3926 = vld [vmem:[#allocation11 + $0x158] sm:$0xff]
    %v3927 = vld [vmem:[#allocation11 + $0x160] sm:$0xff]
    %v3928 = vld [vmem:[#allocation11 + $0x168] sm:$0xff]
    %v3929 = vld [vmem:[#allocation11 + $0x170] sm:$0xff]
    %v3930 = vld [vmem:[#allocation11 + $0x178] sm:$0xff]
    %v3931 = vld [vmem:[#allocation11 + $0x180] sm:$0xff]
    %v3932 = vld [vmem:[#allocation11 + $0x188] sm:$0xff]
    %v3933 = vld [vmem:[#allocation11 + $0x190] sm:$0xff]
    %v3934 = vld [vmem:[#allocation11 + $0x198] sm:$0xff]
    %v3935 = vld [vmem:[#allocation11 + $0x1a0] sm:$0xff]
    %v3936 = vld [vmem:[#allocation11 + $0x1a8] sm:$0xff]
    %v3937 = vld [vmem:[#allocation11 + $0x1b0] sm:$0xff]
    %v3938 = vld [vmem:[#allocation11 + $0x1b8] sm:$0xff]
    %v3939 = vld [vmem:[#allocation11 + $0x1c0] sm:$0xff]
    %v3940 = vld [vmem:[#allocation11 + $0x1c8] sm:$0xff]
    %v3941 = vld [vmem:[#allocation11 + $0x1d0] sm:$0xff]
    %v3942 = vld [vmem:[#allocation11 + $0x1d8] sm:$0xff]
    %v3943 = vld [vmem:[#allocation11 + $0x1e0] sm:$0xff]
    %v3944 = vld [vmem:[#allocation11 + $0x1e8] sm:$0xff]
    %v3945 = vld [vmem:[#allocation11 + $0x1f0] sm:$0xff]
    %v3946 = vld [vmem:[#allocation11 + $0x1f8] sm:$0xff]
    %v3947 = vld [vmem:[%s7] sm:$0x3]
    %v3949 = vperm.slane %v3947, 0
    %v3950 = vperm.slane %v3947, 1
    %v4017 = vunpack.c.l.b16 %v3883
    %v4018 = vunpack.c.h.b16 %v3883
    %v4019 = vunpack.c.l.b16 %v3884
    %v4020 = vunpack.c.h.b16 %v3884
    %v4021 = vunpack.c.l.b16 %v3885
    %v4022 = vunpack.c.h.b16 %v3885
    %v4023 = vunpack.c.l.b16 %v3886
    %v4024 = vunpack.c.h.b16 %v3886
    %v4025 = vunpack.c.l.b16 %v3887
    %v4026 = vunpack.c.h.b16 %v3887
    %v4027 = vunpack.c.l.b16 %v3888
    %v4028 = vunpack.c.h.b16 %v3888
    %v4029 = vunpack.c.l.b16 %v3889
    %v4030 = vunpack.c.h.b16 %v3889
    %v4031 = vunpack.c.l.b16 %v3890
    %v4032 = vunpack.c.h.b16 %v3890
    %v4033 = vunpack.c.l.b16 %v3891
    %v4034 = vunpack.c.h.b16 %v3891
    %v4035 = vunpack.c.l.b16 %v3892
    %v4036 = vunpack.c.h.b16 %v3892
    %v4037 = vunpack.c.l.b16 %v3893
    %v4038 = vunpack.c.h.b16 %v3893
    %v4039 = vunpack.c.l.b16 %v3894
    %v4040 = vunpack.c.h.b16 %v3894
    %v4041 = vunpack.c.l.b16 %v3895
    %v4042 = vunpack.c.h.b16 %v3895
    %v4043 = vunpack.c.l.b16 %v3896
    %v4044 = vunpack.c.h.b16 %v3896
    %v4045 = vunpack.c.l.b16 %v3897
    %v4046 = vunpack.c.h.b16 %v3897
    %v4047 = vunpack.c.l.b16 %v3898
    %v4048 = vunpack.c.h.b16 %v3898
    %v4049 = vunpack.c.l.b16 %v3899
    %v4050 = vunpack.c.h.b16 %v3899
    %v4051 = vunpack.c.l.b16 %v3900
    %v4052 = vunpack.c.h.b16 %v3900
    %v4053 = vunpack.c.l.b16 %v3901
    %v4054 = vunpack.c.h.b16 %v3901
    %v4055 = vunpack.c.l.b16 %v3902
    %v4056 = vunpack.c.h.b16 %v3902
    %v4057 = vunpack.c.l.b16 %v3903
    %v4058 = vunpack.c.h.b16 %v3903
    %v4059 = vunpack.c.l.b16 %v3904
    %v4060 = vunpack.c.h.b16 %v3904
    %v4061 = vunpack.c.l.b16 %v3905
    %v4062 = vunpack.c.h.b16 %v3905
    %v4063 = vunpack.c.l.b16 %v3906
    %v4064 = vunpack.c.h.b16 %v3906
    %v4065 = vunpack.c.l.b16 %v3907
    %v4066 = vunpack.c.h.b16 %v3907
    %v4067 = vunpack.c.l.b16 %v3908
    %v4068 = vunpack.c.h.b16 %v3908
    %v4069 = vunpack.c.l.b16 %v3909
    %v4070 = vunpack.c.h.b16 %v3909
    %v4071 = vunpack.c.l.b16 %v3910
    %v4072 = vunpack.c.h.b16 %v3910
    %v4073 = vunpack.c.l.b16 %v3911
    %v4074 = vunpack.c.h.b16 %v3911
    %v4075 = vunpack.c.l.b16 %v3912
    %v4076 = vunpack.c.h.b16 %v3912
    %v4077 = vunpack.c.l.b16 %v3913
    %v4078 = vunpack.c.h.b16 %v3913
    %v4079 = vunpack.c.l.b16 %v3914
    %v4080 = vunpack.c.h.b16 %v3914
    %v4081 = vunpack.c.l.b16 %v3915
    %v4082 = vunpack.c.h.b16 %v3915
    %v4083 = vunpack.c.l.b16 %v3916
    %v4084 = vunpack.c.h.b16 %v3916
    %v4085 = vunpack.c.l.b16 %v3917
    %v4086 = vunpack.c.h.b16 %v3917
    %v4087 = vunpack.c.l.b16 %v3918
    %v4088 = vunpack.c.h.b16 %v3918
    %v4089 = vunpack.c.l.b16 %v3919
    %v4090 = vunpack.c.h.b16 %v3919
    %v4091 = vunpack.c.l.b16 %v3920
    %v4092 = vunpack.c.h.b16 %v3920
    %v4093 = vunpack.c.l.b16 %v3921
    %v4094 = vunpack.c.h.b16 %v3921
    %v4095 = vunpack.c.l.b16 %v3922
    %v4096 = vunpack.c.h.b16 %v3922
    %v4097 = vunpack.c.l.b16 %v3923
    %v4098 = vunpack.c.h.b16 %v3923
    %v4099 = vunpack.c.l.b16 %v3924
    %v4100 = vunpack.c.h.b16 %v3924
    %v4101 = vunpack.c.l.b16 %v3925
    %v4102 = vunpack.c.h.b16 %v3925
    %v4103 = vunpack.c.l.b16 %v3926
    %v4104 = vunpack.c.h.b16 %v3926
    %v4105 = vunpack.c.l.b16 %v3927
    %v4106 = vunpack.c.h.b16 %v3927
    %v4107 = vunpack.c.l.b16 %v3928
    %v4108 = vunpack.c.h.b16 %v3928
    %v4109 = vunpack.c.l.b16 %v3929
    %v4110 = vunpack.c.h.b16 %v3929
    %v4111 = vunpack.c.l.b16 %v3930
    %v4112 = vunpack.c.h.b16 %v3930
    %v4113 = vunpack.c.l.b16 %v3931
    %v4114 = vunpack.c.h.b16 %v3931
    %v4115 = vunpack.c.l.b16 %v3932
    %v4116 = vunpack.c.h.b16 %v3932
    %v4117 = vunpack.c.l.b16 %v3933
    %v4118 = vunpack.c.h.b16 %v3933
    %v4119 = vunpack.c.l.b16 %v3934
    %v4120 = vunpack.c.h.b16 %v3934
    %v4121 = vunpack.c.l.b16 %v3935
    %v4122 = vunpack.c.h.b16 %v3935
    %v4123 = vunpack.c.l.b16 %v3936
    %v4124 = vunpack.c.h.b16 %v3936
    %v4125 = vunpack.c.l.b16 %v3937
    %v4126 = vunpack.c.h.b16 %v3937
    %v4127 = vunpack.c.l.b16 %v3938
    %v4128 = vunpack.c.h.b16 %v3938
    %v4129 = vunpack.c.l.b16 %v3939
    %v4130 = vunpack.c.h.b16 %v3939
    %v4131 = vunpack.c.l.b16 %v3940
    %v4132 = vunpack.c.h.b16 %v3940
    %v4133 = vunpack.c.l.b16 %v3941
    %v4134 = vunpack.c.h.b16 %v3941
    %v4135 = vunpack.c.l.b16 %v3942
    %v4136 = vunpack.c.h.b16 %v3942
    %v4137 = vunpack.c.l.b16 %v3943
    %v4138 = vunpack.c.h.b16 %v3943
    %v4139 = vunpack.c.l.b16 %v3944
    %v4140 = vunpack.c.h.b16 %v3944
    %v4141 = vunpack.c.l.b16 %v3945
    %v4142 = vunpack.c.h.b16 %v3945
    %v4143 = vunpack.c.l.b16 %v3946
    %v4144 = vunpack.c.h.b16 %v3946
    %v4145 = vpack.c.b16 %v4019, %v4017
    %v4146 = vpack.c.b16 %v4020, %v4018
    %v4147 = vpack.c.b16 %v4023, %v4021
    %v4148 = vpack.c.b16 %v4024, %v4022
    %v4149 = vpack.c.b16 %v4027, %v4025
    %v4150 = vpack.c.b16 %v4028, %v4026
    %v4151 = vpack.c.b16 %v4031, %v4029
    %v4152 = vpack.c.b16 %v4032, %v4030
    %v4153 = vpack.c.b16 %v4035, %v4033
    %v4154 = vpack.c.b16 %v4036, %v4034
    %v4155 = vpack.c.b16 %v4039, %v4037
    %v4156 = vpack.c.b16 %v4040, %v4038
    %v4157 = vpack.c.b16 %v4043, %v4041
    %v4158 = vpack.c.b16 %v4044, %v4042
    %v4159 = vpack.c.b16 %v4047, %v4045
    %v4160 = vpack.c.b16 %v4048, %v4046
    %v4161 = vpack.c.b16 %v4051, %v4049
    %v4162 = vpack.c.b16 %v4052, %v4050
    %v4163 = vpack.c.b16 %v4055, %v4053
    %v4164 = vpack.c.b16 %v4056, %v4054
    %v4165 = vpack.c.b16 %v4059, %v4057
    %v4166 = vpack.c.b16 %v4060, %v4058
    %v4167 = vpack.c.b16 %v4063, %v4061
    %v4168 = vpack.c.b16 %v4064, %v4062
    %v4169 = vpack.c.b16 %v4067, %v4065
    %v4170 = vpack.c.b16 %v4068, %v4066
    %v4171 = vpack.c.b16 %v4071, %v4069
    %v4172 = vpack.c.b16 %v4072, %v4070
    %v4173 = vpack.c.b16 %v4075, %v4073
    %v4174 = vpack.c.b16 %v4076, %v4074
    %v4175 = vpack.c.b16 %v4079, %v4077
    %v4176 = vpack.c.b16 %v4080, %v4078
    %v4177 = vpack.c.b16 %v4083, %v4081
    %v4178 = vpack.c.b16 %v4084, %v4082
    %v4179 = vpack.c.b16 %v4087, %v4085
    %v4180 = vpack.c.b16 %v4088, %v4086
    %v4181 = vpack.c.b16 %v4091, %v4089
    %v4182 = vpack.c.b16 %v4092, %v4090
    %v4183 = vpack.c.b16 %v4095, %v4093
    %v4184 = vpack.c.b16 %v4096, %v4094
    %v4185 = vpack.c.b16 %v4099, %v4097
    %v4186 = vpack.c.b16 %v4100, %v4098
    %v4187 = vpack.c.b16 %v4103, %v4101
    %v4188 = vpack.c.b16 %v4104, %v4102
    %v4189 = vpack.c.b16 %v4107, %v4105
    %v4190 = vpack.c.b16 %v4108, %v4106
    %v4191 = vpack.c.b16 %v4111, %v4109
    %v4192 = vpack.c.b16 %v4112, %v4110
    %v4193 = vpack.c.b16 %v4115, %v4113
    %v4194 = vpack.c.b16 %v4116, %v4114
    %v4195 = vpack.c.b16 %v4119, %v4117
    %v4196 = vpack.c.b16 %v4120, %v4118
    %v4197 = vpack.c.b16 %v4123, %v4121
    %v4198 = vpack.c.b16 %v4124, %v4122
    %v4199 = vpack.c.b16 %v4127, %v4125
    %v4200 = vpack.c.b16 %v4128, %v4126
    %v4201 = vpack.c.b16 %v4131, %v4129
    %v4202 = vpack.c.b16 %v4132, %v4130
    %v4203 = vpack.c.b16 %v4135, %v4133
    %v4204 = vpack.c.b16 %v4136, %v4134
    %v4205 = vpack.c.b16 %v4139, %v4137
    %v4206 = vpack.c.b16 %v4140, %v4138
    %v4207 = vpack.c.b16 %v4143, %v4141
    %v4208 = vpack.c.b16 %v4144, %v4142
    %4273 = vmatpush.bf16.msra.mxu0 %v4159
    %4274 = vmatpush.bf16.msra.mxu0 %v4157
    %4275 = vmatpush.bf16.msra.mxu0 %v4155
    %4276 = vmatpush.bf16.msra.mxu0 %v4153
    %4277 = vmatpush.bf16.msra.mxu0 %v4151
    %4278 = vmatpush.bf16.msra.mxu0 %v4149
    %4279 = vmatpush.bf16.msra.mxu0 %v4147
    %4280 = vmatpush.bf16.msra.mxu0 %v4145
    %4281 = vmatmul.bf16.gmra.mxu0 %v3851
    %v4282 = vpop.f32.mrf.mxu0
    %v4283 = vadd.f32 %v3949, %v4282
    %v4284 = vpop.f32.mrf.mxu0
    %v4285 = vadd.f32 %v3949, %v4284
    %4286 = vmatmul.bf16.gmra.mxu0 %v3855
    %v4287 = vpop.f32.mrf.mxu0
    %v4288 = vadd.f32 %v3949, %v4287
    %v4289 = vpop.f32.mrf.mxu0
    %v4290 = vadd.f32 %v3949, %v4289
    %4291 = vmatmul.bf16.gmra.mxu0 %v3859
    %v4292 = vpop.f32.mrf.mxu0
    %v4293 = vadd.f32 %v3949, %v4292
    %v4294 = vpop.f32.mrf.mxu0
    %v4295 = vadd.f32 %v3949, %v4294
    %4296 = vmatmul.bf16.gmra.mxu0 %v3863
    %v4297 = vpop.f32.mrf.mxu0
    %v4298 = vadd.f32 %v3949, %v4297
    %v4299 = vpop.f32.mrf.mxu0
    %v4300 = vadd.f32 %v3949, %v4299
    %4301 = vmatmul.bf16.gmra.mxu0 %v3867
    %v4302 = vpop.f32.mrf.mxu0
    %v4303 = vadd.f32 %v3949, %v4302
    %v4304 = vpop.f32.mrf.mxu0
    %v4305 = vadd.f32 %v3949, %v4304
    %4306 = vmatmul.bf16.gmra.mxu0 %v3871
    %v4307 = vpop.f32.mrf.mxu0
    %v4308 = vadd.f32 %v3949, %v4307
    %v4309 = vpop.f32.mrf.mxu0
    %v4310 = vadd.f32 %v3949, %v4309
    %4311 = vmatmul.bf16.gmra.mxu0 %v3875
    %v4312 = vpop.f32.mrf.mxu0
    %v4313 = vadd.f32 %v3949, %v4312
    %v4314 = vpop.f32.mrf.mxu0
    %v4315 = vadd.f32 %v3949, %v4314
    %4316 = vmatmul.bf16.gmra.mxu0 %v3879
    %v4317 = vpop.f32.mrf.mxu0
    %v4318 = vadd.f32 %v3949, %v4317
    %v4319 = vpop.f32.mrf.mxu0
    %v4320 = vadd.f32 %v3949, %v4319
    %4321 = vdwg.mxu0
    %4322 = vmatpush.bf16.msra.mxu0 %v4175
    %4323 = vmatpush.bf16.msra.mxu0 %v4173
    %4324 = vmatpush.bf16.msra.mxu0 %v4171
    %4325 = vmatpush.bf16.msra.mxu0 %v4169
    %4326 = vmatpush.bf16.msra.mxu0 %v4167
    %4327 = vmatpush.bf16.msra.mxu0 %v4165
    %4328 = vmatpush.bf16.msra.mxu0 %v4163
    %4329 = vmatpush.bf16.msra.mxu0 %v4161
    %4330 = vmatmul.bf16.gmra.mxu0 %v3852
    %v4331 = vpop.f32.mrf.mxu0
    %v4332 = vadd.f32 %v4283, %v4331
    %v4333 = vpop.f32.mrf.mxu0
    %v4334 = vadd.f32 %v4285, %v4333
    %4335 = vmatmul.bf16.gmra.mxu0 %v3856
    %v4336 = vpop.f32.mrf.mxu0
    %v4337 = vadd.f32 %v4288, %v4336
    %v4338 = vpop.f32.mrf.mxu0
    %v4339 = vadd.f32 %v4290, %v4338
    %4340 = vmatmul.bf16.gmra.mxu0 %v3860
    %v4341 = vpop.f32.mrf.mxu0
    %v4342 = vadd.f32 %v4293, %v4341
    %v4343 = vpop.f32.mrf.mxu0
    %v4344 = vadd.f32 %v4295, %v4343
    %4345 = vmatmul.bf16.gmra.mxu0 %v3864
    %v4346 = vpop.f32.mrf.mxu0
    %v4347 = vadd.f32 %v4298, %v4346
    %v4348 = vpop.f32.mrf.mxu0
    %v4349 = vadd.f32 %v4300, %v4348
    %4350 = vmatmul.bf16.gmra.mxu0 %v3868
    %v4351 = vpop.f32.mrf.mxu0
    %v4352 = vadd.f32 %v4303, %v4351
    %v4353 = vpop.f32.mrf.mxu0
    %v4354 = vadd.f32 %v4305, %v4353
    %4355 = vmatmul.bf16.gmra.mxu0 %v3872
    %v4356 = vpop.f32.mrf.mxu0
    %v4357 = vadd.f32 %v4308, %v4356
    %v4358 = vpop.f32.mrf.mxu0
    %v4359 = vadd.f32 %v4310, %v4358
    %4360 = vmatmul.bf16.gmra.mxu0 %v3876
    %v4361 = vpop.f32.mrf.mxu0
    %v4362 = vadd.f32 %v4313, %v4361
    %v4363 = vpop.f32.mrf.mxu0
    %v4364 = vadd.f32 %v4315, %v4363
    %4365 = vmatmul.bf16.gmra.mxu0 %v3880
    %v4366 = vpop.f32.mrf.mxu0
    %v4367 = vadd.f32 %v4318, %v4366
    %v4368 = vpop.f32.mrf.mxu0
    %v4369 = vadd.f32 %v4320, %v4368
    %4370 = vdwg.mxu0
    %4371 = vmatpush.bf16.msra.mxu0 %v4191
    %4372 = vmatpush.bf16.msra.mxu0 %v4189
    %4373 = vmatpush.bf16.msra.mxu0 %v4187
    %4374 = vmatpush.bf16.msra.mxu0 %v4185
    %4375 = vmatpush.bf16.msra.mxu0 %v4183
    %4376 = vmatpush.bf16.msra.mxu0 %v4181
    %4377 = vmatpush.bf16.msra.mxu0 %v4179
    %4378 = vmatpush.bf16.msra.mxu0 %v4177
    %4379 = vmatmul.bf16.gmra.mxu0 %v3853
    %v4380 = vpop.f32.mrf.mxu0
    %v4381 = vadd.f32 %v4332, %v4380
    %v4382 = vpop.f32.mrf.mxu0
    %v4383 = vadd.f32 %v4334, %v4382
    %4384 = vmatmul.bf16.gmra.mxu0 %v3857
    %v4385 = vpop.f32.mrf.mxu0
    %v4386 = vadd.f32 %v4337, %v4385
    %v4387 = vpop.f32.mrf.mxu0
    %v4388 = vadd.f32 %v4339, %v4387
    %4389 = vmatmul.bf16.gmra.mxu0 %v3861
    %v4390 = vpop.f32.mrf.mxu0
    %v4391 = vadd.f32 %v4342, %v4390
    %v4392 = vpop.f32.mrf.mxu0
    %v4393 = vadd.f32 %v4344, %v4392
    %4394 = vmatmul.bf16.gmra.mxu0 %v3865
    %v4395 = vpop.f32.mrf.mxu0
    %v4396 = vadd.f32 %v4347, %v4395
    %v4397 = vpop.f32.mrf.mxu0
    %v4398 = vadd.f32 %v4349, %v4397
    %4399 = vmatmul.bf16.gmra.mxu0 %v3869
    %v4400 = vpop.f32.mrf.mxu0
    %v4401 = vadd.f32 %v4352, %v4400
    %v4402 = vpop.f32.mrf.mxu0
    %v4403 = vadd.f32 %v4354, %v4402
    %4404 = vmatmul.bf16.gmra.mxu0 %v3873
    %v4405 = vpop.f32.mrf.mxu0
    %v4406 = vadd.f32 %v4357, %v4405
    %v4407 = vpop.f32.mrf.mxu0
    %v4408 = vadd.f32 %v4359, %v4407
    %4409 = vmatmul.bf16.gmra.mxu0 %v3877
    %v4410 = vpop.f32.mrf.mxu0
    %v4411 = vadd.f32 %v4362, %v4410
    %v4412 = vpop.f32.mrf.mxu0
    %v4413 = vadd.f32 %v4364, %v4412
    %4414 = vmatmul.bf16.gmra.mxu0 %v3881
    %v4415 = vpop.f32.mrf.mxu0
    %v4416 = vadd.f32 %v4367, %v4415
    %v4417 = vpop.f32.mrf.mxu0
    %v4418 = vadd.f32 %v4369, %v4417
    %4419 = vdwg.mxu0
    %4420 = vmatpush.bf16.msra.mxu0 %v4207
    %4421 = vmatpush.bf16.msra.mxu0 %v4205
    %4422 = vmatpush.bf16.msra.mxu0 %v4203
    %4423 = vmatpush.bf16.msra.mxu0 %v4201
    %4424 = vmatpush.bf16.msra.mxu0 %v4199
    %4425 = vmatpush.bf16.msra.mxu0 %v4197
    %4426 = vmatpush.bf16.msra.mxu0 %v4195
    %4427 = vmatpush.bf16.msra.mxu0 %v4193
    %4428 = vmatmul.bf16.gmra.mxu0 %v3854
    %v4429 = vpop.f32.mrf.mxu0
    %v4430 = vadd.f32 %v4381, %v4429
    %v4431 = vpop.f32.mrf.mxu0
    %v4432 = vadd.f32 %v4383, %v4431
    %4433 = vmatmul.bf16.gmra.mxu0 %v3858
    %v4434 = vpop.f32.mrf.mxu0
    %v4435 = vadd.f32 %v4386, %v4434
    %v4436 = vpop.f32.mrf.mxu0
    %v4437 = vadd.f32 %v4388, %v4436
    %4438 = vmatmul.bf16.gmra.mxu0 %v3862
    %v4439 = vpop.f32.mrf.mxu0
    %v4440 = vadd.f32 %v4391, %v4439
    %v4441 = vpop.f32.mrf.mxu0
    %v4442 = vadd.f32 %v4393, %v4441
    %4443 = vmatmul.bf16.gmra.mxu0 %v3866
    %v4444 = vpop.f32.mrf.mxu0
    %v4445 = vadd.f32 %v4396, %v4444
    %v4446 = vpop.f32.mrf.mxu0
    %v4447 = vadd.f32 %v4398, %v4446
    %4448 = vmatmul.bf16.gmra.mxu0 %v3870
    %v4449 = vpop.f32.mrf.mxu0
    %v4450 = vadd.f32 %v4401, %v4449
    %v4451 = vpop.f32.mrf.mxu0
    %v4452 = vadd.f32 %v4403, %v4451
    %4453 = vmatmul.bf16.gmra.mxu0 %v3874
    %v4454 = vpop.f32.mrf.mxu0
    %v4455 = vadd.f32 %v4406, %v4454
    %v4456 = vpop.f32.mrf.mxu0
    %v4457 = vadd.f32 %v4408, %v4456
    %4458 = vmatmul.bf16.gmra.mxu0 %v3878
    %v4459 = vpop.f32.mrf.mxu0
    %v4460 = vadd.f32 %v4411, %v4459
    %v4461 = vpop.f32.mrf.mxu0
    %v4462 = vadd.f32 %v4413, %v4461
    %4463 = vmatmul.bf16.gmra.mxu0 %v3882
    %v4464 = vpop.f32.mrf.mxu0
    %v4465 = vadd.f32 %v4416, %v4464
    %v4466 = vpop.f32.mrf.mxu0
    %v4467 = vadd.f32 %v4418, %v4466
    %4468 = vdwg.mxu0
    %4469 = vmatpush.bf16.msra.mxu0 %v4160
    %4470 = vmatpush.bf16.msra.mxu0 %v4158
    %4471 = vmatpush.bf16.msra.mxu0 %v4156
    %4472 = vmatpush.bf16.msra.mxu0 %v4154
    %4473 = vmatpush.bf16.msra.mxu0 %v4152
    %4474 = vmatpush.bf16.msra.mxu0 %v4150
    %4475 = vmatpush.bf16.msra.mxu0 %v4148
    %4476 = vmatpush.bf16.msra.mxu0 %v4146
    %4477 = vmatmul.bf16.gmra.mxu0 %v3851
    %v4478 = vpop.f32.mrf.mxu0
    %v4479 = vadd.f32 %v3950, %v4478
    %v4480 = vpop.f32.mrf.mxu0
    %v4481 = vadd.f32 %v3950, %v4480
    %4482 = vmatmul.bf16.gmra.mxu0 %v3855
    %v4483 = vpop.f32.mrf.mxu0
    %v4484 = vadd.f32 %v3950, %v4483
    %v4485 = vpop.f32.mrf.mxu0
    %v4486 = vadd.f32 %v3950, %v4485
    %4487 = vmatmul.bf16.gmra.mxu0 %v3859
    %v4488 = vpop.f32.mrf.mxu0
    %v4489 = vadd.f32 %v3950, %v4488
    %v4490 = vpop.f32.mrf.mxu0
    %v4491 = vadd.f32 %v3950, %v4490
    %4492 = vmatmul.bf16.gmra.mxu0 %v3863
    %v4493 = vpop.f32.mrf.mxu0
    %v4494 = vadd.f32 %v3950, %v4493
    %v4495 = vpop.f32.mrf.mxu0
    %v4496 = vadd.f32 %v3950, %v4495
    %4497 = vmatmul.bf16.gmra.mxu0 %v3867
    %v4498 = vpop.f32.mrf.mxu0
    %v4499 = vadd.f32 %v3950, %v4498
    %v4500 = vpop.f32.mrf.mxu0
    %v4501 = vadd.f32 %v3950, %v4500
    %4502 = vmatmul.bf16.gmra.mxu0 %v3871
    %v4503 = vpop.f32.mrf.mxu0
    %v4504 = vadd.f32 %v3950, %v4503
    %v4505 = vpop.f32.mrf.mxu0
    %v4506 = vadd.f32 %v3950, %v4505
    %4507 = vmatmul.bf16.gmra.mxu0 %v3875
    %v4508 = vpop.f32.mrf.mxu0
    %v4509 = vadd.f32 %v3950, %v4508
    %v4510 = vpop.f32.mrf.mxu0
    %v4511 = vadd.f32 %v3950, %v4510
    %4512 = vmatmul.bf16.gmra.mxu0 %v3879
    %v4513 = vpop.f32.mrf.mxu0
    %v4514 = vadd.f32 %v3950, %v4513
    %v4515 = vpop.f32.mrf.mxu0
    %v4516 = vadd.f32 %v3950, %v4515
    %4517 = vdwg.mxu0
    %4518 = vmatpush.bf16.msra.mxu0 %v4176
    %4519 = vmatpush.bf16.msra.mxu0 %v4174
    %4520 = vmatpush.bf16.msra.mxu0 %v4172
    %4521 = vmatpush.bf16.msra.mxu0 %v4170
    %4522 = vmatpush.bf16.msra.mxu0 %v4168
    %4523 = vmatpush.bf16.msra.mxu0 %v4166
    %4524 = vmatpush.bf16.msra.mxu0 %v4164
    %4525 = vmatpush.bf16.msra.mxu0 %v4162
    %4526 = vmatmul.bf16.gmra.mxu0 %v3852
    %v4527 = vpop.f32.mrf.mxu0
    %v4528 = vadd.f32 %v4479, %v4527
    %v4529 = vpop.f32.mrf.mxu0
    %v4530 = vadd.f32 %v4481, %v4529
    %4531 = vmatmul.bf16.gmra.mxu0 %v3856
    %v4532 = vpop.f32.mrf.mxu0
    %v4533 = vadd.f32 %v4484, %v4532
    %v4534 = vpop.f32.mrf.mxu0
    %v4535 = vadd.f32 %v4486, %v4534
    %4536 = vmatmul.bf16.gmra.mxu0 %v3860
    %v4537 = vpop.f32.mrf.mxu0
    %v4538 = vadd.f32 %v4489, %v4537
    %v4539 = vpop.f32.mrf.mxu0
    %v4540 = vadd.f32 %v4491, %v4539
    %4541 = vmatmul.bf16.gmra.mxu0 %v3864
    %v4542 = vpop.f32.mrf.mxu0
    %v4543 = vadd.f32 %v4494, %v4542
    %v4544 = vpop.f32.mrf.mxu0
    %v4545 = vadd.f32 %v4496, %v4544
    %4546 = vmatmul.bf16.gmra.mxu0 %v3868
    %v4547 = vpop.f32.mrf.mxu0
    %v4548 = vadd.f32 %v4499, %v4547
    %v4549 = vpop.f32.mrf.mxu0
    %v4550 = vadd.f32 %v4501, %v4549
    %4551 = vmatmul.bf16.gmra.mxu0 %v3872
    %v4552 = vpop.f32.mrf.mxu0
    %v4553 = vadd.f32 %v4504, %v4552
    %v4554 = vpop.f32.mrf.mxu0
    %v4555 = vadd.f32 %v4506, %v4554
    %4556 = vmatmul.bf16.gmra.mxu0 %v3876
    %v4557 = vpop.f32.mrf.mxu0
    %v4558 = vadd.f32 %v4509, %v4557
    %v4559 = vpop.f32.mrf.mxu0
    %v4560 = vadd.f32 %v4511, %v4559
    %4561 = vmatmul.bf16.gmra.mxu0 %v3880
    %v4562 = vpop.f32.mrf.mxu0
    %v4563 = vadd.f32 %v4514, %v4562
    %v4564 = vpop.f32.mrf.mxu0
    %v4565 = vadd.f32 %v4516, %v4564
    %4566 = vdwg.mxu0
    %4567 = vmatpush.bf16.msra.mxu0 %v4192
    %4568 = vmatpush.bf16.msra.mxu0 %v4190
    %4569 = vmatpush.bf16.msra.mxu0 %v4188
    %4570 = vmatpush.bf16.msra.mxu0 %v4186
    %4571 = vmatpush.bf16.msra.mxu0 %v4184
    %4572 = vmatpush.bf16.msra.mxu0 %v4182
    %4573 = vmatpush.bf16.msra.mxu0 %v4180
    %4574 = vmatpush.bf16.msra.mxu0 %v4178
    %4575 = vmatmul.bf16.gmra.mxu0 %v3853
    %v4576 = vpop.f32.mrf.mxu0
    %v4577 = vadd.f32 %v4528, %v4576
    %v4578 = vpop.f32.mrf.mxu0
    %v4579 = vadd.f32 %v4530, %v4578
    %4580 = vmatmul.bf16.gmra.mxu0 %v3857
    %v4581 = vpop.f32.mrf.mxu0
    %v4582 = vadd.f32 %v4533, %v4581
    %v4583 = vpop.f32.mrf.mxu0
    %v4584 = vadd.f32 %v4535, %v4583
    %4585 = vmatmul.bf16.gmra.mxu0 %v3861
    %v4586 = vpop.f32.mrf.mxu0
    %v4587 = vadd.f32 %v4538, %v4586
    %v4588 = vpop.f32.mrf.mxu0
    %v4589 = vadd.f32 %v4540, %v4588
    %4590 = vmatmul.bf16.gmra.mxu0 %v3865
    %v4591 = vpop.f32.mrf.mxu0
    %v4592 = vadd.f32 %v4543, %v4591
    %v4593 = vpop.f32.mrf.mxu0
    %v4594 = vadd.f32 %v4545, %v4593
    %4595 = vmatmul.bf16.gmra.mxu0 %v3869
    %v4596 = vpop.f32.mrf.mxu0
    %v4597 = vadd.f32 %v4548, %v4596
    %v4598 = vpop.f32.mrf.mxu0
    %v4599 = vadd.f32 %v4550, %v4598
    %4600 = vmatmul.bf16.gmra.mxu0 %v3873
    %v4601 = vpop.f32.mrf.mxu0
    %v4602 = vadd.f32 %v4553, %v4601
    %v4603 = vpop.f32.mrf.mxu0
    %v4604 = vadd.f32 %v4555, %v4603
    %4605 = vmatmul.bf16.gmra.mxu0 %v3877
    %v4606 = vpop.f32.mrf.mxu0
    %v4607 = vadd.f32 %v4558, %v4606
    %v4608 = vpop.f32.mrf.mxu0
    %v4609 = vadd.f32 %v4560, %v4608
    %4610 = vmatmul.bf16.gmra.mxu0 %v3881
    %v4611 = vpop.f32.mrf.mxu0
    %v4612 = vadd.f32 %v4563, %v4611
    %v4613 = vpop.f32.mrf.mxu0
    %v4614 = vadd.f32 %v4565, %v4613
    %4615 = vdwg.mxu0
    %4616 = vmatpush.bf16.msra.mxu0 %v4208
    %4617 = vmatpush.bf16.msra.mxu0 %v4206
    %4618 = vmatpush.bf16.msra.mxu0 %v4204
    %4619 = vmatpush.bf16.msra.mxu0 %v4202
    %4620 = vmatpush.bf16.msra.mxu0 %v4200
    %4621 = vmatpush.bf16.msra.mxu0 %v4198
    %4622 = vmatpush.bf16.msra.mxu0 %v4196
    %4623 = vmatpush.bf16.msra.mxu0 %v4194
    %4624 = vmatmul.bf16.gmra.mxu0 %v3854
    %v4625 = vpop.f32.mrf.mxu0
    %v4626 = vadd.f32 %v4577, %v4625
    %v4627 = vpop.f32.mrf.mxu0
    %v4628 = vadd.f32 %v4579, %v4627
    %4629 = vmatmul.bf16.gmra.mxu0 %v3858
    %v4630 = vpop.f32.mrf.mxu0
    %v4631 = vadd.f32 %v4582, %v4630
    %v4632 = vpop.f32.mrf.mxu0
    %v4633 = vadd.f32 %v4584, %v4632
    %4634 = vmatmul.bf16.gmra.mxu0 %v3862
    %v4635 = vpop.f32.mrf.mxu0
    %v4636 = vadd.f32 %v4587, %v4635
    %v4637 = vpop.f32.mrf.mxu0
    %v4638 = vadd.f32 %v4589, %v4637
    %4639 = vmatmul.bf16.gmra.mxu0 %v3866
    %v4640 = vpop.f32.mrf.mxu0
    %v4641 = vadd.f32 %v4592, %v4640
    %v4642 = vpop.f32.mrf.mxu0
    %v4643 = vadd.f32 %v4594, %v4642
    %4644 = vmatmul.bf16.gmra.mxu0 %v3870
    %v4645 = vpop.f32.mrf.mxu0
    %v4646 = vadd.f32 %v4597, %v4645
    %v4647 = vpop.f32.mrf.mxu0
    %v4648 = vadd.f32 %v4599, %v4647
    %4649 = vmatmul.bf16.gmra.mxu0 %v3874
    %v4650 = vpop.f32.mrf.mxu0
    %v4651 = vadd.f32 %v4602, %v4650
    %v4652 = vpop.f32.mrf.mxu0
    %v4653 = vadd.f32 %v4604, %v4652
    %4654 = vmatmul.bf16.gmra.mxu0 %v3878
    %v4655 = vpop.f32.mrf.mxu0
    %v4656 = vadd.f32 %v4607, %v4655
    %v4657 = vpop.f32.mrf.mxu0
    %v4658 = vadd.f32 %v4609, %v4657
    %4659 = vmatmul.bf16.gmra.mxu0 %v3882
    %v4660 = vpop.f32.mrf.mxu0
    %v4661 = vadd.f32 %v4612, %v4660
    %v4662 = vpop.f32.mrf.mxu0
    %v4663 = vadd.f32 %v4614, %v4662
    %4664 = vdwg.mxu0
    %v4665 = vld [vmem:[#allocation13] sm:$0x3]
    %v4666 = vld [vmem:[%s9] sm:$0x3]
    %v4667 = vadd.f32 %v4430, %v4432
    %v4668 = vadd.f32 %v4667, %v4435
    %v4669 = vadd.f32 %v4668, %v4437
    %v4670 = vadd.f32 %v4669, %v4440
    %v4671 = vadd.f32 %v4670, %v4442
    %v4672 = vadd.f32 %v4671, %v4445
    %v4673 = vadd.f32 %v4672, %v4447
    %v4674 = vadd.f32 %v4673, %v4450
    %v4675 = vadd.f32 %v4674, %v4452
    %v4676 = vadd.f32 %v4675, %v4455
    %v4677 = vadd.f32 %v4676, %v4457
    %v4678 = vadd.f32 %v4677, %v4460
    %v4679 = vadd.f32 %v4678, %v4462
    %v4680 = vadd.f32 %v4679, %v4465
    %v4681 = vadd.f32 %v4680, %v4467
    %v4682 = vrot.slane %v4681, 4
    %v4683 = vadd.f32 %v4681, %v4682
    %v4684 = vrot.slane %v4683, 2
    %v4685 = vadd.f32 %v4683, %v4684
    %v4686 = vrot.slane %v4685, 1
    %v4687 = vadd.f32 %v4685, %v4686
    %v4688 = vadd.f32 %v4626, %v4628
    %v4689 = vadd.f32 %v4688, %v4631
    %v4690 = vadd.f32 %v4689, %v4633
    %v4691 = vadd.f32 %v4690, %v4636
    %v4692 = vadd.f32 %v4691, %v4638
    %v4693 = vadd.f32 %v4692, %v4641
    %v4694 = vadd.f32 %v4693, %v4643
    %v4695 = vadd.f32 %v4694, %v4646
    %v4696 = vadd.f32 %v4695, %v4648
    %v4697 = vadd.f32 %v4696, %v4651
    %v4698 = vadd.f32 %v4697, %v4653
    %v4699 = vadd.f32 %v4698, %v4656
    %v4700 = vadd.f32 %v4699, %v4658
    %v4701 = vadd.f32 %v4700, %v4661
    %v4702 = vadd.f32 %v4701, %v4663
    %v4703 = vrot.slane %v4702, 4
    %v4704 = vadd.f32 %v4702, %v4703
    %v4705 = vrot.slane %v4704, 2
    %v4706 = vadd.f32 %v4704, %v4705
    %v4707 = vrot.slane %v4706, 1
    %v4708 = vadd.f32 %v4706, %v4707
    %v4709 = vmul.f32 %v4687, %v3345
    %v4710 = vmul.f32 %v4708, %v3345
    %v4711 = vsub.f32 %v4430, %v4709
    %v4712 = vsub.f32 %v4626, %v4710
    %v4713 = vsub.f32 %v4432, %v4709
    %v4714 = vsub.f32 %v4628, %v4710
    %v4715 = vsub.f32 %v4435, %v4709
    %v4716 = vsub.f32 %v4631, %v4710
    %v4717 = vsub.f32 %v4437, %v4709
    %v4718 = vsub.f32 %v4633, %v4710
    %v4719 = vsub.f32 %v4440, %v4709
    %v4720 = vsub.f32 %v4636, %v4710
    %v4721 = vsub.f32 %v4442, %v4709
    %v4722 = vsub.f32 %v4638, %v4710
    %v4723 = vsub.f32 %v4445, %v4709
    %v4724 = vsub.f32 %v4641, %v4710
    %v4725 = vsub.f32 %v4447, %v4709
    %v4726 = vsub.f32 %v4643, %v4710
    %v4727 = vsub.f32 %v4450, %v4709
    %v4728 = vsub.f32 %v4646, %v4710
    %v4729 = vsub.f32 %v4452, %v4709
    %v4730 = vsub.f32 %v4648, %v4710
    %v4731 = vsub.f32 %v4455, %v4709
    %v4732 = vsub.f32 %v4651, %v4710
    %v4733 = vsub.f32 %v4457, %v4709
    %v4734 = vsub.f32 %v4653, %v4710
    %v4735 = vsub.f32 %v4460, %v4709
    %v4736 = vsub.f32 %v4656, %v4710
    %v4737 = vsub.f32 %v4462, %v4709
    %v4738 = vsub.f32 %v4658, %v4710
    %v4739 = vsub.f32 %v4465, %v4709
    %v4740 = vsub.f32 %v4661, %v4710
    %v4741 = vsub.f32 %v4467, %v4709
    %v4742 = vsub.f32 %v4663, %v4710
    %v4743 = vmul.f32 %v4711, %v4711
    %v4744 = vmul.f32 %v4712, %v4712
    %v4745 = vmul.f32 %v4713, %v4713
    %v4746 = vmul.f32 %v4714, %v4714
    %v4747 = vmul.f32 %v4715, %v4715
    %v4748 = vmul.f32 %v4716, %v4716
    %v4749 = vmul.f32 %v4717, %v4717
    %v4750 = vmul.f32 %v4718, %v4718
    %v4751 = vmul.f32 %v4719, %v4719
    %v4752 = vmul.f32 %v4720, %v4720
    %v4753 = vmul.f32 %v4721, %v4721
    %v4754 = vmul.f32 %v4722, %v4722
    %v4755 = vmul.f32 %v4723, %v4723
    %v4756 = vmul.f32 %v4724, %v4724
    %v4757 = vmul.f32 %v4725, %v4725
    %v4758 = vmul.f32 %v4726, %v4726
    %v4759 = vmul.f32 %v4727, %v4727
    %v4760 = vmul.f32 %v4728, %v4728
    %v4761 = vmul.f32 %v4729, %v4729
    %v4762 = vmul.f32 %v4730, %v4730
    %v4763 = vmul.f32 %v4731, %v4731
    %v4764 = vmul.f32 %v4732, %v4732
    %v4765 = vmul.f32 %v4733, %v4733
    %v4766 = vmul.f32 %v4734, %v4734
    %v4767 = vmul.f32 %v4735, %v4735
    %v4768 = vmul.f32 %v4736, %v4736
    %v4769 = vmul.f32 %v4737, %v4737
    %v4770 = vmul.f32 %v4738, %v4738
    %v4771 = vmul.f32 %v4739, %v4739
    %v4772 = vmul.f32 %v4740, %v4740
    %v4773 = vmul.f32 %v4741, %v4741
    %v4774 = vmul.f32 %v4742, %v4742
    %v4775 = vadd.f32 %v4743, %v4745
    %v4776 = vadd.f32 %v4775, %v4747
    %v4777 = vadd.f32 %v4776, %v4749
    %v4778 = vadd.f32 %v4777, %v4751
    %v4779 = vadd.f32 %v4778, %v4753
    %v4780 = vadd.f32 %v4779, %v4755
    %v4781 = vadd.f32 %v4780, %v4757
    %v4782 = vadd.f32 %v4781, %v4759
    %v4783 = vadd.f32 %v4782, %v4761
    %v4784 = vadd.f32 %v4783, %v4763
    %v4785 = vadd.f32 %v4784, %v4765
    %v4786 = vadd.f32 %v4785, %v4767
    %v4787 = vadd.f32 %v4786, %v4769
    %v4788 = vadd.f32 %v4787, %v4771
    %v4789 = vadd.f32 %v4788, %v4773
    %v4790 = vrot.slane %v4789, 4
    %v4791 = vadd.f32 %v4789, %v4790
    %v4792 = vrot.slane %v4791, 2
    %v4793 = vadd.f32 %v4791, %v4792
    %v4794 = vrot.slane %v4793, 1
    %v4795 = vadd.f32 %v4793, %v4794
    %v4796 = vadd.f32 %v4744, %v4746
    %v4797 = vadd.f32 %v4796, %v4748
    %v4798 = vadd.f32 %v4797, %v4750
    %v4799 = vadd.f32 %v4798, %v4752
    %v4800 = vadd.f32 %v4799, %v4754
    %v4801 = vadd.f32 %v4800, %v4756
    %v4802 = vadd.f32 %v4801, %v4758
    %v4803 = vadd.f32 %v4802, %v4760
    %v4804 = vadd.f32 %v4803, %v4762
    %v4805 = vadd.f32 %v4804, %v4764
    %v4806 = vadd.f32 %v4805, %v4766
    %v4807 = vadd.f32 %v4806, %v4768
    %v4808 = vadd.f32 %v4807, %v4770
    %v4809 = vadd.f32 %v4808, %v4772
    %v4810 = vadd.f32 %v4809, %v4774
    %v4811 = vrot.slane %v4810, 4
    %v4812 = vadd.f32 %v4810, %v4811
    %v4813 = vrot.slane %v4812, 2
    %v4814 = vadd.f32 %v4812, %v4813
    %v4815 = vrot.slane %v4814, 1
    %v4816 = vadd.f32 %v4814, %v4815
    %v4817 = vmul.f32 %v4795, %v3345
    %v4818 = vmul.f32 %v4816, %v3345
    %v4819 = vadd.f32 %v4817, 1e-05
    %v4820 = vadd.f32 %v4818, 1e-05
    %v4821 = vrsqrt.pop %v4819
    %v4822 = vmul.f32 %v4821, %v4819
    %v4823 = vmul.f32 %v4822, %v4821
    %v4824 = vmul.f32 0.5, %v4823
    %v4825 = vsub.f32 1.5, %v4824
    %v4826 = vmul.f32 %v4821, %v4825
    %vm4827 = vweird.f32 %v4819
    %vm4828 = vweird.f32 %v4821
    %vm4829 = vmor %vm4827, %vm4828
    %v4830 = vsel %vm4829, %v4821, %v4826
    %v4831 = vrsqrt.pop %v4820
    %v4832 = vmul.f32 %v4831, %v4820
    %v4833 = vmul.f32 %v4832, %v4831
    %v4834 = vmul.f32 0.5, %v4833
    %v4835 = vsub.f32 1.5, %v4834
    %v4836 = vmul.f32 %v4831, %v4835
    %vm4837 = vweird.f32 %v4820
    %vm4838 = vweird.f32 %v4831
    %vm4839 = vmor %vm4837, %vm4838
    %v4840 = vsel %vm4839, %v4831, %v4836
    %v4843 = vrot.slane %v4840, 7
    %v4844 = vsel %vm3617, %v4830, %v4843
    %v4846 = vmul.f32 %v4665, %v4844
    %v4848 = vperm.slane %v4846, 0
    %v4849 = vperm.slane %v4846, 1
    %v4852 = vmul.f32 %v4430, %v4848
    %v4853 = vmul.f32 %v4626, %v4849
    %v4854 = vmul.f32 %v4432, %v4848
    %v4855 = vmul.f32 %v4628, %v4849
    %v4856 = vmul.f32 %v4435, %v4848
    %v4857 = vmul.f32 %v4631, %v4849
    %v4858 = vmul.f32 %v4437, %v4848
    %v4859 = vmul.f32 %v4633, %v4849
    %v4860 = vmul.f32 %v4440, %v4848
    %v4861 = vmul.f32 %v4636, %v4849
    %v4862 = vmul.f32 %v4442, %v4848
    %v4863 = vmul.f32 %v4638, %v4849
    %v4864 = vmul.f32 %v4445, %v4848
    %v4865 = vmul.f32 %v4641, %v4849
    %v4866 = vmul.f32 %v4447, %v4848
    %v4867 = vmul.f32 %v4643, %v4849
    %v4868 = vmul.f32 %v4450, %v4848
    %v4869 = vmul.f32 %v4646, %v4849
    %v4870 = vmul.f32 %v4452, %v4848
    %v4871 = vmul.f32 %v4648, %v4849
    %v4872 = vmul.f32 %v4455, %v4848
    %v4873 = vmul.f32 %v4651, %v4849
    %v4874 = vmul.f32 %v4457, %v4848
    %v4875 = vmul.f32 %v4653, %v4849
    %v4876 = vmul.f32 %v4460, %v4848
    %v4877 = vmul.f32 %v4656, %v4849
    %v4878 = vmul.f32 %v4462, %v4848
    %v4879 = vmul.f32 %v4658, %v4849
    %v4880 = vmul.f32 %v4465, %v4848
    %v4881 = vmul.f32 %v4661, %v4849
    %v4882 = vmul.f32 %v4467, %v4848
    %v4883 = vmul.f32 %v4663, %v4849
    %v4884 = vmul.f32 %v4709, %v4848
    %v4885 = vmul.f32 %v4710, %v4849
    %v4888 = vrot.slane %v4885, 7
    %v4889 = vsel %vm3617, %v4884, %v4888
    %v4891 = vsub.f32 %v4666, %v4889
    %v4893 = vperm.slane %v4891, 0
    %v4894 = vperm.slane %v4891, 1
    %v4897 = vadd.f32 %v4852, %v4893
    %v4898 = vadd.f32 %v4853, %v4894
    %v4899 = vadd.f32 %v4854, %v4893
    %v4900 = vadd.f32 %v4855, %v4894
    %v4901 = vadd.f32 %v4856, %v4893
    %v4902 = vadd.f32 %v4857, %v4894
    %v4903 = vadd.f32 %v4858, %v4893
    %v4904 = vadd.f32 %v4859, %v4894
    %v4905 = vadd.f32 %v4860, %v4893
    %v4906 = vadd.f32 %v4861, %v4894
    %v4907 = vadd.f32 %v4862, %v4893
    %v4908 = vadd.f32 %v4863, %v4894
    %v4909 = vadd.f32 %v4864, %v4893
    %v4910 = vadd.f32 %v4865, %v4894
    %v4911 = vadd.f32 %v4866, %v4893
    %v4912 = vadd.f32 %v4867, %v4894
    %v4913 = vadd.f32 %v4868, %v4893
    %v4914 = vadd.f32 %v4869, %v4894
    %v4915 = vadd.f32 %v4870, %v4893
    %v4916 = vadd.f32 %v4871, %v4894
    %v4917 = vadd.f32 %v4872, %v4893
    %v4918 = vadd.f32 %v4873, %v4894
    %v4919 = vadd.f32 %v4874, %v4893
    %v4920 = vadd.f32 %v4875, %v4894
    %v4921 = vadd.f32 %v4876, %v4893
    %v4922 = vadd.f32 %v4877, %v4894
    %v4923 = vadd.f32 %v4878, %v4893
    %v4924 = vadd.f32 %v4879, %v4894
    %v4925 = vadd.f32 %v4880, %v4893
    %v4926 = vadd.f32 %v4881, %v4894
    %v4927 = vadd.f32 %v4882, %v4893
    %v4928 = vadd.f32 %v4883, %v4894
    %v4929 = vmax.f32 %v4897, 0.0
    %v4930 = vmax.f32 %v4898, 0.0
    %v4931 = vmax.f32 %v4899, 0.0
    %v4932 = vmax.f32 %v4900, 0.0
    %v4933 = vmax.f32 %v4901, 0.0
    %v4934 = vmax.f32 %v4902, 0.0
    %v4935 = vmax.f32 %v4903, 0.0
    %v4936 = vmax.f32 %v4904, 0.0
    %v4937 = vmax.f32 %v4905, 0.0
    %v4938 = vmax.f32 %v4906, 0.0
    %v4939 = vmax.f32 %v4907, 0.0
    %v4940 = vmax.f32 %v4908, 0.0
    %v4941 = vmax.f32 %v4909, 0.0
    %v4942 = vmax.f32 %v4910, 0.0
    %v4943 = vmax.f32 %v4911, 0.0
    %v4944 = vmax.f32 %v4912, 0.0
    %v4945 = vmax.f32 %v4913, 0.0
    %v4946 = vmax.f32 %v4914, 0.0
    %v4947 = vmax.f32 %v4915, 0.0
    %v4948 = vmax.f32 %v4916, 0.0
    %v4949 = vmax.f32 %v4917, 0.0
    %v4950 = vmax.f32 %v4918, 0.0
    %v4951 = vmax.f32 %v4919, 0.0
    %v4952 = vmax.f32 %v4920, 0.0
    %v4953 = vmax.f32 %v4921, 0.0
    %v4954 = vmax.f32 %v4922, 0.0
    %v4955 = vmax.f32 %v4923, 0.0
    %v4956 = vmax.f32 %v4924, 0.0
    %v4957 = vmax.f32 %v4925, 0.0
    %v4958 = vmax.f32 %v4926, 0.0
    %v4959 = vmax.f32 %v4927, 0.0
    %v4960 = vmax.f32 %v4928, 0.0
    %v4961 = vpack.c.bf16 %v4931, %v4929
    %v4962 = vpack.c.bf16 %v4932, %v4930
    %v4963 = vpack.c.bf16 %v4935, %v4933
    %v4964 = vpack.c.bf16 %v4936, %v4934
    %v4965 = vpack.c.bf16 %v4939, %v4937
    %v4966 = vpack.c.bf16 %v4940, %v4938
    %v4967 = vpack.c.bf16 %v4943, %v4941
    %v4968 = vpack.c.bf16 %v4944, %v4942
    %v4969 = vpack.c.bf16 %v4947, %v4945
    %v4970 = vpack.c.bf16 %v4948, %v4946
    %v4971 = vpack.c.bf16 %v4951, %v4949
    %v4972 = vpack.c.bf16 %v4952, %v4950
    %v4973 = vpack.c.bf16 %v4955, %v4953
    %v4974 = vpack.c.bf16 %v4956, %v4954
    %v4975 = vpack.c.bf16 %v4959, %v4957
    %v4976 = vpack.c.bf16 %v4960, %v4958
    %v4977 = vld [vmem:[#allocation16] sm:$0xf]
    %v4978 = vld [vmem:[#allocation16 + $0x4] sm:$0xf]
    %v4979 = vld [vmem:[#allocation16 + $0x8] sm:$0xf]
    %v4980 = vld [vmem:[#allocation16 + $0xc] sm:$0xf]
    %v4981 = vld [vmem:[#allocation16 + $0x10] sm:$0xf]
    %v4982 = vld [vmem:[#allocation16 + $0x14] sm:$0xf]
    %v4983 = vld [vmem:[#allocation16 + $0x18] sm:$0xf]
    %v4984 = vld [vmem:[#allocation16 + $0x1c] sm:$0xf]
    %v4985 = vld [vmem:[#allocation16 + $0x20] sm:$0xf]
    %v4986 = vld [vmem:[#allocation16 + $0x24] sm:$0xf]
    %v4987 = vld [vmem:[#allocation16 + $0x28] sm:$0xf]
    %v4988 = vld [vmem:[#allocation16 + $0x2c] sm:$0xf]
    %v4989 = vld [vmem:[#allocation16 + $0x30] sm:$0xf]
    %v4990 = vld [vmem:[#allocation16 + $0x34] sm:$0xf]
    %v4991 = vld [vmem:[#allocation16 + $0x38] sm:$0xf]
    %v4992 = vld [vmem:[#allocation16 + $0x3c] sm:$0xf]
    %v4993 = vld [vmem:[#allocation16 + $0x40] sm:$0xf]
    %v4994 = vld [vmem:[#allocation16 + $0x44] sm:$0xf]
    %v4995 = vld [vmem:[#allocation16 + $0x48] sm:$0xf]
    %v4996 = vld [vmem:[#allocation16 + $0x4c] sm:$0xf]
    %v4997 = vld [vmem:[#allocation16 + $0x50] sm:$0xf]
    %v4998 = vld [vmem:[#allocation16 + $0x54] sm:$0xf]
    %v4999 = vld [vmem:[#allocation16 + $0x58] sm:$0xf]
    %v5000 = vld [vmem:[#allocation16 + $0x5c] sm:$0xf]
    %v5001 = vld [vmem:[#allocation16 + $0x60] sm:$0xf]
    %v5002 = vld [vmem:[#allocation16 + $0x64] sm:$0xf]
    %v5003 = vld [vmem:[#allocation16 + $0x68] sm:$0xf]
    %v5004 = vld [vmem:[#allocation16 + $0x6c] sm:$0xf]
    %v5005 = vld [vmem:[#allocation16 + $0x70] sm:$0xf]
    %v5006 = vld [vmem:[#allocation16 + $0x74] sm:$0xf]
    %v5007 = vld [vmem:[#allocation16 + $0x78] sm:$0xf]
    %v5008 = vld [vmem:[#allocation16 + $0x7c] sm:$0xf]
    %v5009 = vld [vmem:[%s12] sm:$0x1]
    %v5011 = vperm.slane %v5009, 0
    %v5045 = vunpack.c.l.b16 %v4977
    %v5046 = vunpack.c.l.b16 %v4978
    %v5047 = vunpack.c.l.b16 %v4979
    %v5048 = vunpack.c.l.b16 %v4980
    %v5049 = vunpack.c.l.b16 %v4981
    %v5050 = vunpack.c.l.b16 %v4982
    %v5051 = vunpack.c.l.b16 %v4983
    %v5052 = vunpack.c.l.b16 %v4984
    %v5053 = vunpack.c.l.b16 %v4985
    %v5054 = vunpack.c.l.b16 %v4986
    %v5055 = vunpack.c.l.b16 %v4987
    %v5056 = vunpack.c.l.b16 %v4988
    %v5057 = vunpack.c.l.b16 %v4989
    %v5058 = vunpack.c.l.b16 %v4990
    %v5059 = vunpack.c.l.b16 %v4991
    %v5060 = vunpack.c.l.b16 %v4992
    %v5061 = vunpack.c.l.b16 %v4993
    %v5062 = vunpack.c.l.b16 %v4994
    %v5063 = vunpack.c.l.b16 %v4995
    %v5064 = vunpack.c.l.b16 %v4996
    %v5065 = vunpack.c.l.b16 %v4997
    %v5066 = vunpack.c.l.b16 %v4998
    %v5067 = vunpack.c.l.b16 %v4999
    %v5068 = vunpack.c.l.b16 %v5000
    %v5069 = vunpack.c.l.b16 %v5001
    %v5070 = vunpack.c.l.b16 %v5002
    %v5071 = vunpack.c.l.b16 %v5003
    %v5072 = vunpack.c.l.b16 %v5004
    %v5073 = vunpack.c.l.b16 %v5005
    %v5074 = vunpack.c.l.b16 %v5006
    %v5075 = vunpack.c.l.b16 %v5007
    %v5076 = vunpack.c.l.b16 %v5008
    %v5077 = vpack.c.b16 %v5046, %v5045
    %v5078 = vpack.c.b16 %v5048, %v5047
    %v5079 = vpack.c.b16 %v5050, %v5049
    %v5080 = vpack.c.b16 %v5052, %v5051
    %v5081 = vpack.c.b16 %v5054, %v5053
    %v5082 = vpack.c.b16 %v5056, %v5055
    %v5083 = vpack.c.b16 %v5058, %v5057
    %v5084 = vpack.c.b16 %v5060, %v5059
    %v5085 = vpack.c.b16 %v5062, %v5061
    %v5086 = vpack.c.b16 %v5064, %v5063
    %v5087 = vpack.c.b16 %v5066, %v5065
    %v5088 = vpack.c.b16 %v5068, %v5067
    %v5089 = vpack.c.b16 %v5070, %v5069
    %v5090 = vpack.c.b16 %v5072, %v5071
    %v5091 = vpack.c.b16 %v5074, %v5073
    %v5092 = vpack.c.b16 %v5076, %v5075
    %5109 = vmatpush.bf16.msra.mxu0 %v5084
    %5110 = vmatpush.bf16.msra.mxu0 %v5083
    %5111 = vmatpush.bf16.msra.mxu0 %v5082
    %5112 = vmatpush.bf16.msra.mxu0 %v5081
    %5113 = vmatpush.bf16.msra.mxu0 %v5080
    %5114 = vmatpush.bf16.msra.mxu0 %v5079
    %5115 = vmatpush.bf16.msra.mxu0 %v5078
    %5116 = vmatpush.bf16.msra.mxu0 %v5077
    %5117 = vmatmul.bf16.gmra.mxu0 %v4961
    %v5118 = vpop.f32.mrf.mxu0
    %v5119 = vadd.f32 %v5011, %v5118
    %v5120 = vpop.f32.mrf.mxu0
    %v5121 = vadd.f32 %v5011, %v5120
    %5122 = vmatmul.bf16.gmra.mxu0 %v4963
    %v5123 = vpop.f32.mrf.mxu0
    %v5124 = vadd.f32 %v5011, %v5123
    %v5125 = vpop.f32.mrf.mxu0
    %v5126 = vadd.f32 %v5011, %v5125
    %5127 = vmatmul.bf16.gmra.mxu0 %v4965
    %v5128 = vpop.f32.mrf.mxu0
    %v5129 = vadd.f32 %v5011, %v5128
    %v5130 = vpop.f32.mrf.mxu0
    %v5131 = vadd.f32 %v5011, %v5130
    %5132 = vmatmul.bf16.gmra.mxu0 %v4967
    %v5133 = vpop.f32.mrf.mxu0
    %v5134 = vadd.f32 %v5011, %v5133
    %v5135 = vpop.f32.mrf.mxu0
    %v5136 = vadd.f32 %v5011, %v5135
    %5137 = vmatmul.bf16.gmra.mxu0 %v4969
    %v5138 = vpop.f32.mrf.mxu0
    %v5139 = vadd.f32 %v5011, %v5138
    %v5140 = vpop.f32.mrf.mxu0
    %v5141 = vadd.f32 %v5011, %v5140
    %5142 = vmatmul.bf16.gmra.mxu0 %v4971
    %v5143 = vpop.f32.mrf.mxu0
    %v5144 = vadd.f32 %v5011, %v5143
    %v5145 = vpop.f32.mrf.mxu0
    %v5146 = vadd.f32 %v5011, %v5145
    %5147 = vmatmul.bf16.gmra.mxu0 %v4973
    %v5148 = vpop.f32.mrf.mxu0
    %v5149 = vadd.f32 %v5011, %v5148
    %v5150 = vpop.f32.mrf.mxu0
    %v5151 = vadd.f32 %v5011, %v5150
    %5152 = vmatmul.bf16.gmra.mxu0 %v4975
    %v5153 = vpop.f32.mrf.mxu0
    %v5154 = vadd.f32 %v5011, %v5153
    %v5155 = vpop.f32.mrf.mxu0
    %v5156 = vadd.f32 %v5011, %v5155
    %5157 = vdwg.mxu0
    %5158 = vmatpush.bf16.msra.mxu0 %v5092
    %5159 = vmatpush.bf16.msra.mxu0 %v5091
    %5160 = vmatpush.bf16.msra.mxu0 %v5090
    %5161 = vmatpush.bf16.msra.mxu0 %v5089
    %5162 = vmatpush.bf16.msra.mxu0 %v5088
    %5163 = vmatpush.bf16.msra.mxu0 %v5087
    %5164 = vmatpush.bf16.msra.mxu0 %v5086
    %5165 = vmatpush.bf16.msra.mxu0 %v5085
    %5166 = vmatmul.bf16.gmra.mxu0 %v4962
    %v5167 = vpop.f32.mrf.mxu0
    %v5168 = vadd.f32 %v5119, %v5167
    %v5169 = vpop.f32.mrf.mxu0
    %v5170 = vadd.f32 %v5121, %v5169
    %5171 = vmatmul.bf16.gmra.mxu0 %v4964
    %v5172 = vpop.f32.mrf.mxu0
    %v5173 = vadd.f32 %v5124, %v5172
    %v5174 = vpop.f32.mrf.mxu0
    %v5175 = vadd.f32 %v5126, %v5174
    %5176 = vmatmul.bf16.gmra.mxu0 %v4966
    %v5177 = vpop.f32.mrf.mxu0
    %v5178 = vadd.f32 %v5129, %v5177
    %v5179 = vpop.f32.mrf.mxu0
    %v5180 = vadd.f32 %v5131, %v5179
    %5181 = vmatmul.bf16.gmra.mxu0 %v4968
    %v5182 = vpop.f32.mrf.mxu0
    %v5183 = vadd.f32 %v5134, %v5182
    %v5184 = vpop.f32.mrf.mxu0
    %v5185 = vadd.f32 %v5136, %v5184
    %5186 = vmatmul.bf16.gmra.mxu0 %v4970
    %v5187 = vpop.f32.mrf.mxu0
    %v5188 = vadd.f32 %v5139, %v5187
    %v5189 = vpop.f32.mrf.mxu0
    %v5190 = vadd.f32 %v5141, %v5189
    %5191 = vmatmul.bf16.gmra.mxu0 %v4972
    %v5192 = vpop.f32.mrf.mxu0
    %v5193 = vadd.f32 %v5144, %v5192
    %v5194 = vpop.f32.mrf.mxu0
    %v5195 = vadd.f32 %v5146, %v5194
    %5196 = vmatmul.bf16.gmra.mxu0 %v4974
    %v5197 = vpop.f32.mrf.mxu0
    %v5198 = vadd.f32 %v5149, %v5197
    %v5199 = vpop.f32.mrf.mxu0
    %v5200 = vadd.f32 %v5151, %v5199
    %5201 = vmatmul.bf16.gmra.mxu0 %v4976
    %v5202 = vpop.f32.mrf.mxu0
    %v5203 = vadd.f32 %v5154, %v5202
    %v5204 = vpop.f32.mrf.mxu0
    %v5205 = vadd.f32 %v5156, %v5204
    %5206 = vdwg.mxu0
    %5207 = vmax.xlane.f32.xlu0 %v5168
    %v5208 = vpop.xlane.xlu0 %5207
    %5209 = vmax.xlane.f32.xlu0 %v5170
    %v5210 = vpop.xlane.xlu0 %5209
    %5211 = vmax.xlane.f32.xlu0 %v5173
    %v5212 = vpop.xlane.xlu0 %5211
    %5213 = vmax.xlane.f32.xlu0 %v5175
    %v5214 = vpop.xlane.xlu0 %5213
    %5215 = vmax.xlane.f32.xlu0 %v5178
    %v5216 = vpop.xlane.xlu0 %5215
    %5217 = vmax.xlane.f32.xlu0 %v5180
    %v5218 = vpop.xlane.xlu0 %5217
    %5219 = vmax.xlane.f32.xlu0 %v5183
    %v5220 = vpop.xlane.xlu0 %5219
    %5221 = vmax.xlane.f32.xlu0 %v5185
    %v5222 = vpop.xlane.xlu0 %5221
    %5223 = vmax.xlane.f32.xlu0 %v5188
    %v5224 = vpop.xlane.xlu0 %5223
    %5225 = vmax.xlane.f32.xlu0 %v5190
    %v5226 = vpop.xlane.xlu0 %5225
    %5227 = vmax.xlane.f32.xlu0 %v5193
    %v5228 = vpop.xlane.xlu0 %5227
    %5229 = vmax.xlane.f32.xlu0 %v5195
    %v5230 = vpop.xlane.xlu0 %5229
    %5231 = vmax.xlane.f32.xlu0 %v5198
    %v5232 = vpop.xlane.xlu0 %5231
    %5233 = vmax.xlane.f32.xlu0 %v5200
    %v5234 = vpop.xlane.xlu0 %5233
    %5235 = vmax.xlane.f32.xlu0 %v5203
    %v5236 = vpop.xlane.xlu0 %5235
    %5237 = vmax.xlane.f32.xlu0 %v5205
    %v5238 = vpop.xlane.xlu0 %5237
    %v5239 = vsub.f32 %v5168, %v5208
    %v5240 = vsub.f32 %v5170, %v5210
    %v5241 = vsub.f32 %v5173, %v5212
    %v5242 = vsub.f32 %v5175, %v5214
    %v5243 = vsub.f32 %v5178, %v5216
    %v5244 = vsub.f32 %v5180, %v5218
    %v5245 = vsub.f32 %v5183, %v5220
    %v5246 = vsub.f32 %v5185, %v5222
    %v5247 = vsub.f32 %v5188, %v5224
    %v5248 = vsub.f32 %v5190, %v5226
    %v5249 = vsub.f32 %v5193, %v5228
    %v5250 = vsub.f32 %v5195, %v5230
    %v5251 = vsub.f32 %v5198, %v5232
    %v5252 = vsub.f32 %v5200, %v5234
    %v5253 = vsub.f32 %v5203, %v5236
    %v5254 = vsub.f32 %v5205, %v5238
    %v5255 = vmul.f32 %v5239, 1.442695
    %v5256 = vpow.pop %v5255
    %v5257 = vmul.f32 %v5240, 1.442695
    %v5258 = vpow.pop %v5257
    %v5259 = vmul.f32 %v5241, 1.442695
    %v5260 = vpow.pop %v5259
    %v5261 = vmul.f32 %v5242, 1.442695
    %v5262 = vpow.pop %v5261
    %v5263 = vmul.f32 %v5243, 1.442695
    %v5264 = vpow.pop %v5263
    %v5265 = vmul.f32 %v5244, 1.442695
    %v5266 = vpow.pop %v5265
    %v5267 = vmul.f32 %v5245, 1.442695
    %v5268 = vpow.pop %v5267
    %v5269 = vmul.f32 %v5246, 1.442695
    %v5270 = vpow.pop %v5269
    %v5271 = vmul.f32 %v5247, 1.442695
    %v5272 = vpow.pop %v5271
    %v5273 = vmul.f32 %v5248, 1.442695
    %v5274 = vpow.pop %v5273
    %v5275 = vmul.f32 %v5249, 1.442695
    %v5276 = vpow.pop %v5275
    %v5277 = vmul.f32 %v5250, 1.442695
    %v5278 = vpow.pop %v5277
    %v5279 = vmul.f32 %v5251, 1.442695
    %v5280 = vpow.pop %v5279
    %v5281 = vmul.f32 %v5252, 1.442695
    %v5282 = vpow.pop %v5281
    %v5283 = vmul.f32 %v5253, 1.442695
    %v5284 = vpow.pop %v5283
    %v5285 = vmul.f32 %v5254, 1.442695
    %v5286 = vpow.pop %v5285
    %5287 = vadd.xlane.f32.xlu0 %v5256
    %v5288 = vpop.xlane.xlu0 %5287
    %5289 = vadd.xlane.f32.xlu0 %v5258
    %v5290 = vpop.xlane.xlu0 %5289
    %5291 = vadd.xlane.f32.xlu0 %v5260
    %v5292 = vpop.xlane.xlu0 %5291
    %5293 = vadd.xlane.f32.xlu0 %v5262
    %v5294 = vpop.xlane.xlu0 %5293
    %5295 = vadd.xlane.f32.xlu0 %v5264
    %v5296 = vpop.xlane.xlu0 %5295
    %5297 = vadd.xlane.f32.xlu0 %v5266
    %v5298 = vpop.xlane.xlu0 %5297
    %5299 = vadd.xlane.f32.xlu0 %v5268
    %v5300 = vpop.xlane.xlu0 %5299
    %5301 = vadd.xlane.f32.xlu0 %v5270
    %v5302 = vpop.xlane.xlu0 %5301
    %5303 = vadd.xlane.f32.xlu0 %v5272
    %v5304 = vpop.xlane.xlu0 %5303
    %5305 = vadd.xlane.f32.xlu0 %v5274
    %v5306 = vpop.xlane.xlu0 %5305
    %5307 = vadd.xlane.f32.xlu0 %v5276
    %v5308 = vpop.xlane.xlu0 %5307
    %5309 = vadd.xlane.f32.xlu0 %v5278
    %v5310 = vpop.xlane.xlu0 %5309
    %5311 = vadd.xlane.f32.xlu0 %v5280
    %v5312 = vpop.xlane.xlu0 %5311
    %5313 = vadd.xlane.f32.xlu0 %v5282
    %v5314 = vpop.xlane.xlu0 %5313
    %5315 = vadd.xlane.f32.xlu0 %v5284
    %v5316 = vpop.xlane.xlu0 %5315
    %5317 = vadd.xlane.f32.xlu0 %v5286
    %v5318 = vpop.xlane.xlu0 %5317
    %v5319 = vrcp.pop %v5288
    %v5320 = vmul.f32 %v5288, %v5319
    %v5321 = vsub.f32 1.0, %v5320
    %v5322 = vmul.f32 %v5319, %v5321
    %v5323 = vadd.f32 %v5319, %v5322
    %vm5324 = vweird.f32 %v5288
    %vm5325 = vweird.f32 %v5319
    %vm5326 = vmor %vm5324, %vm5325
    %v5327 = vsel %vm5326, %v5319, %v5323
    %v5328 = vand.u32 2147483647, %v5288
    %vm5329 = vcmp.eq.f32.partialorder %v5328, 8.507059e+37
    %v5330 = vand.u32 %v5288, 2147483648
    %v5331 = vor.u32 1.1754944e-38, %v5330
    %v5332 = vsel %vm5329, %v5331, %v5327
    %v5333 = vmul.f32 %v5256, %v5332
    %v5334 = vrcp.pop %v5290
    %v5335 = vmul.f32 %v5290, %v5334
    %v5336 = vsub.f32 1.0, %v5335
    %v5337 = vmul.f32 %v5334, %v5336
    %v5338 = vadd.f32 %v5334, %v5337
    %vm5339 = vweird.f32 %v5290
    %vm5340 = vweird.f32 %v5334
    %vm5341 = vmor %vm5339, %vm5340
    %v5342 = vsel %vm5341, %v5334, %v5338
    %v5343 = vand.u32 2147483647, %v5290
    %vm5344 = vcmp.eq.f32.partialorder %v5343, 8.507059e+37
    %v5345 = vand.u32 %v5290, 2147483648
    %v5346 = vor.u32 1.1754944e-38, %v5345
    %v5347 = vsel %vm5344, %v5346, %v5342
    %v5348 = vmul.f32 %v5258, %v5347
    %v5349 = vrcp.pop %v5292
    %v5350 = vmul.f32 %v5292, %v5349
    %v5351 = vsub.f32 1.0, %v5350
    %v5352 = vmul.f32 %v5349, %v5351
    %v5353 = vadd.f32 %v5349, %v5352
    %vm5354 = vweird.f32 %v5292
    %vm5355 = vweird.f32 %v5349
    %vm5356 = vmor %vm5354, %vm5355
    %v5357 = vsel %vm5356, %v5349, %v5353
    %v5358 = vand.u32 2147483647, %v5292
    %vm5359 = vcmp.eq.f32.partialorder %v5358, 8.507059e+37
    %v5360 = vand.u32 %v5292, 2147483648
    %v5361 = vor.u32 1.1754944e-38, %v5360
    %v5362 = vsel %vm5359, %v5361, %v5357
    %v5363 = vmul.f32 %v5260, %v5362
    %v5364 = vrcp.pop %v5294
    %v5365 = vmul.f32 %v5294, %v5364
    %v5366 = vsub.f32 1.0, %v5365
    %v5367 = vmul.f32 %v5364, %v5366
    %v5368 = vadd.f32 %v5364, %v5367
    %vm5369 = vweird.f32 %v5294
    %vm5370 = vweird.f32 %v5364
    %vm5371 = vmor %vm5369, %vm5370
    %v5372 = vsel %vm5371, %v5364, %v5368
    %v5373 = vand.u32 2147483647, %v5294
    %vm5374 = vcmp.eq.f32.partialorder %v5373, 8.507059e+37
    %v5375 = vand.u32 %v5294, 2147483648
    %v5376 = vor.u32 1.1754944e-38, %v5375
    %v5377 = vsel %vm5374, %v5376, %v5372
    %v5378 = vmul.f32 %v5262, %v5377
    %v5379 = vrcp.pop %v5296
    %v5380 = vmul.f32 %v5296, %v5379
    %v5381 = vsub.f32 1.0, %v5380
    %v5382 = vmul.f32 %v5379, %v5381
    %v5383 = vadd.f32 %v5379, %v5382
    %vm5384 = vweird.f32 %v5296
    %vm5385 = vweird.f32 %v5379
    %vm5386 = vmor %vm5384, %vm5385
    %v5387 = vsel %vm5386, %v5379, %v5383
    %v5388 = vand.u32 2147483647, %v5296
    %vm5389 = vcmp.eq.f32.partialorder %v5388, 8.507059e+37
    %v5390 = vand.u32 %v5296, 2147483648
    %v5391 = vor.u32 1.1754944e-38, %v5390
    %v5392 = vsel %vm5389, %v5391, %v5387
    %v5393 = vmul.f32 %v5264, %v5392
    %v5394 = vrcp.pop %v5298
    %v5395 = vmul.f32 %v5298, %v5394
    %v5396 = vsub.f32 1.0, %v5395
    %v5397 = vmul.f32 %v5394, %v5396
    %v5398 = vadd.f32 %v5394, %v5397
    %vm5399 = vweird.f32 %v5298
    %vm5400 = vweird.f32 %v5394
    %vm5401 = vmor %vm5399, %vm5400
    %v5402 = vsel %vm5401, %v5394, %v5398
    %v5403 = vand.u32 2147483647, %v5298
    %vm5404 = vcmp.eq.f32.partialorder %v5403, 8.507059e+37
    %v5405 = vand.u32 %v5298, 2147483648
    %v5406 = vor.u32 1.1754944e-38, %v5405
    %v5407 = vsel %vm5404, %v5406, %v5402
    %v5408 = vmul.f32 %v5266, %v5407
    %v5409 = vrcp.pop %v5300
    %v5410 = vmul.f32 %v5300, %v5409
    %v5411 = vsub.f32 1.0, %v5410
    %v5412 = vmul.f32 %v5409, %v5411
    %v5413 = vadd.f32 %v5409, %v5412
    %vm5414 = vweird.f32 %v5300
    %vm5415 = vweird.f32 %v5409
    %vm5416 = vmor %vm5414, %vm5415
    %v5417 = vsel %vm5416, %v5409, %v5413
    %v5418 = vand.u32 2147483647, %v5300
    %vm5419 = vcmp.eq.f32.partialorder %v5418, 8.507059e+37
    %v5420 = vand.u32 %v5300, 2147483648
    %v5421 = vor.u32 1.1754944e-38, %v5420
    %v5422 = vsel %vm5419, %v5421, %v5417
    %v5423 = vmul.f32 %v5268, %v5422
    %v5424 = vrcp.pop %v5302
    %v5425 = vmul.f32 %v5302, %v5424
    %v5426 = vsub.f32 1.0, %v5425
    %v5427 = vmul.f32 %v5424, %v5426
    %v5428 = vadd.f32 %v5424, %v5427
    %vm5429 = vweird.f32 %v5302
    %vm5430 = vweird.f32 %v5424
    %vm5431 = vmor %vm5429, %vm5430
    %v5432 = vsel %vm5431, %v5424, %v5428
    %v5433 = vand.u32 2147483647, %v5302
    %vm5434 = vcmp.eq.f32.partialorder %v5433, 8.507059e+37
    %v5435 = vand.u32 %v5302, 2147483648
    %v5436 = vor.u32 1.1754944e-38, %v5435
    %v5437 = vsel %vm5434, %v5436, %v5432
    %v5438 = vmul.f32 %v5270, %v5437
    %v5439 = vrcp.pop %v5304
    %v5440 = vmul.f32 %v5304, %v5439
    %v5441 = vsub.f32 1.0, %v5440
    %v5442 = vmul.f32 %v5439, %v5441
    %v5443 = vadd.f32 %v5439, %v5442
    %vm5444 = vweird.f32 %v5304
    %vm5445 = vweird.f32 %v5439
    %vm5446 = vmor %vm5444, %vm5445
    %v5447 = vsel %vm5446, %v5439, %v5443
    %v5448 = vand.u32 2147483647, %v5304
    %vm5449 = vcmp.eq.f32.partialorder %v5448, 8.507059e+37
    %v5450 = vand.u32 %v5304, 2147483648
    %v5451 = vor.u32 1.1754944e-38, %v5450
    %v5452 = vsel %vm5449, %v5451, %v5447
    %v5453 = vmul.f32 %v5272, %v5452
    %v5454 = vrcp.pop %v5306
    %v5455 = vmul.f32 %v5306, %v5454
    %v5456 = vsub.f32 1.0, %v5455
    %v5457 = vmul.f32 %v5454, %v5456
    %v5458 = vadd.f32 %v5454, %v5457
    %vm5459 = vweird.f32 %v5306
    %vm5460 = vweird.f32 %v5454
    %vm5461 = vmor %vm5459, %vm5460
    %v5462 = vsel %vm5461, %v5454, %v5458
    %v5463 = vand.u32 2147483647, %v5306
    %vm5464 = vcmp.eq.f32.partialorder %v5463, 8.507059e+37
    %v5465 = vand.u32 %v5306, 2147483648
    %v5466 = vor.u32 1.1754944e-38, %v5465
    %v5467 = vsel %vm5464, %v5466, %v5462
    %v5468 = vmul.f32 %v5274, %v5467
    %v5469 = vrcp.pop %v5308
    %v5470 = vmul.f32 %v5308, %v5469
    %v5471 = vsub.f32 1.0, %v5470
    %v5472 = vmul.f32 %v5469, %v5471
    %v5473 = vadd.f32 %v5469, %v5472
    %vm5474 = vweird.f32 %v5308
    %vm5475 = vweird.f32 %v5469
    %vm5476 = vmor %vm5474, %vm5475
    %v5477 = vsel %vm5476, %v5469, %v5473
    %v5478 = vand.u32 2147483647, %v5308
    %vm5479 = vcmp.eq.f32.partialorder %v5478, 8.507059e+37
    %v5480 = vand.u32 %v5308, 2147483648
    %v5481 = vor.u32 1.1754944e-38, %v5480
    %v5482 = vsel %vm5479, %v5481, %v5477
    %v5483 = vmul.f32 %v5276, %v5482
    %v5484 = vrcp.pop %v5310
    %v5485 = vmul.f32 %v5310, %v5484
    %v5486 = vsub.f32 1.0, %v5485
    %v5487 = vmul.f32 %v5484, %v5486
    %v5488 = vadd.f32 %v5484, %v5487
    %vm5489 = vweird.f32 %v5310
    %vm5490 = vweird.f32 %v5484
    %vm5491 = vmor %vm5489, %vm5490
    %v5492 = vsel %vm5491, %v5484, %v5488
    %v5493 = vand.u32 2147483647, %v5310
    %vm5494 = vcmp.eq.f32.partialorder %v5493, 8.507059e+37
    %v5495 = vand.u32 %v5310, 2147483648
    %v5496 = vor.u32 1.1754944e-38, %v5495
    %v5497 = vsel %vm5494, %v5496, %v5492
    %v5498 = vmul.f32 %v5278, %v5497
    %v5499 = vrcp.pop %v5312
    %v5500 = vmul.f32 %v5312, %v5499
    %v5501 = vsub.f32 1.0, %v5500
    %v5502 = vmul.f32 %v5499, %v5501
    %v5503 = vadd.f32 %v5499, %v5502
    %vm5504 = vweird.f32 %v5312
    %vm5505 = vweird.f32 %v5499
    %vm5506 = vmor %vm5504, %vm5505
    %v5507 = vsel %vm5506, %v5499, %v5503
    %v5508 = vand.u32 2147483647, %v5312
    %vm5509 = vcmp.eq.f32.partialorder %v5508, 8.507059e+37
    %v5510 = vand.u32 %v5312, 2147483648
    %v5511 = vor.u32 1.1754944e-38, %v5510
    %v5512 = vsel %vm5509, %v5511, %v5507
    %v5513 = vmul.f32 %v5280, %v5512
    %v5514 = vrcp.pop %v5314
    %v5515 = vmul.f32 %v5314, %v5514
    %v5516 = vsub.f32 1.0, %v5515
    %v5517 = vmul.f32 %v5514, %v5516
    %v5518 = vadd.f32 %v5514, %v5517
    %vm5519 = vweird.f32 %v5314
    %vm5520 = vweird.f32 %v5514
    %vm5521 = vmor %vm5519, %vm5520
    %v5522 = vsel %vm5521, %v5514, %v5518
    %v5523 = vand.u32 2147483647, %v5314
    %vm5524 = vcmp.eq.f32.partialorder %v5523, 8.507059e+37
    %v5525 = vand.u32 %v5314, 2147483648
    %v5526 = vor.u32 1.1754944e-38, %v5525
    %v5527 = vsel %vm5524, %v5526, %v5522
    %v5528 = vmul.f32 %v5282, %v5527
    %v5529 = vrcp.pop %v5316
    %v5530 = vmul.f32 %v5316, %v5529
    %v5531 = vsub.f32 1.0, %v5530
    %v5532 = vmul.f32 %v5529, %v5531
    %v5533 = vadd.f32 %v5529, %v5532
    %vm5534 = vweird.f32 %v5316
    %vm5535 = vweird.f32 %v5529
    %vm5536 = vmor %vm5534, %vm5535
    %v5537 = vsel %vm5536, %v5529, %v5533
    %v5538 = vand.u32 2147483647, %v5316
    %vm5539 = vcmp.eq.f32.partialorder %v5538, 8.507059e+37
    %v5540 = vand.u32 %v5316, 2147483648
    %v5541 = vor.u32 1.1754944e-38, %v5540
    %v5542 = vsel %vm5539, %v5541, %v5537
    %v5543 = vmul.f32 %v5284, %v5542
    %v5544 = vrcp.pop %v5318
    %v5545 = vmul.f32 %v5318, %v5544
    %v5546 = vsub.f32 1.0, %v5545
    %v5547 = vmul.f32 %v5544, %v5546
    %v5548 = vadd.f32 %v5544, %v5547
    %vm5549 = vweird.f32 %v5318
    %vm5550 = vweird.f32 %v5544
    %vm5551 = vmor %vm5549, %vm5550
    %v5552 = vsel %vm5551, %v5544, %v5548
    %v5553 = vand.u32 2147483647, %v5318
    %vm5554 = vcmp.eq.f32.partialorder %v5553, 8.507059e+37
    %v5555 = vand.u32 %v5318, 2147483648
    %v5556 = vor.u32 1.1754944e-38, %v5555
    %v5557 = vsel %vm5554, %v5556, %v5552
    %v5558 = vmul.f32 %v5286, %v5557
    %5559 = vst [vmem:[#allocation17] sm:$0xff] %v5333
    %5560 = vst [vmem:[#allocation17 + $0x8] sm:$0xff] %v5348
    %5561 = vst [vmem:[#allocation17 + $0x10] sm:$0xff] %v5363
    %5562 = vst [vmem:[#allocation17 + $0x18] sm:$0xff] %v5378
    %5563 = vst [vmem:[#allocation17 + $0x20] sm:$0xff] %v5393
    %5564 = vst [vmem:[#allocation17 + $0x28] sm:$0xff] %v5408
    %5565 = vst [vmem:[#allocation17 + $0x30] sm:$0xff] %v5423
    %5566 = vst [vmem:[#allocation17 + $0x38] sm:$0xff] %v5438
    %5567 = vst [vmem:[#allocation17 + $0x40] sm:$0xff] %v5453
    %5568 = vst [vmem:[#allocation17 + $0x48] sm:$0xff] %v5468
    %5569 = vst [vmem:[#allocation17 + $0x50] sm:$0xff] %v5483
    %5570 = vst [vmem:[#allocation17 + $0x58] sm:$0xff] %v5498
    %5571 = vst [vmem:[#allocation17 + $0x60] sm:$0xff] %v5513
    %5572 = vst [vmem:[#allocation17 + $0x68] sm:$0xff] %v5528
    %5573 = vst [vmem:[#allocation17 + $0x70] sm:$0xff] %v5543
    %5574 = vst [vmem:[#allocation17 + $0x78] sm:$0xff] %v5558
    // Predicated region
    $region90: #{tpu_custom_call.1} parent=1 // pred_check
      _
    $region91: #{tpu_custom_call.1} parent=1 // pred_check_branch
      %5576 = sbr.rel (0) target = $region93
    $region92: #{tpu_custom_call.1} parent=1 // pred_region
      %5578 = vsyncadd [#allocation4], 0
      %s5579 = sshll.u32 [#allocation17], 4
      %s5580 = int_to_ptr.vmem [resolvable:$true] %s5579
      %s5581 = sshll.u32 %s13, 4
      %s5582 = int_to_ptr.hbm [resolvable:$true] %s5581
      %5587 = dma.vmem_to_hbm [thread:$0]  %s5580, 2048, %s5582, [#allocation4], 128, 128, 8
    $region93: #{tpu_custom_call.1} parent=1 // pred_fallthru
      _
    // Predicated region
    $region94: #{tpu_custom_call.1} parent=1 // pred_check
      _
    $region95: #{tpu_custom_call.1} parent=1 // pred_check_branch
      %5589 = sbr.rel (0) target = $region97
    $region96: #{tpu_custom_call.1} parent=1 // pred_region
      %5591 = dma.done [#allocation4], 2048
    $region97: #{tpu_custom_call.1} parent=1 // pred_fallthru
      _
    %5592 = vsyncpa [#allocation3], 1
    %5593 = vsyncpa [#allocation6], 1
    %5594 = vsyncpa [#allocation9], 1
    %5595 = vsyncpa [#allocation12], 1
    %5596 = vsyncpa [#allocation15], 1
    %5597 = vsyncpa [#allocation4], 1

</llo_original>
